<compile_context>
chip_gen: v7x
topology: tpu7x:2x2x1
jax: 0.10.0
libtpu: 0.0.40
codegen_flags: <defaults>
</compile_context>

<pallas_src>
import numpy as np

import jax
import jax.numpy as jnp
from jax.experimental import pallas as pl
from jax.experimental.pallas import tpu as pltpu


# ---------------------------------------------------------------------------
# fused kernel: one grid step == one image
# ---------------------------------------------------------------------------
def _lenet_fused_kernel(x_ref, w1_ref, b1_ref, sel_ref, w2_ref, b2_ref,
                        wf1_ref, bf1_ref, wf2_ref, bf2_ref, wf3_ref, bf3_ref,
                        logits_ref, logp_ref):
    f32 = jnp.float32
    x = x_ref[0]                                      # (3, 32, 32) NCHW image

    # conv1 (3->6, k=5, valid) + bias + relu.  Output lane layout: c1*28 + ow.
    acc1 = jnp.zeros((28, 6 * 28), f32)
    for i in range(5):
        for c in range(3):
            acc1 = acc1 + jnp.dot(x[c, i:i + 28, :], w1_ref[i * 3 + c],
                                  preferred_element_type=f32)
    y1 = jnp.maximum(acc1 + b1_ref[...], 0.0)         # (28, 168)

    # max-pool 2x2/2: pair-max along W (lanes) and H (sublanes).  Even-row
    # selection is the tiny 0/1 matmul `sel_ref`; even-column selection is
    # folded into the conv2 band weights (their odd-lane rows are zero).
    wm = jnp.maximum(y1[:, 0:167], y1[:, 1:168])      # (28, 167)
    hm = jnp.maximum(wm[0:27, :], wm[1:28, :])        # (27, 167)
    p1 = jnp.dot(sel_ref[...], hm, preferred_element_type=f32)   # (14, 167)

    # conv2 (6->16, k=5, valid) + bias + relu.  Output lane layout: c2*10 + ow.
    acc2 = jnp.zeros((10, 16 * 10), f32)
    for i in range(5):
        acc2 = acc2 + jnp.dot(p1[i:i + 10, :], w2_ref[i],
                              preferred_element_type=f32)
    y2 = jnp.maximum(acc2 + b2_ref[...], 0.0)         # (10, 160)

    # max-pool 2x2/2 (down-selection folded into the fc1 band weights).
    wm2 = jnp.maximum(y2[:, 0:159], y2[:, 1:160])     # (10, 159)
    hm2 = jnp.maximum(wm2[0:9, :], wm2[1:10, :])      # (9, 159)

    # fc1 (400->120): PyTorch (C,H,W) flatten order + pool selection are baked
    # into wf1_ref; contract row-by-row over the 5 pooled H positions.
    h = jnp.zeros((1, 120), f32)
    for r in range(5):
        h = h + jnp.dot(hm2[2 * r:2 * r + 1, :], wf1_ref[r],
                        preferred_element_type=f32)
    h = jnp.maximum(h + bf1_ref[...], 0.0)

    # fc2 (120->84) + relu
    h = jnp.maximum(jnp.dot(h, wf2_ref[...], preferred_element_type=f32)
                    + bf2_ref[...], 0.0)

    # fc3 (84->10) + log_softmax (numerically stable, f32)
    logits = jnp.dot(h, wf3_ref[...], preferred_element_type=f32) + bf3_ref[...]
    m = jnp.max(logits, axis=-1, keepdims=True)
    z = logits - m
    lse = jnp.log(jnp.sum(jnp.exp(z), axis=-1, keepdims=True))
    logits_ref[0] = logits
    logp_ref[0] = z - lse


# ---------------------------------------------------------------------------
# one-time host-side weight prep (numpy; zero per-forward cost)
# ---------------------------------------------------------------------------
def prepare_params(p):
    w1 = np.asarray(p['conv1_w'], np.float32)         # (6, 3, 5, 5)
    w2 = np.asarray(p['conv2_w'], np.float32)         # (16, 6, 5, 5)
    f1 = np.asarray(p['fc1_w'], np.float32).reshape(120, 16, 5, 5)

    # conv1 band: index (i*3+c, w_in=ow+j, c1*28+ow) holds w1[c1, c, i, j]
    w1b = np.zeros((15, 32, 6 * 28), np.float32)
    for i in range(5):
        for j in range(5):
            for ow in range(28):
                w1b[i * 3:i * 3 + 3, ow + j, ow::28] = w1[:, :, i, j].T

    # conv2 band: input lanes are H-pooled conv1 lanes (c1*28 + w, w even)
    w2b = np.zeros((5, 167, 16 * 10), np.float32)
    for i in range(5):
        for j in range(5):
            for ow in range(10):
                for c in range(6):
                    w2b[i, c * 28 + 2 * (ow + j), ow::10] = w2[:, c, i, j]

    # fc1 band: input lanes are H-pooled conv2 lanes (c2*10 + w, w even);
    # PyTorch (C, H, W) flatten ordering folded in.
    wf1 = np.zeros((5, 159, 120), np.float32)
    for ph in range(5):
        for pw in range(5):
            for c in range(16):
                wf1[ph, c * 10 + 2 * pw, :] = f1[:, c, ph, pw]

    sel = np.zeros((14, 27), np.float32)               # picks even H rows
    sel[np.arange(14), 2 * np.arange(14)] = 1.0

    return {
        'w1_band': jnp.asarray(w1b),
        'b1_lane': jnp.asarray(np.repeat(np.asarray(p['conv1_b'], np.float32), 28)[None, :]),
        'sel': jnp.asarray(sel),
        'w2_band': jnp.asarray(w2b),
        'b2_lane': jnp.asarray(np.repeat(np.asarray(p['conv2_b'], np.float32), 10)[None, :]),
        'wf1_band': jnp.asarray(wf1),
        'fc1_b': jnp.asarray(np.asarray(p['fc1_b'], np.float32)[None, :]),
        'fc2_wt': jnp.asarray(np.asarray(p['fc2_w'], np.float32).T),
        'fc2_b': jnp.asarray(np.asarray(p['fc2_b'], np.float32)[None, :]),
        'fc3_wt': jnp.asarray(np.asarray(p['fc3_w'], np.float32).T),
        'fc3_b': jnp.asarray(np.asarray(p['fc3_b'], np.float32)[None, :]),
    }


# ---------------------------------------------------------------------------
# wrapper: one pallas_call for the whole network
# ---------------------------------------------------------------------------
def lenet_forward(x_nchw, pp):
    B = x_nchw.shape[0]
    logits3, logp3 = pl.pallas_call(
        _lenet_fused_kernel,
        out_shape=(jax.ShapeDtypeStruct((B, 1, 10), jnp.float32),
                   jax.ShapeDtypeStruct((B, 1, 10), jnp.float32)),
        grid=(B,),
        in_specs=[
            pl.BlockSpec((1, 3, 32, 32), lambda b: (b, 0, 0, 0)),   # image
            pl.BlockSpec((15, 32, 168), lambda b: (0, 0, 0)),       # conv1 band
            pl.BlockSpec((1, 168), lambda b: (0, 0)),               # conv1 bias (lane layout)
            pl.BlockSpec((14, 27), lambda b: (0, 0)),               # pool1 row-select
            pl.BlockSpec((5, 167, 160), lambda b: (0, 0, 0)),       # conv2 band
            pl.BlockSpec((1, 160), lambda b: (0, 0)),               # conv2 bias (lane layout)
            pl.BlockSpec((5, 159, 120), lambda b: (0, 0, 0)),       # fc1 band
            pl.BlockSpec((1, 120), lambda b: (0, 0)),               # fc1 bias
            pl.BlockSpec((120, 84), lambda b: (0, 0)),              # fc2 weight (K, N)
            pl.BlockSpec((1, 84), lambda b: (0, 0)),                # fc2 bias
            pl.BlockSpec((84, 10), lambda b: (0, 0)),               # fc3 weight (K, N)
            pl.BlockSpec((1, 10), lambda b: (0, 0)),                # fc3 bias
        ],
        out_specs=(pl.BlockSpec((1, 1, 10), lambda b: (b, 0, 0)),
                   pl.BlockSpec((1, 1, 10), lambda b: (b, 0, 0))),
        compiler_params=pltpu.CompilerParams(
            dimension_semantics=("parallel",)),
    )(x_nchw, pp['w1_band'], pp['b1_lane'], pp['sel'], pp['w2_band'],
      pp['b2_lane'], pp['wf1_band'], pp['fc1_b'], pp['fc2_wt'], pp['fc2_b'],
      pp['fc3_wt'], pp['fc3_b'])
    return logits3[:, 0, :], logp3[:, 0, :]


# ---------------------------------------------------------------------------
# deterministic parameter init (PyTorch default-ish uniform bounds)
# ---------------------------------------------------------------------------
def init_params(key):
    ks = jax.random.split(key, 10)

    def u(k, shape, fan_in):
        bound = 1.0 / (fan_in ** 0.5)
        return jax.random.uniform(k, shape, jnp.float32, -bound, bound)

    return {
        'conv1_w': u(ks[0], (6, 3, 5, 5), 3 * 5 * 5),
        'conv1_b': u(ks[1], (6,), 3 * 5 * 5),
        'conv2_w': u(ks[2], (16, 6, 5, 5), 6 * 5 * 5),
        'conv2_b': u(ks[3], (16,), 6 * 5 * 5),
        'fc1_w': u(ks[4], (120, 400), 400),
        'fc1_b': u(ks[5], (120,), 400),
        'fc2_w': u(ks[6], (84, 120), 120),
        'fc2_b': u(ks[7], (84,), 120),
        'fc3_w': u(ks[8], (10, 84), 84),
        'fc3_b': u(ks[9], (10,), 84),
    }


# ---------------------------------------------------------------------------
# pure-JAX reference (for the correctness check only)
# ---------------------------------------------------------------------------
def reference_forward(x, p):
    dn = ('NCHW', 'OIHW', 'NCHW')
    y = jax.lax.conv_general_dilated(x, p['conv1_w'], (1, 1), 'VALID',
                                     dimension_numbers=dn)
    y = jax.nn.relu(y + p['conv1_b'][None, :, None, None])
    y = jax.lax.reduce_window(y, -jnp.inf, jax.lax.max,
                              (1, 1, 2, 2), (1, 1, 2, 2), 'VALID')
    y = jax.lax.conv_general_dilated(y, p['conv2_w'], (1, 1), 'VALID',
                                     dimension_numbers=dn)
    y = jax.nn.relu(y + p['conv2_b'][None, :, None, None])
    y = jax.lax.reduce_window(y, -jnp.inf, jax.lax.max,
                              (1, 1, 2, 2), (1, 1, 2, 2), 'VALID')
    f = y.reshape(y.shape[0], -1)
    h = jax.nn.relu(f @ p['fc1_w'].T + p['fc1_b'])
    h = jax.nn.relu(h @ p['fc2_w'].T + p['fc2_b'])
    logits = h @ p['fc3_w'].T + p['fc3_b']
    return logits, jax.nn.log_softmax(logits, axis=-1)


if __name__ == "__main__":
    key = jax.random.PRNGKey(0)
    pkey, xkey = jax.random.split(key)
    params = init_params(pkey)
    prepped = prepare_params(params)

    # 32x32 input so that flatten yields 400 features (16*5*5), as fc1 requires
    x = jax.random.normal(xkey, (2, 3, 32, 32), jnp.float32)

    fwd = jax.jit(lenet_forward)
    logits, logp = fwd(x, prepped)
    jax.block_until_ready((logits, logp))

    ref_logits, ref_logp = reference_forward(x, params)
    assert logits.shape == (2, 10) and logp.shape == (2, 10)
    assert jnp.allclose(logits, ref_logits, atol=2e-3, rtol=2e-3), \
        float(jnp.max(jnp.abs(logits - ref_logits)))
    assert jnp.allclose(logp, ref_logp, atol=2e-3, rtol=2e-3), \
        float(jnp.max(jnp.abs(logp - ref_logp)))

    print("KERNEL_OK")
</pallas_src>

<mosaic_0001>
module attributes {stable_mosaic.version = 11 : i64} {
  func.func @_lenet_fused_kernel(%arg0: i32, %arg1: memref<1x3x32x32xf32, #tpu.memory_space<vmem>>, %arg2: memref<15x32x168xf32, #tpu.memory_space<vmem>>, %arg3: memref<1x168xf32, #tpu.memory_space<vmem>>, %arg4: memref<14x27xf32, #tpu.memory_space<vmem>>, %arg5: memref<5x167x160xf32, #tpu.memory_space<vmem>>, %arg6: memref<1x160xf32, #tpu.memory_space<vmem>>, %arg7: memref<5x159x120xf32, #tpu.memory_space<vmem>>, %arg8: memref<1x120xf32, #tpu.memory_space<vmem>>, %arg9: memref<120x84xf32, #tpu.memory_space<vmem>>, %arg10: memref<1x84xf32, #tpu.memory_space<vmem>>, %arg11: memref<84x10xf32, #tpu.memory_space<vmem>>, %arg12: memref<1x10xf32, #tpu.memory_space<vmem>>, %arg13: memref<1x1x10xf32, #tpu.memory_space<vmem>>, %arg14: memref<1x1x10xf32, #tpu.memory_space<vmem>>) attributes {dimension_semantics = [#tpu.dimension_semantics<parallel>], iteration_bounds = array<i64: 2>, scalar_prefetch = 0 : i64, scratch_operands = 0 : i64, tpu.core_type = #tpu.core_type<tc>, window_params = [{transform_indices = @transform_0, window_bounds = array<i64: 1, 3, 32, 32>}, {pipeline_mode = #tpu.pipeline_mode<synchronous>, transform_indices = @transform_1, window_bounds = array<i64: 15, 32, 168>}, {pipeline_mode = #tpu.pipeline_mode<synchronous>, transform_indices = @transform_2, window_bounds = array<i64: 1, 168>}, {pipeline_mode = #tpu.pipeline_mode<synchronous>, transform_indices = @transform_3, window_bounds = array<i64: 14, 27>}, {pipeline_mode = #tpu.pipeline_mode<synchronous>, transform_indices = @transform_4, window_bounds = array<i64: 5, 167, 160>}, {pipeline_mode = #tpu.pipeline_mode<synchronous>, transform_indices = @transform_5, window_bounds = array<i64: 1, 160>}, {pipeline_mode = #tpu.pipeline_mode<synchronous>, transform_indices = @transform_6, window_bounds = array<i64: 5, 159, 120>}, {pipeline_mode = #tpu.pipeline_mode<synchronous>, transform_indices = @transform_7, window_bounds = array<i64: 1, 120>}, {pipeline_mode = #tpu.pipeline_mode<synchronous>, transform_indices = @transform_8, window_bounds = array<i64: 120, 84>}, {pipeline_mode = #tpu.pipeline_mode<synchronous>, transform_indices = @transform_9, window_bounds = array<i64: 1, 84>}, {pipeline_mode = #tpu.pipeline_mode<synchronous>, transform_indices = @transform_10, window_bounds = array<i64: 84, 10>}, {pipeline_mode = #tpu.pipeline_mode<synchronous>, transform_indices = @transform_11, window_bounds = array<i64: 1, 10>}, {transform_indices = @transform_12, window_bounds = array<i64: 1, 1, 10>}, {transform_indices = @transform_13, window_bounds = array<i64: 1, 1, 10>}]} {
    %c0 = arith.constant 0 : index
    %c0_0 = arith.constant 0 : index
    %c0_1 = arith.constant 0 : index
    %c0_2 = arith.constant 0 : index
    %0 = vector.load %arg1[%c0, %c0_0, %c0_1, %c0_2] : memref<1x3x32x32xf32, #tpu.memory_space<vmem>>, vector<1x3x32x32xf32>
    %1 = vector.shape_cast %0 : vector<1x3x32x32xf32> to vector<3x32x32xf32>
    %cst = arith.constant 0.000000e+00 : f32
    %2 = vector.broadcast %cst : f32 to vector<28x168xf32>
    %3 = vector.extract_strided_slice %1 {offsets = [0, 0, 0], sizes = [1, 28, 32], strides = [1, 1, 1]} : vector<3x32x32xf32> to vector<1x28x32xf32>
    %4 = vector.shape_cast %3 : vector<1x28x32xf32> to vector<28x32xf32>
    %c0_3 = arith.constant 0 : index
    %c0_4 = arith.constant 0 : index
    %c0_5 = arith.constant 0 : index
    %5 = vector.load %arg2[%c0_3, %c0_4, %c0_5] : memref<15x32x168xf32, #tpu.memory_space<vmem>>, vector<1x32x168xf32>
    %6 = vector.shape_cast %5 : vector<1x32x168xf32> to vector<32x168xf32>
    %cst_6 = arith.constant dense<0.000000e+00> : vector<28x168xf32>
    %7 = tpu.matmul %4, %6, %cst_6 {dimension_numbers = #tpu.dot_dimension_numbers<[1], [0], [0], [1], [0, 0, 1, 1], [], []>} : vector<28x32xf32>, vector<32x168xf32>, vector<28x168xf32> -> vector<28x168xf32>
    %8 = arith.addf %2, %7 : vector<28x168xf32>
    %9 = vector.extract_strided_slice %1 {offsets = [1, 0, 0], sizes = [1, 28, 32], strides = [1, 1, 1]} : vector<3x32x32xf32> to vector<1x28x32xf32>
    %10 = vector.shape_cast %9 : vector<1x28x32xf32> to vector<28x32xf32>
    %c1 = arith.constant 1 : index
    %c0_7 = arith.constant 0 : index
    %c0_8 = arith.constant 0 : index
    %11 = vector.load %arg2[%c1, %c0_7, %c0_8] : memref<15x32x168xf32, #tpu.memory_space<vmem>>, vector<1x32x168xf32>
    %12 = vector.shape_cast %11 : vector<1x32x168xf32> to vector<32x168xf32>
    %cst_9 = arith.constant dense<0.000000e+00> : vector<28x168xf32>
    %13 = tpu.matmul %10, %12, %cst_9 {dimension_numbers = #tpu.dot_dimension_numbers<[1], [0], [0], [1], [0, 0, 1, 1], [], []>} : vector<28x32xf32>, vector<32x168xf32>, vector<28x168xf32> -> vector<28x168xf32>
    %14 = arith.addf %8, %13 : vector<28x168xf32>
    %15 = vector.extract_strided_slice %1 {offsets = [2, 0, 0], sizes = [1, 28, 32], strides = [1, 1, 1]} : vector<3x32x32xf32> to vector<1x28x32xf32>
    %16 = vector.shape_cast %15 : vector<1x28x32xf32> to vector<28x32xf32>
    %c2 = arith.constant 2 : index
    %c0_10 = arith.constant 0 : index
    %c0_11 = arith.constant 0 : index
    %17 = vector.load %arg2[%c2, %c0_10, %c0_11] : memref<15x32x168xf32, #tpu.memory_space<vmem>>, vector<1x32x168xf32>
    %18 = vector.shape_cast %17 : vector<1x32x168xf32> to vector<32x168xf32>
    %cst_12 = arith.constant dense<0.000000e+00> : vector<28x168xf32>
    %19 = tpu.matmul %16, %18, %cst_12 {dimension_numbers = #tpu.dot_dimension_numbers<[1], [0], [0], [1], [0, 0, 1, 1], [], []>} : vector<28x32xf32>, vector<32x168xf32>, vector<28x168xf32> -> vector<28x168xf32>
    %20 = arith.addf %14, %19 : vector<28x168xf32>
    %21 = vector.extract_strided_slice %1 {offsets = [0, 1, 0], sizes = [1, 28, 32], strides = [1, 1, 1]} : vector<3x32x32xf32> to vector<1x28x32xf32>
    %22 = vector.shape_cast %21 : vector<1x28x32xf32> to vector<28x32xf32>
    %c3 = arith.constant 3 : index
    %c0_13 = arith.constant 0 : index
    %c0_14 = arith.constant 0 : index
    %23 = vector.load %arg2[%c3, %c0_13, %c0_14] : memref<15x32x168xf32, #tpu.memory_space<vmem>>, vector<1x32x168xf32>
    %24 = vector.shape_cast %23 : vector<1x32x168xf32> to vector<32x168xf32>
    %cst_15 = arith.constant dense<0.000000e+00> : vector<28x168xf32>
    %25 = tpu.matmul %22, %24, %cst_15 {dimension_numbers = #tpu.dot_dimension_numbers<[1], [0], [0], [1], [0, 0, 1, 1], [], []>} : vector<28x32xf32>, vector<32x168xf32>, vector<28x168xf32> -> vector<28x168xf32>
    %26 = arith.addf %20, %25 : vector<28x168xf32>
    %27 = vector.extract_strided_slice %1 {offsets = [1, 1, 0], sizes = [1, 28, 32], strides = [1, 1, 1]} : vector<3x32x32xf32> to vector<1x28x32xf32>
    %28 = vector.shape_cast %27 : vector<1x28x32xf32> to vector<28x32xf32>
    %c4 = arith.constant 4 : index
    %c0_16 = arith.constant 0 : index
    %c0_17 = arith.constant 0 : index
    %29 = vector.load %arg2[%c4, %c0_16, %c0_17] : memref<15x32x168xf32, #tpu.memory_space<vmem>>, vector<1x32x168xf32>
    %30 = vector.shape_cast %29 : vector<1x32x168xf32> to vector<32x168xf32>
    %cst_18 = arith.constant dense<0.000000e+00> : vector<28x168xf32>
    %31 = tpu.matmul %28, %30, %cst_18 {dimension_numbers = #tpu.dot_dimension_numbers<[1], [0], [0], [1], [0, 0, 1, 1], [], []>} : vector<28x32xf32>, vector<32x168xf32>, vector<28x168xf32> -> vector<28x168xf32>
    %32 = arith.addf %26, %31 : vector<28x168xf32>
    %33 = vector.extract_strided_slice %1 {offsets = [2, 1, 0], sizes = [1, 28, 32], strides = [1, 1, 1]} : vector<3x32x32xf32> to vector<1x28x32xf32>
    %34 = vector.shape_cast %33 : vector<1x28x32xf32> to vector<28x32xf32>
    %c5 = arith.constant 5 : index
    %c0_19 = arith.constant 0 : index
    %c0_20 = arith.constant 0 : index
    %35 = vector.load %arg2[%c5, %c0_19, %c0_20] : memref<15x32x168xf32, #tpu.memory_space<vmem>>, vector<1x32x168xf32>
    %36 = vector.shape_cast %35 : vector<1x32x168xf32> to vector<32x168xf32>
    %cst_21 = arith.constant dense<0.000000e+00> : vector<28x168xf32>
    %37 = tpu.matmul %34, %36, %cst_21 {dimension_numbers = #tpu.dot_dimension_numbers<[1], [0], [0], [1], [0, 0, 1, 1], [], []>} : vector<28x32xf32>, vector<32x168xf32>, vector<28x168xf32> -> vector<28x168xf32>
    %38 = arith.addf %32, %37 : vector<28x168xf32>
    %39 = vector.extract_strided_slice %1 {offsets = [0, 2, 0], sizes = [1, 28, 32], strides = [1, 1, 1]} : vector<3x32x32xf32> to vector<1x28x32xf32>
    %40 = vector.shape_cast %39 : vector<1x28x32xf32> to vector<28x32xf32>
    %c6 = arith.constant 6 : index
    %c0_22 = arith.constant 0 : index
    %c0_23 = arith.constant 0 : index
    %41 = vector.load %arg2[%c6, %c0_22, %c0_23] : memref<15x32x168xf32, #tpu.memory_space<vmem>>, vector<1x32x168xf32>
    %42 = vector.shape_cast %41 : vector<1x32x168xf32> to vector<32x168xf32>
    %cst_24 = arith.constant dense<0.000000e+00> : vector<28x168xf32>
    %43 = tpu.matmul %40, %42, %cst_24 {dimension_numbers = #tpu.dot_dimension_numbers<[1], [0], [0], [1], [0, 0, 1, 1], [], []>} : vector<28x32xf32>, vector<32x168xf32>, vector<28x168xf32> -> vector<28x168xf32>
    %44 = arith.addf %38, %43 : vector<28x168xf32>
    %45 = vector.extract_strided_slice %1 {offsets = [1, 2, 0], sizes = [1, 28, 32], strides = [1, 1, 1]} : vector<3x32x32xf32> to vector<1x28x32xf32>
    %46 = vector.shape_cast %45 : vector<1x28x32xf32> to vector<28x32xf32>
    %c7 = arith.constant 7 : index
    %c0_25 = arith.constant 0 : index
    %c0_26 = arith.constant 0 : index
    %47 = vector.load %arg2[%c7, %c0_25, %c0_26] : memref<15x32x168xf32, #tpu.memory_space<vmem>>, vector<1x32x168xf32>
    %48 = vector.shape_cast %47 : vector<1x32x168xf32> to vector<32x168xf32>
    %cst_27 = arith.constant dense<0.000000e+00> : vector<28x168xf32>
    %49 = tpu.matmul %46, %48, %cst_27 {dimension_numbers = #tpu.dot_dimension_numbers<[1], [0], [0], [1], [0, 0, 1, 1], [], []>} : vector<28x32xf32>, vector<32x168xf32>, vector<28x168xf32> -> vector<28x168xf32>
    %50 = arith.addf %44, %49 : vector<28x168xf32>
    %51 = vector.extract_strided_slice %1 {offsets = [2, 2, 0], sizes = [1, 28, 32], strides = [1, 1, 1]} : vector<3x32x32xf32> to vector<1x28x32xf32>
    %52 = vector.shape_cast %51 : vector<1x28x32xf32> to vector<28x32xf32>
    %c8 = arith.constant 8 : index
    %c0_28 = arith.constant 0 : index
    %c0_29 = arith.constant 0 : index
    %53 = vector.load %arg2[%c8, %c0_28, %c0_29] : memref<15x32x168xf32, #tpu.memory_space<vmem>>, vector<1x32x168xf32>
    %54 = vector.shape_cast %53 : vector<1x32x168xf32> to vector<32x168xf32>
    %cst_30 = arith.constant dense<0.000000e+00> : vector<28x168xf32>
    %55 = tpu.matmul %52, %54, %cst_30 {dimension_numbers = #tpu.dot_dimension_numbers<[1], [0], [0], [1], [0, 0, 1, 1], [], []>} : vector<28x32xf32>, vector<32x168xf32>, vector<28x168xf32> -> vector<28x168xf32>
    %56 = arith.addf %50, %55 : vector<28x168xf32>
    %57 = vector.extract_strided_slice %1 {offsets = [0, 3, 0], sizes = [1, 28, 32], strides = [1, 1, 1]} : vector<3x32x32xf32> to vector<1x28x32xf32>
    %58 = vector.shape_cast %57 : vector<1x28x32xf32> to vector<28x32xf32>
    %c9 = arith.constant 9 : index
    %c0_31 = arith.constant 0 : index
    %c0_32 = arith.constant 0 : index
    %59 = vector.load %arg2[%c9, %c0_31, %c0_32] : memref<15x32x168xf32, #tpu.memory_space<vmem>>, vector<1x32x168xf32>
    %60 = vector.shape_cast %59 : vector<1x32x168xf32> to vector<32x168xf32>
    %cst_33 = arith.constant dense<0.000000e+00> : vector<28x168xf32>
    %61 = tpu.matmul %58, %60, %cst_33 {dimension_numbers = #tpu.dot_dimension_numbers<[1], [0], [0], [1], [0, 0, 1, 1], [], []>} : vector<28x32xf32>, vector<32x168xf32>, vector<28x168xf32> -> vector<28x168xf32>
    %62 = arith.addf %56, %61 : vector<28x168xf32>
    %63 = vector.extract_strided_slice %1 {offsets = [1, 3, 0], sizes = [1, 28, 32], strides = [1, 1, 1]} : vector<3x32x32xf32> to vector<1x28x32xf32>
    %64 = vector.shape_cast %63 : vector<1x28x32xf32> to vector<28x32xf32>
    %c10 = arith.constant 10 : index
    %c0_34 = arith.constant 0 : index
    %c0_35 = arith.constant 0 : index
    %65 = vector.load %arg2[%c10, %c0_34, %c0_35] : memref<15x32x168xf32, #tpu.memory_space<vmem>>, vector<1x32x168xf32>
    %66 = vector.shape_cast %65 : vector<1x32x168xf32> to vector<32x168xf32>
    %cst_36 = arith.constant dense<0.000000e+00> : vector<28x168xf32>
    %67 = tpu.matmul %64, %66, %cst_36 {dimension_numbers = #tpu.dot_dimension_numbers<[1], [0], [0], [1], [0, 0, 1, 1], [], []>} : vector<28x32xf32>, vector<32x168xf32>, vector<28x168xf32> -> vector<28x168xf32>
    %68 = arith.addf %62, %67 : vector<28x168xf32>
    %69 = vector.extract_strided_slice %1 {offsets = [2, 3, 0], sizes = [1, 28, 32], strides = [1, 1, 1]} : vector<3x32x32xf32> to vector<1x28x32xf32>
    %70 = vector.shape_cast %69 : vector<1x28x32xf32> to vector<28x32xf32>
    %c11 = arith.constant 11 : index
    %c0_37 = arith.constant 0 : index
    %c0_38 = arith.constant 0 : index
    %71 = vector.load %arg2[%c11, %c0_37, %c0_38] : memref<15x32x168xf32, #tpu.memory_space<vmem>>, vector<1x32x168xf32>
    %72 = vector.shape_cast %71 : vector<1x32x168xf32> to vector<32x168xf32>
    %cst_39 = arith.constant dense<0.000000e+00> : vector<28x168xf32>
    %73 = tpu.matmul %70, %72, %cst_39 {dimension_numbers = #tpu.dot_dimension_numbers<[1], [0], [0], [1], [0, 0, 1, 1], [], []>} : vector<28x32xf32>, vector<32x168xf32>, vector<28x168xf32> -> vector<28x168xf32>
    %74 = arith.addf %68, %73 : vector<28x168xf32>
    %75 = vector.extract_strided_slice %1 {offsets = [0, 4, 0], sizes = [1, 28, 32], strides = [1, 1, 1]} : vector<3x32x32xf32> to vector<1x28x32xf32>
    %76 = vector.shape_cast %75 : vector<1x28x32xf32> to vector<28x32xf32>
    %c12 = arith.constant 12 : index
    %c0_40 = arith.constant 0 : index
    %c0_41 = arith.constant 0 : index
    %77 = vector.load %arg2[%c12, %c0_40, %c0_41] : memref<15x32x168xf32, #tpu.memory_space<vmem>>, vector<1x32x168xf32>
    %78 = vector.shape_cast %77 : vector<1x32x168xf32> to vector<32x168xf32>
    %cst_42 = arith.constant dense<0.000000e+00> : vector<28x168xf32>
    %79 = tpu.matmul %76, %78, %cst_42 {dimension_numbers = #tpu.dot_dimension_numbers<[1], [0], [0], [1], [0, 0, 1, 1], [], []>} : vector<28x32xf32>, vector<32x168xf32>, vector<28x168xf32> -> vector<28x168xf32>
    %80 = arith.addf %74, %79 : vector<28x168xf32>
    %81 = vector.extract_strided_slice %1 {offsets = [1, 4, 0], sizes = [1, 28, 32], strides = [1, 1, 1]} : vector<3x32x32xf32> to vector<1x28x32xf32>
    %82 = vector.shape_cast %81 : vector<1x28x32xf32> to vector<28x32xf32>
    %c13 = arith.constant 13 : index
    %c0_43 = arith.constant 0 : index
    %c0_44 = arith.constant 0 : index
    %83 = vector.load %arg2[%c13, %c0_43, %c0_44] : memref<15x32x168xf32, #tpu.memory_space<vmem>>, vector<1x32x168xf32>
    %84 = vector.shape_cast %83 : vector<1x32x168xf32> to vector<32x168xf32>
    %cst_45 = arith.constant dense<0.000000e+00> : vector<28x168xf32>
    %85 = tpu.matmul %82, %84, %cst_45 {dimension_numbers = #tpu.dot_dimension_numbers<[1], [0], [0], [1], [0, 0, 1, 1], [], []>} : vector<28x32xf32>, vector<32x168xf32>, vector<28x168xf32> -> vector<28x168xf32>
    %86 = arith.addf %80, %85 : vector<28x168xf32>
    %87 = vector.extract_strided_slice %1 {offsets = [2, 4, 0], sizes = [1, 28, 32], strides = [1, 1, 1]} : vector<3x32x32xf32> to vector<1x28x32xf32>
    %88 = vector.shape_cast %87 : vector<1x28x32xf32> to vector<28x32xf32>
    %c14 = arith.constant 14 : index
    %c0_46 = arith.constant 0 : index
    %c0_47 = arith.constant 0 : index
    %89 = vector.load %arg2[%c14, %c0_46, %c0_47] : memref<15x32x168xf32, #tpu.memory_space<vmem>>, vector<1x32x168xf32>
    %90 = vector.shape_cast %89 : vector<1x32x168xf32> to vector<32x168xf32>
    %cst_48 = arith.constant dense<0.000000e+00> : vector<28x168xf32>
    %91 = tpu.matmul %88, %90, %cst_48 {dimension_numbers = #tpu.dot_dimension_numbers<[1], [0], [0], [1], [0, 0, 1, 1], [], []>} : vector<28x32xf32>, vector<32x168xf32>, vector<28x168xf32> -> vector<28x168xf32>
    %92 = arith.addf %86, %91 : vector<28x168xf32>
    %c0_49 = arith.constant 0 : index
    %c0_50 = arith.constant 0 : index
    %93 = vector.load %arg3[%c0_49, %c0_50] : memref<1x168xf32, #tpu.memory_space<vmem>>, vector<1x168xf32>
    %94 = vector.broadcast %93 : vector<1x168xf32> to vector<28x168xf32>
    %95 = arith.addf %92, %94 : vector<28x168xf32>
    %cst_51 = arith.constant 0.000000e+00 : f32
    %96 = vector.broadcast %cst_51 : f32 to vector<28x168xf32>
    %97 = arith.maximumf %95, %96 : vector<28x168xf32>
    %98 = vector.extract_strided_slice %97 {offsets = [0, 0], sizes = [28, 167], strides = [1, 1]} : vector<28x168xf32> to vector<28x167xf32>
    %99 = vector.extract_strided_slice %97 {offsets = [0, 1], sizes = [28, 167], strides = [1, 1]} : vector<28x168xf32> to vector<28x167xf32>
    %100 = arith.maximumf %98, %99 : vector<28x167xf32>
    %101 = vector.extract_strided_slice %100 {offsets = [0, 0], sizes = [27, 167], strides = [1, 1]} : vector<28x167xf32> to vector<27x167xf32>
    %102 = vector.extract_strided_slice %100 {offsets = [1, 0], sizes = [27, 167], strides = [1, 1]} : vector<28x167xf32> to vector<27x167xf32>
    %103 = arith.maximumf %101, %102 : vector<27x167xf32>
    %c0_52 = arith.constant 0 : index
    %c0_53 = arith.constant 0 : index
    %104 = vector.load %arg4[%c0_52, %c0_53] : memref<14x27xf32, #tpu.memory_space<vmem>>, vector<14x27xf32>
    %cst_54 = arith.constant dense<0.000000e+00> : vector<14x167xf32>
    %105 = tpu.matmul %104, %103, %cst_54 {dimension_numbers = #tpu.dot_dimension_numbers<[1], [0], [0], [1], [0, 0, 1, 1], [], []>} : vector<14x27xf32>, vector<27x167xf32>, vector<14x167xf32> -> vector<14x167xf32>
    %cst_55 = arith.constant 0.000000e+00 : f32
    %106 = vector.broadcast %cst_55 : f32 to vector<10x160xf32>
    %107 = vector.extract_strided_slice %105 {offsets = [0, 0], sizes = [10, 167], strides = [1, 1]} : vector<14x167xf32> to vector<10x167xf32>
    %c0_56 = arith.constant 0 : index
    %c0_57 = arith.constant 0 : index
    %c0_58 = arith.constant 0 : index
    %108 = vector.load %arg5[%c0_56, %c0_57, %c0_58] : memref<5x167x160xf32, #tpu.memory_space<vmem>>, vector<1x167x160xf32>
    %109 = vector.shape_cast %108 : vector<1x167x160xf32> to vector<167x160xf32>
    %cst_59 = arith.constant dense<0.000000e+00> : vector<10x160xf32>
    %110 = tpu.matmul %107, %109, %cst_59 {dimension_numbers = #tpu.dot_dimension_numbers<[1], [0], [0], [1], [0, 0, 1, 1], [], []>} : vector<10x167xf32>, vector<167x160xf32>, vector<10x160xf32> -> vector<10x160xf32>
    %111 = arith.addf %106, %110 : vector<10x160xf32>
    %112 = vector.extract_strided_slice %105 {offsets = [1, 0], sizes = [10, 167], strides = [1, 1]} : vector<14x167xf32> to vector<10x167xf32>
    %c1_60 = arith.constant 1 : index
    %c0_61 = arith.constant 0 : index
    %c0_62 = arith.constant 0 : index
    %113 = vector.load %arg5[%c1_60, %c0_61, %c0_62] : memref<5x167x160xf32, #tpu.memory_space<vmem>>, vector<1x167x160xf32>
    %114 = vector.shape_cast %113 : vector<1x167x160xf32> to vector<167x160xf32>
    %cst_63 = arith.constant dense<0.000000e+00> : vector<10x160xf32>
    %115 = tpu.matmul %112, %114, %cst_63 {dimension_numbers = #tpu.dot_dimension_numbers<[1], [0], [0], [1], [0, 0, 1, 1], [], []>} : vector<10x167xf32>, vector<167x160xf32>, vector<10x160xf32> -> vector<10x160xf32>
    %116 = arith.addf %111, %115 : vector<10x160xf32>
    %117 = vector.extract_strided_slice %105 {offsets = [2, 0], sizes = [10, 167], strides = [1, 1]} : vector<14x167xf32> to vector<10x167xf32>
    %c2_64 = arith.constant 2 : index
    %c0_65 = arith.constant 0 : index
    %c0_66 = arith.constant 0 : index
    %118 = vector.load %arg5[%c2_64, %c0_65, %c0_66] : memref<5x167x160xf32, #tpu.memory_space<vmem>>, vector<1x167x160xf32>
    %119 = vector.shape_cast %118 : vector<1x167x160xf32> to vector<167x160xf32>
    %cst_67 = arith.constant dense<0.000000e+00> : vector<10x160xf32>
    %120 = tpu.matmul %117, %119, %cst_67 {dimension_numbers = #tpu.dot_dimension_numbers<[1], [0], [0], [1], [0, 0, 1, 1], [], []>} : vector<10x167xf32>, vector<167x160xf32>, vector<10x160xf32> -> vector<10x160xf32>
    %121 = arith.addf %116, %120 : vector<10x160xf32>
    %122 = vector.extract_strided_slice %105 {offsets = [3, 0], sizes = [10, 167], strides = [1, 1]} : vector<14x167xf32> to vector<10x167xf32>
    %c3_68 = arith.constant 3 : index
    %c0_69 = arith.constant 0 : index
    %c0_70 = arith.constant 0 : index
    %123 = vector.load %arg5[%c3_68, %c0_69, %c0_70] : memref<5x167x160xf32, #tpu.memory_space<vmem>>, vector<1x167x160xf32>
    %124 = vector.shape_cast %123 : vector<1x167x160xf32> to vector<167x160xf32>
    %cst_71 = arith.constant dense<0.000000e+00> : vector<10x160xf32>
    %125 = tpu.matmul %122, %124, %cst_71 {dimension_numbers = #tpu.dot_dimension_numbers<[1], [0], [0], [1], [0, 0, 1, 1], [], []>} : vector<10x167xf32>, vector<167x160xf32>, vector<10x160xf32> -> vector<10x160xf32>
    %126 = arith.addf %121, %125 : vector<10x160xf32>
    %127 = vector.extract_strided_slice %105 {offsets = [4, 0], sizes = [10, 167], strides = [1, 1]} : vector<14x167xf32> to vector<10x167xf32>
    %c4_72 = arith.constant 4 : index
    %c0_73 = arith.constant 0 : index
    %c0_74 = arith.constant 0 : index
    %128 = vector.load %arg5[%c4_72, %c0_73, %c0_74] : memref<5x167x160xf32, #tpu.memory_space<vmem>>, vector<1x167x160xf32>
    %129 = vector.shape_cast %128 : vector<1x167x160xf32> to vector<167x160xf32>
    %cst_75 = arith.constant dense<0.000000e+00> : vector<10x160xf32>
    %130 = tpu.matmul %127, %129, %cst_75 {dimension_numbers = #tpu.dot_dimension_numbers<[1], [0], [0], [1], [0, 0, 1, 1], [], []>} : vector<10x167xf32>, vector<167x160xf32>, vector<10x160xf32> -> vector<10x160xf32>
    %131 = arith.addf %126, %130 : vector<10x160xf32>
    %c0_76 = arith.constant 0 : index
    %c0_77 = arith.constant 0 : index
    %132 = vector.load %arg6[%c0_76, %c0_77] : memref<1x160xf32, #tpu.memory_space<vmem>>, vector<1x160xf32>
    %133 = vector.broadcast %132 : vector<1x160xf32> to vector<10x160xf32>
    %134 = arith.addf %131, %133 : vector<10x160xf32>
    %cst_78 = arith.constant 0.000000e+00 : f32
    %135 = vector.broadcast %cst_78 : f32 to vector<10x160xf32>
    %136 = arith.maximumf %134, %135 : vector<10x160xf32>
    %137 = vector.extract_strided_slice %136 {offsets = [0, 0], sizes = [10, 159], strides = [1, 1]} : vector<10x160xf32> to vector<10x159xf32>
    %138 = vector.extract_strided_slice %136 {offsets = [0, 1], sizes = [10, 159], strides = [1, 1]} : vector<10x160xf32> to vector<10x159xf32>
    %139 = arith.maximumf %137, %138 : vector<10x159xf32>
    %140 = vector.extract_strided_slice %139 {offsets = [0, 0], sizes = [9, 159], strides = [1, 1]} : vector<10x159xf32> to vector<9x159xf32>
    %141 = vector.extract_strided_slice %139 {offsets = [1, 0], sizes = [9, 159], strides = [1, 1]} : vector<10x159xf32> to vector<9x159xf32>
    %142 = arith.maximumf %140, %141 : vector<9x159xf32>
    %cst_79 = arith.constant 0.000000e+00 : f32
    %143 = vector.broadcast %cst_79 : f32 to vector<1x120xf32>
    %144 = vector.extract_strided_slice %142 {offsets = [0, 0], sizes = [1, 159], strides = [1, 1]} : vector<9x159xf32> to vector<1x159xf32>
    %c0_80 = arith.constant 0 : index
    %c0_81 = arith.constant 0 : index
    %c0_82 = arith.constant 0 : index
    %145 = vector.load %arg7[%c0_80, %c0_81, %c0_82] : memref<5x159x120xf32, #tpu.memory_space<vmem>>, vector<1x159x120xf32>
    %146 = vector.shape_cast %145 : vector<1x159x120xf32> to vector<159x120xf32>
    %cst_83 = arith.constant dense<0.000000e+00> : vector<1x120xf32>
    %147 = tpu.matmul %144, %146, %cst_83 {dimension_numbers = #tpu.dot_dimension_numbers<[1], [0], [0], [1], [0, 0, 1, 1], [], []>} : vector<1x159xf32>, vector<159x120xf32>, vector<1x120xf32> -> vector<1x120xf32>
    %148 = arith.addf %143, %147 : vector<1x120xf32>
    %149 = vector.extract_strided_slice %142 {offsets = [2, 0], sizes = [1, 159], strides = [1, 1]} : vector<9x159xf32> to vector<1x159xf32>
    %c1_84 = arith.constant 1 : index
    %c0_85 = arith.constant 0 : index
    %c0_86 = arith.constant 0 : index
    %150 = vector.load %arg7[%c1_84, %c0_85, %c0_86] : memref<5x159x120xf32, #tpu.memory_space<vmem>>, vector<1x159x120xf32>
    %151 = vector.shape_cast %150 : vector<1x159x120xf32> to vector<159x120xf32>
    %cst_87 = arith.constant dense<0.000000e+00> : vector<1x120xf32>
    %152 = tpu.matmul %149, %151, %cst_87 {dimension_numbers = #tpu.dot_dimension_numbers<[1], [0], [0], [1], [0, 0, 1, 1], [], []>} : vector<1x159xf32>, vector<159x120xf32>, vector<1x120xf32> -> vector<1x120xf32>
    %153 = arith.addf %148, %152 : vector<1x120xf32>
    %154 = vector.extract_strided_slice %142 {offsets = [4, 0], sizes = [1, 159], strides = [1, 1]} : vector<9x159xf32> to vector<1x159xf32>
    %c2_88 = arith.constant 2 : index
    %c0_89 = arith.constant 0 : index
    %c0_90 = arith.constant 0 : index
    %155 = vector.load %arg7[%c2_88, %c0_89, %c0_90] : memref<5x159x120xf32, #tpu.memory_space<vmem>>, vector<1x159x120xf32>
    %156 = vector.shape_cast %155 : vector<1x159x120xf32> to vector<159x120xf32>
    %cst_91 = arith.constant dense<0.000000e+00> : vector<1x120xf32>
    %157 = tpu.matmul %154, %156, %cst_91 {dimension_numbers = #tpu.dot_dimension_numbers<[1], [0], [0], [1], [0, 0, 1, 1], [], []>} : vector<1x159xf32>, vector<159x120xf32>, vector<1x120xf32> -> vector<1x120xf32>
    %158 = arith.addf %153, %157 : vector<1x120xf32>
    %159 = vector.extract_strided_slice %142 {offsets = [6, 0], sizes = [1, 159], strides = [1, 1]} : vector<9x159xf32> to vector<1x159xf32>
    %c3_92 = arith.constant 3 : index
    %c0_93 = arith.constant 0 : index
    %c0_94 = arith.constant 0 : index
    %160 = vector.load %arg7[%c3_92, %c0_93, %c0_94] : memref<5x159x120xf32, #tpu.memory_space<vmem>>, vector<1x159x120xf32>
    %161 = vector.shape_cast %160 : vector<1x159x120xf32> to vector<159x120xf32>
    %cst_95 = arith.constant dense<0.000000e+00> : vector<1x120xf32>
    %162 = tpu.matmul %159, %161, %cst_95 {dimension_numbers = #tpu.dot_dimension_numbers<[1], [0], [0], [1], [0, 0, 1, 1], [], []>} : vector<1x159xf32>, vector<159x120xf32>, vector<1x120xf32> -> vector<1x120xf32>
    %163 = arith.addf %158, %162 : vector<1x120xf32>
    %164 = vector.extract_strided_slice %142 {offsets = [8, 0], sizes = [1, 159], strides = [1, 1]} : vector<9x159xf32> to vector<1x159xf32>
    %c4_96 = arith.constant 4 : index
    %c0_97 = arith.constant 0 : index
    %c0_98 = arith.constant 0 : index
    %165 = vector.load %arg7[%c4_96, %c0_97, %c0_98] : memref<5x159x120xf32, #tpu.memory_space<vmem>>, vector<1x159x120xf32>
    %166 = vector.shape_cast %165 : vector<1x159x120xf32> to vector<159x120xf32>
    %cst_99 = arith.constant dense<0.000000e+00> : vector<1x120xf32>
    %167 = tpu.matmul %164, %166, %cst_99 {dimension_numbers = #tpu.dot_dimension_numbers<[1], [0], [0], [1], [0, 0, 1, 1], [], []>} : vector<1x159xf32>, vector<159x120xf32>, vector<1x120xf32> -> vector<1x120xf32>
    %168 = arith.addf %163, %167 : vector<1x120xf32>
    %c0_100 = arith.constant 0 : index
    %c0_101 = arith.constant 0 : index
    %169 = vector.load %arg8[%c0_100, %c0_101] : memref<1x120xf32, #tpu.memory_space<vmem>>, vector<1x120xf32>
    %170 = arith.addf %168, %169 : vector<1x120xf32>
    %cst_102 = arith.constant 0.000000e+00 : f32
    %171 = vector.broadcast %cst_102 : f32 to vector<1x120xf32>
    %172 = arith.maximumf %170, %171 : vector<1x120xf32>
    %c0_103 = arith.constant 0 : index
    %c0_104 = arith.constant 0 : index
    %173 = vector.load %arg9[%c0_103, %c0_104] : memref<120x84xf32, #tpu.memory_space<vmem>>, vector<120x84xf32>
    %cst_105 = arith.constant dense<0.000000e+00> : vector<1x84xf32>
    %174 = tpu.matmul %172, %173, %cst_105 {dimension_numbers = #tpu.dot_dimension_numbers<[1], [0], [0], [1], [0, 0, 1, 1], [], []>} : vector<1x120xf32>, vector<120x84xf32>, vector<1x84xf32> -> vector<1x84xf32>
    %c0_106 = arith.constant 0 : index
    %c0_107 = arith.constant 0 : index
    %175 = vector.load %arg10[%c0_106, %c0_107] : memref<1x84xf32, #tpu.memory_space<vmem>>, vector<1x84xf32>
    %176 = arith.addf %174, %175 : vector<1x84xf32>
    %cst_108 = arith.constant 0.000000e+00 : f32
    %177 = vector.broadcast %cst_108 : f32 to vector<1x84xf32>
    %178 = arith.maximumf %176, %177 : vector<1x84xf32>
    %c0_109 = arith.constant 0 : index
    %c0_110 = arith.constant 0 : index
    %179 = vector.load %arg11[%c0_109, %c0_110] : memref<84x10xf32, #tpu.memory_space<vmem>>, vector<84x10xf32>
    %cst_111 = arith.constant dense<0.000000e+00> : vector<1x10xf32>
    %180 = tpu.matmul %178, %179, %cst_111 {dimension_numbers = #tpu.dot_dimension_numbers<[1], [0], [0], [1], [0, 0, 1, 1], [], []>} : vector<1x84xf32>, vector<84x10xf32>, vector<1x10xf32> -> vector<1x10xf32>
    %c0_112 = arith.constant 0 : index
    %c0_113 = arith.constant 0 : index
    %181 = vector.load %arg12[%c0_112, %c0_113] : memref<1x10xf32, #tpu.memory_space<vmem>>, vector<1x10xf32>
    %182 = arith.addf %180, %181 : vector<1x10xf32>
    %cst_114 = arith.constant dense<0xFF800000> : vector<1xf32>
    %183 = vector.multi_reduction <maximumf>, %182, %cst_114 [1] : vector<1x10xf32> to vector<1xf32>
    %184 = vector.shape_cast %183 : vector<1xf32> to vector<1x1xf32>
    %185 = vector.broadcast %184 : vector<1x1xf32> to vector<1x10xf32>
    %186 = arith.subf %182, %185 : vector<1x10xf32>
    %187 = math.exp %186 : vector<1x10xf32>
    %cst_115 = arith.constant dense<0.000000e+00> : vector<1xf32>
    %188 = vector.multi_reduction <add>, %187, %cst_115 [1] : vector<1x10xf32> to vector<1xf32>
    %189 = vector.shape_cast %188 : vector<1xf32> to vector<1x1xf32>
    %190 = math.log %189 : vector<1x1xf32>
    %c0_116 = arith.constant 0 : index
    %c0_117 = arith.constant 0 : index
    %c0_118 = arith.constant 0 : index
    %191 = vector.load %arg13[%c0_116, %c0_117, %c0_118] : memref<1x1x10xf32, #tpu.memory_space<vmem>>, vector<1x1x10xf32>
    %192 = vector.shape_cast %191 : vector<1x1x10xf32> to vector<1x10xf32>
    %193 = vector.shape_cast %182 : vector<1x10xf32> to vector<1x1x10xf32>
    tpu.vector_store %arg13[%c0_116, %c0_117, %c0_118], %193 {strides = array<i32>} : memref<1x1x10xf32, #tpu.memory_space<vmem>>, vector<1x1x10xf32>,
    %194 = vector.broadcast %190 : vector<1x1xf32> to vector<1x10xf32>
    %195 = arith.subf %186, %194 : vector<1x10xf32>
    %c0_119 = arith.constant 0 : index
    %c0_120 = arith.constant 0 : index
    %c0_121 = arith.constant 0 : index
    %196 = vector.load %arg14[%c0_119, %c0_120, %c0_121] : memref<1x1x10xf32, #tpu.memory_space<vmem>>, vector<1x1x10xf32>
    %197 = vector.shape_cast %196 : vector<1x1x10xf32> to vector<1x10xf32>
    %198 = vector.shape_cast %195 : vector<1x10xf32> to vector<1x1x10xf32>
    tpu.vector_store %arg14[%c0_119, %c0_120, %c0_121], %198 {strides = array<i32>} : memref<1x1x10xf32, #tpu.memory_space<vmem>>, vector<1x1x10xf32>,
    return
  }
  func.func @transform_0(%arg0: i32) -> (i32, i32, i32, i32) {
    %c0_i32 = arith.constant 0 : i32
    %c0_i32_0 = arith.constant 0 : i32
    %c0_i32_1 = arith.constant 0 : i32
    %c0_i32_2 = arith.constant 0 : i32
    return %arg0, %c0_i32, %c0_i32_0, %c0_i32_1 : i32, i32, i32, i32
  }
  func.func @transform_1(%arg0: i32) -> (i32, i32, i32) {
    %c0_i32 = arith.constant 0 : i32
    %c0_i32_0 = arith.constant 0 : i32
    %c0_i32_1 = arith.constant 0 : i32
    %c0_i32_2 = arith.constant 0 : i32
    return %c0_i32, %c0_i32_0, %c0_i32_1 : i32, i32, i32
  }
  func.func @transform_2(%arg0: i32) -> (i32, i32) {
    %c0_i32 = arith.constant 0 : i32
    %c0_i32_0 = arith.constant 0 : i32
    %c0_i32_1 = arith.constant 0 : i32
    return %c0_i32, %c0_i32_0 : i32, i32
  }
  func.func @transform_3(%arg0: i32) -> (i32, i32) {
    %c0_i32 = arith.constant 0 : i32
    %c0_i32_0 = arith.constant 0 : i32
    %c0_i32_1 = arith.constant 0 : i32
    return %c0_i32, %c0_i32_0 : i32, i32
  }
  func.func @transform_4(%arg0: i32) -> (i32, i32, i32) {
    %c0_i32 = arith.constant 0 : i32
    %c0_i32_0 = arith.constant 0 : i32
    %c0_i32_1 = arith.constant 0 : i32
    %c0_i32_2 = arith.constant 0 : i32
    return %c0_i32, %c0_i32_0, %c0_i32_1 : i32, i32, i32
  }
  func.func @transform_5(%arg0: i32) -> (i32, i32) {
    %c0_i32 = arith.constant 0 : i32
    %c0_i32_0 = arith.constant 0 : i32
    %c0_i32_1 = arith.constant 0 : i32
    return %c0_i32, %c0_i32_0 : i32, i32
  }
  func.func @transform_6(%arg0: i32) -> (i32, i32, i32) {
    %c0_i32 = arith.constant 0 : i32
    %c0_i32_0 = arith.constant 0 : i32
    %c0_i32_1 = arith.constant 0 : i32
    %c0_i32_2 = arith.constant 0 : i32
    return %c0_i32, %c0_i32_0, %c0_i32_1 : i32, i32, i32
  }
  func.func @transform_7(%arg0: i32) -> (i32, i32) {
    %c0_i32 = arith.constant 0 : i32
    %c0_i32_0 = arith.constant 0 : i32
    %c0_i32_1 = arith.constant 0 : i32
    return %c0_i32, %c0_i32_0 : i32, i32
  }
  func.func @transform_8(%arg0: i32) -> (i32, i32) {
    %c0_i32 = arith.constant 0 : i32
    %c0_i32_0 = arith.constant 0 : i32
    %c0_i32_1 = arith.constant 0 : i32
    return %c0_i32, %c0_i32_0 : i32, i32
  }
  func.func @transform_9(%arg0: i32) -> (i32, i32) {
    %c0_i32 = arith.constant 0 : i32
    %c0_i32_0 = arith.constant 0 : i32
    %c0_i32_1 = arith.constant 0 : i32
    return %c0_i32, %c0_i32_0 : i32, i32
  }
  func.func @transform_10(%arg0: i32) -> (i32, i32) {
    %c0_i32 = arith.constant 0 : i32
    %c0_i32_0 = arith.constant 0 : i32
    %c0_i32_1 = arith.constant 0 : i32
    return %c0_i32, %c0_i32_0 : i32, i32
  }
  func.func @transform_11(%arg0: i32) -> (i32, i32) {
    %c0_i32 = arith.constant 0 : i32
    %c0_i32_0 = arith.constant 0 : i32
    %c0_i32_1 = arith.constant 0 : i32
    return %c0_i32, %c0_i32_0 : i32, i32
  }
  func.func @transform_12(%arg0: i32) -> (i32, i32, i32) {
    %c0_i32 = arith.constant 0 : i32
    %c0_i32_0 = arith.constant 0 : i32
    %c0_i32_1 = arith.constant 0 : i32
    return %arg0, %c0_i32, %c0_i32_0 : i32, i32, i32
  }
  func.func @transform_13(%arg0: i32) -> (i32, i32, i32) {
    %c0_i32 = arith.constant 0 : i32
    %c0_i32_0 = arith.constant 0 : i32
    %c0_i32_1 = arith.constant 0 : i32
    return %arg0, %c0_i32, %c0_i32_0 : i32, i32, i32
  }
}

</mosaic_0001>

<llo_original>
// kernel: lenet_forward.1
$region0: #{lenet_forward.1}
  #allocation0 [shape = 'u32[]', space=smem, size = 0x4, offset = 0x4, fixed_abs, tag = 'smem constant byte address 0x4 - core index']
  #allocation1 [shape = 'u32[144,128]{1,0:T(1,128)}', space=vmem, size = 0x12000, scoped, tag = 'internal scratch']
  %s0 = inlined_call_operand.vmem [shape: f32[2,3,32,32], index: 0, kind: input, shape index: {}]
  %s1 = inlined_call_operand.vmem [shape: f32[15,32,168], index: 1, kind: input, shape index: {}]
  %s2 = inlined_call_operand.vmem [shape: f32[1,168], index: 2, kind: input, shape index: {}]
  %s3 = inlined_call_operand.vmem [shape: f32[14,27], index: 3, kind: input, shape index: {}]
  %s4 = inlined_call_operand.vmem [shape: f32[5,167,160], index: 4, kind: input, shape index: {}]
  %s5 = inlined_call_operand.vmem [shape: f32[1,160], index: 5, kind: input, shape index: {}]
  %s6 = inlined_call_operand.vmem [shape: f32[5,159,120], index: 6, kind: input, shape index: {}]
  %s7 = inlined_call_operand.vmem [shape: f32[1,120], index: 7, kind: input, shape index: {}]
  %s8 = inlined_call_operand.vmem [shape: f32[120,84], index: 8, kind: input, shape index: {}]
  %s9 = inlined_call_operand.vmem [shape: f32[1,84], index: 9, kind: input, shape index: {}]
  %s10 = inlined_call_operand.vmem [shape: f32[84,10], index: 10, kind: input, shape index: {}]
  %s11 = inlined_call_operand.vmem [shape: f32[1,10], index: 11, kind: input, shape index: {}]
  %s12 = inlined_call_operand.hbm [shape: f32[2,1,10], index: 12, kind: output, shape index: {0}]
  %s13 = inlined_call_operand.hbm [shape: f32[2,1,10], index: 13, kind: output, shape index: {1}]
  %14 = xla_tuple %s12, %s13
  %s15 = sld [smem:[#allocation0]]
  $region89: #{lenet_forward.1} parent=0
    _
  %s17 = ssub.s32 1, %s15
  %s18 = scalar_select 0, %s17, %s15
  $region1: #{lenet_forward.1} parent=0
    #allocation2 [shape = 'u8[1024]{0}', space=vmem, size = 0x400, scoped, tag = 'output window, operand 0']
    #allocation3 [shape = 's32[2]{0}', space=sflag, size = 0x8, scoped, tag = 'scoped memory for lenet_forward.1']
    #allocation4 [shape = 'u8[1024]{0}', space=vmem, size = 0x400, scoped, tag = 'output window, operand 1']
    #allocation5 [shape = 's32[2]{0}', space=sflag, size = 0x8, scoped, tag = 'scoped memory for lenet_forward.1']
    %19 = vsyncpa [#allocation3], 0
    %s20 = scalar_lea.sflag [#allocation3], 1
    %21 = vsyncpa %s20, 0
    %22 = vsyncpa [#allocation5], 0
    %s23 = scalar_lea.sflag [#allocation5], 1
    %24 = vsyncpa %s23, 0
    loop: start=0, step=1, limit=4
    $region2: #{lenet_forward.1} parent=1 // loop_pre_header
      _
    $region3: #{lenet_forward.1} parent=1 // loop_header
      %s26 = sphi 0, %s30
      %p27 = scmp.ge.s32.totalorder %s26, 4
      %s36 = sphi 0, %s38
      %s39 = sphi 0, %s36
      %s40 = sphi 0, %s39
      %s56 = sphi 0, %s40
      %s60 = sphi 0, %s60
      %s62 = sphi 0, %s60
      %s63 = sphi 0, %s62
      %s77 = sphi 0, %s63
      %s81 = sphi 0, %s81
      %s83 = sphi 0, %s81
      %s84 = sphi 0, %s83
      %s98 = sphi 0, %s84
      %s102 = sphi 0, %s102
      %s104 = sphi 0, %s102
      %s105 = sphi 0, %s104
      %s119 = sphi 0, %s105
      %s123 = sphi 0, %s123
      %s125 = sphi 0, %s123
      %s126 = sphi 0, %s125
      %s140 = sphi 0, %s126
      %s144 = sphi 0, %s144
      %s146 = sphi 0, %s144
      %s147 = sphi 0, %s146
      %s161 = sphi 0, %s147
      %s165 = sphi 0, %s165
      %s167 = sphi 0, %s165
      %s168 = sphi 0, %s167
      %s182 = sphi 0, %s168
      %s186 = sphi 0, %s186
      %s188 = sphi 0, %s186
      %s189 = sphi 0, %s188
      %s203 = sphi 0, %s189
      %s207 = sphi 0, %s207
      %s209 = sphi 0, %s207
      %s210 = sphi 0, %s209
      %s224 = sphi 0, %s210
      %s228 = sphi 0, %s228
      %s230 = sphi 0, %s228
      %s231 = sphi 0, %s230
      %s245 = sphi 0, %s231
      %s249 = sphi 0, %s249
      %s251 = sphi 0, %s249
      %s252 = sphi 0, %s251
      %s266 = sphi 0, %s252
      %s270 = sphi 0, %s270
      %s272 = sphi 0, %s270
      %s273 = sphi 0, %s272
      %s287 = sphi 0, %s273
      %s293 = sphi 0, %s295
      %s296 = sphi 0, %s293
      %s297 = sphi 0, %s296
      %s313 = sphi 0, %s297
      %s319 = sphi 0, %s321
      %s322 = sphi 0, %s319
      %s323 = sphi 0, %s322
      %s339 = sphi 0, %s323
    $region4: #{lenet_forward.1} parent=1 // loop_header_branch
      %29 = sbr.rel (%p27) target = $region8
    $region5: #{lenet_forward.1} parent=1 // loop_body
      %s31 = ssub.s32 %s26, 1
      %s32 = ssub.s32 %s26, 2
      %s33 = sadd.s32 %s26, 1
      %s34 = ssub.s32 %s26, %s33
      %p35 = scmp.eq.s32.totalorder %s34, 0
      %s37 = sadd.s32 %s36, 1
      %s38 = scalar_select %p35, %s36, %s37
      %p41 = pneg %p35
      %p42 = scmp.eq.s32.totalorder %s26, 1
      %p43 = por %p41, %p42
      %p44 = scmp.ne.s32.totalorder %s36, %s39
      %p45 = scmp.eq.s32.totalorder %s26, 0
      %p46 = por %p44, %p45
      %p47 = scmp.ne.s32.totalorder %s36, %s39
      %p48 = scmp.eq.s32.totalorder %s31, 1
      %p49 = por %p47, %p48
      %p50 = scmp.ne.s32.totalorder %s39, %s40
      %p51 = scmp.eq.s32.totalorder %s31, 0
      %p52 = por %p50, %p51
      %p53 = scmp.ne.s32.totalorder %s39, %s40
      %p54 = scmp.eq.s32.totalorder %s32, 1
      %p55 = por %p53, %p54
      %p57 = scmp.ne.s32.totalorder %s40, %s56
      %p58 = scmp.eq.s32.totalorder %s32, 0
      %p59 = por %p57, %p58
      %s61 = sadd.s32 %s60, 1
      %p64 = scmp.eq.s32.totalorder %s26, 1
      %p65 = scmp.ne.s32.totalorder %s60, %s62
      %p66 = scmp.eq.s32.totalorder %s26, 0
      %p67 = por %p65, %p66
      %p68 = scmp.ne.s32.totalorder %s60, %s62
      %p69 = scmp.eq.s32.totalorder %s31, 1
      %p70 = por %p68, %p69
      %p71 = scmp.ne.s32.totalorder %s62, %s63
      %p72 = scmp.eq.s32.totalorder %s31, 0
      %p73 = por %p71, %p72
      %p74 = scmp.ne.s32.totalorder %s62, %s63
      %p75 = scmp.eq.s32.totalorder %s32, 1
      %p76 = por %p74, %p75
      %p78 = scmp.ne.s32.totalorder %s63, %s77
      %p79 = scmp.eq.s32.totalorder %s32, 0
      %p80 = por %p78, %p79
      %s82 = sadd.s32 %s81, 1
      %p85 = scmp.eq.s32.totalorder %s26, 1
      %p86 = scmp.ne.s32.totalorder %s81, %s83
      %p87 = scmp.eq.s32.totalorder %s26, 0
      %p88 = por %p86, %p87
      %p89 = scmp.ne.s32.totalorder %s81, %s83
      %p90 = scmp.eq.s32.totalorder %s31, 1
      %p91 = por %p89, %p90
      %p92 = scmp.ne.s32.totalorder %s83, %s84
      %p93 = scmp.eq.s32.totalorder %s31, 0
      %p94 = por %p92, %p93
      %p95 = scmp.ne.s32.totalorder %s83, %s84
      %p96 = scmp.eq.s32.totalorder %s32, 1
      %p97 = por %p95, %p96
      %p99 = scmp.ne.s32.totalorder %s84, %s98
      %p100 = scmp.eq.s32.totalorder %s32, 0
      %p101 = por %p99, %p100
      %s103 = sadd.s32 %s102, 1
      %p106 = scmp.eq.s32.totalorder %s26, 1
      %p107 = scmp.ne.s32.totalorder %s102, %s104
      %p108 = scmp.eq.s32.totalorder %s26, 0
      %p109 = por %p107, %p108
      %p110 = scmp.ne.s32.totalorder %s102, %s104
      %p111 = scmp.eq.s32.totalorder %s31, 1
      %p112 = por %p110, %p111
      %p113 = scmp.ne.s32.totalorder %s104, %s105
      %p114 = scmp.eq.s32.totalorder %s31, 0
      %p115 = por %p113, %p114
      %p116 = scmp.ne.s32.totalorder %s104, %s105
      %p117 = scmp.eq.s32.totalorder %s32, 1
      %p118 = por %p116, %p117
      %p120 = scmp.ne.s32.totalorder %s105, %s119
      %p121 = scmp.eq.s32.totalorder %s32, 0
      %p122 = por %p120, %p121
      %s124 = sadd.s32 %s123, 1
      %p127 = scmp.eq.s32.totalorder %s26, 1
      %p128 = scmp.ne.s32.totalorder %s123, %s125
      %p129 = scmp.eq.s32.totalorder %s26, 0
      %p130 = por %p128, %p129
      %p131 = scmp.ne.s32.totalorder %s123, %s125
      %p132 = scmp.eq.s32.totalorder %s31, 1
      %p133 = por %p131, %p132
      %p134 = scmp.ne.s32.totalorder %s125, %s126
      %p135 = scmp.eq.s32.totalorder %s31, 0
      %p136 = por %p134, %p135
      %p137 = scmp.ne.s32.totalorder %s125, %s126
      %p138 = scmp.eq.s32.totalorder %s32, 1
      %p139 = por %p137, %p138
      %p141 = scmp.ne.s32.totalorder %s126, %s140
      %p142 = scmp.eq.s32.totalorder %s32, 0
      %p143 = por %p141, %p142
      %s145 = sadd.s32 %s144, 1
      %p148 = scmp.eq.s32.totalorder %s26, 1
      %p149 = scmp.ne.s32.totalorder %s144, %s146
      %p150 = scmp.eq.s32.totalorder %s26, 0
      %p151 = por %p149, %p150
      %p152 = scmp.ne.s32.totalorder %s144, %s146
      %p153 = scmp.eq.s32.totalorder %s31, 1
      %p154 = por %p152, %p153
      %p155 = scmp.ne.s32.totalorder %s146, %s147
      %p156 = scmp.eq.s32.totalorder %s31, 0
      %p157 = por %p155, %p156
      %p158 = scmp.ne.s32.totalorder %s146, %s147
      %p159 = scmp.eq.s32.totalorder %s32, 1
      %p160 = por %p158, %p159
      %p162 = scmp.ne.s32.totalorder %s147, %s161
      %p163 = scmp.eq.s32.totalorder %s32, 0
      %p164 = por %p162, %p163
      %s166 = sadd.s32 %s165, 1
      %p169 = scmp.eq.s32.totalorder %s26, 1
      %p170 = scmp.ne.s32.totalorder %s165, %s167
      %p171 = scmp.eq.s32.totalorder %s26, 0
      %p172 = por %p170, %p171
      %p173 = scmp.ne.s32.totalorder %s165, %s167
      %p174 = scmp.eq.s32.totalorder %s31, 1
      %p175 = por %p173, %p174
      %p176 = scmp.ne.s32.totalorder %s167, %s168
      %p177 = scmp.eq.s32.totalorder %s31, 0
      %p178 = por %p176, %p177
      %p179 = scmp.ne.s32.totalorder %s167, %s168
      %p180 = scmp.eq.s32.totalorder %s32, 1
      %p181 = por %p179, %p180
      %p183 = scmp.ne.s32.totalorder %s168, %s182
      %p184 = scmp.eq.s32.totalorder %s32, 0
      %p185 = por %p183, %p184
      %s187 = sadd.s32 %s186, 1
      %p190 = scmp.eq.s32.totalorder %s26, 1
      %p191 = scmp.ne.s32.totalorder %s186, %s188
      %p192 = scmp.eq.s32.totalorder %s26, 0
      %p193 = por %p191, %p192
      %p194 = scmp.ne.s32.totalorder %s186, %s188
      %p195 = scmp.eq.s32.totalorder %s31, 1
      %p196 = por %p194, %p195
      %p197 = scmp.ne.s32.totalorder %s188, %s189
      %p198 = scmp.eq.s32.totalorder %s31, 0
      %p199 = por %p197, %p198
      %p200 = scmp.ne.s32.totalorder %s188, %s189
      %p201 = scmp.eq.s32.totalorder %s32, 1
      %p202 = por %p200, %p201
      %p204 = scmp.ne.s32.totalorder %s189, %s203
      %p205 = scmp.eq.s32.totalorder %s32, 0
      %p206 = por %p204, %p205
      %s208 = sadd.s32 %s207, 1
      %p211 = scmp.eq.s32.totalorder %s26, 1
      %p212 = scmp.ne.s32.totalorder %s207, %s209
      %p213 = scmp.eq.s32.totalorder %s26, 0
      %p214 = por %p212, %p213
      %p215 = scmp.ne.s32.totalorder %s207, %s209
      %p216 = scmp.eq.s32.totalorder %s31, 1
      %p217 = por %p215, %p216
      %p218 = scmp.ne.s32.totalorder %s209, %s210
      %p219 = scmp.eq.s32.totalorder %s31, 0
      %p220 = por %p218, %p219
      %p221 = scmp.ne.s32.totalorder %s209, %s210
      %p222 = scmp.eq.s32.totalorder %s32, 1
      %p223 = por %p221, %p222
      %p225 = scmp.ne.s32.totalorder %s210, %s224
      %p226 = scmp.eq.s32.totalorder %s32, 0
      %p227 = por %p225, %p226
      %s229 = sadd.s32 %s228, 1
      %p232 = scmp.eq.s32.totalorder %s26, 1
      %p233 = scmp.ne.s32.totalorder %s228, %s230
      %p234 = scmp.eq.s32.totalorder %s26, 0
      %p235 = por %p233, %p234
      %p236 = scmp.ne.s32.totalorder %s228, %s230
      %p237 = scmp.eq.s32.totalorder %s31, 1
      %p238 = por %p236, %p237
      %p239 = scmp.ne.s32.totalorder %s230, %s231
      %p240 = scmp.eq.s32.totalorder %s31, 0
      %p241 = por %p239, %p240
      %p242 = scmp.ne.s32.totalorder %s230, %s231
      %p243 = scmp.eq.s32.totalorder %s32, 1
      %p244 = por %p242, %p243
      %p246 = scmp.ne.s32.totalorder %s231, %s245
      %p247 = scmp.eq.s32.totalorder %s32, 0
      %p248 = por %p246, %p247
      %s250 = sadd.s32 %s249, 1
      %p253 = scmp.eq.s32.totalorder %s26, 1
      %p254 = scmp.ne.s32.totalorder %s249, %s251
      %p255 = scmp.eq.s32.totalorder %s26, 0
      %p256 = por %p254, %p255
      %p257 = scmp.ne.s32.totalorder %s249, %s251
      %p258 = scmp.eq.s32.totalorder %s31, 1
      %p259 = por %p257, %p258
      %p260 = scmp.ne.s32.totalorder %s251, %s252
      %p261 = scmp.eq.s32.totalorder %s31, 0
      %p262 = por %p260, %p261
      %p263 = scmp.ne.s32.totalorder %s251, %s252
      %p264 = scmp.eq.s32.totalorder %s32, 1
      %p265 = por %p263, %p264
      %p267 = scmp.ne.s32.totalorder %s252, %s266
      %p268 = scmp.eq.s32.totalorder %s32, 0
      %p269 = por %p267, %p268
      %s271 = sadd.s32 %s270, 1
      %p274 = scmp.eq.s32.totalorder %s26, 1
      %p275 = scmp.ne.s32.totalorder %s270, %s272
      %p276 = scmp.eq.s32.totalorder %s26, 0
      %p277 = por %p275, %p276
      %p278 = scmp.ne.s32.totalorder %s270, %s272
      %p279 = scmp.eq.s32.totalorder %s31, 1
      %p280 = por %p278, %p279
      %p281 = scmp.ne.s32.totalorder %s272, %s273
      %p282 = scmp.eq.s32.totalorder %s31, 0
      %p283 = por %p281, %p282
      %p284 = scmp.ne.s32.totalorder %s272, %s273
      %p285 = scmp.eq.s32.totalorder %s32, 1
      %p286 = por %p284, %p285
      %p288 = scmp.ne.s32.totalorder %s273, %s287
      %p289 = scmp.eq.s32.totalorder %s32, 0
      %p290 = por %p288, %p289
      %s291 = ssub.s32 %s26, %s33
      %p292 = scmp.eq.s32.totalorder %s291, 0
      %s294 = sadd.s32 %s293, 1
      %s295 = scalar_select %p292, %s293, %s294
      %p298 = pneg %p292
      %p299 = scmp.eq.s32.totalorder %s26, 1
      %p300 = por %p298, %p299
      %p301 = scmp.ne.s32.totalorder %s293, %s296
      %p302 = scmp.eq.s32.totalorder %s26, 0
      %p303 = por %p301, %p302
      %p304 = scmp.ne.s32.totalorder %s293, %s296
      %p305 = scmp.eq.s32.totalorder %s31, 1
      %p306 = por %p304, %p305
      %p307 = scmp.ne.s32.totalorder %s296, %s297
      %p308 = scmp.eq.s32.totalorder %s31, 0
      %p309 = por %p307, %p308
      %p310 = scmp.ne.s32.totalorder %s296, %s297
      %p311 = scmp.eq.s32.totalorder %s32, 1
      %p312 = por %p310, %p311
      %p314 = scmp.ne.s32.totalorder %s297, %s313
      %p315 = scmp.eq.s32.totalorder %s32, 0
      %p316 = por %p314, %p315
      %s317 = ssub.s32 %s26, %s33
      %p318 = scmp.eq.s32.totalorder %s317, 0
      %s320 = sadd.s32 %s319, 1
      %s321 = scalar_select %p318, %s319, %s320
      %p324 = pneg %p318
      %p325 = scmp.eq.s32.totalorder %s26, 1
      %p326 = por %p324, %p325
      %p327 = scmp.ne.s32.totalorder %s319, %s322
      %p328 = scmp.eq.s32.totalorder %s26, 0
      %p329 = por %p327, %p328
      %p330 = scmp.ne.s32.totalorder %s319, %s322
      %p331 = scmp.eq.s32.totalorder %s31, 1
      %p332 = por %p330, %p331
      %p333 = scmp.ne.s32.totalorder %s322, %s323
      %p334 = scmp.eq.s32.totalorder %s31, 0
      %p335 = por %p333, %p334
      %p336 = scmp.ne.s32.totalorder %s322, %s323
      %p337 = scmp.eq.s32.totalorder %s32, 1
      %p338 = por %p336, %p337
      %p340 = scmp.ne.s32.totalorder %s323, %s339
      %p341 = scmp.eq.s32.totalorder %s32, 0
      %p342 = por %p340, %p341
      %p343 = scmp.le.s32.totalorder 1, %s26
      %p344 = scmp.lt.s32.totalorder %s26, 3
      %p345 = pnand %p343, %p344
      %p346 = pneg %p345
      // Predicated region
      $region9: #{lenet_forward.1} parent=5 // pred_check
        _
      $region10: #{lenet_forward.1} parent=5 // pred_check_branch
        %348 = sbr.rel (%p345) target = $region12
      $region11: #{lenet_forward.1} parent=5 // pred_region
        %s349 = ssub.s32 %s26, 1
        // Predicated region
        $region13: #{lenet_forward.1} parent=11 // pred_check
          %p350 = pneg %p73
        $region14: #{lenet_forward.1} parent=11 // pred_check_branch
          %352 = sbr.rel (%p350) target = $region16
        $region15: #{lenet_forward.1} parent=11 // pred_region
          _
        $region16: #{lenet_forward.1} parent=11 // pred_fallthru
          _
        // Predicated region
        $region17: #{lenet_forward.1} parent=11 // pred_check
          %p353 = pneg %p94
        $region18: #{lenet_forward.1} parent=11 // pred_check_branch
          %355 = sbr.rel (%p353) target = $region20
        $region19: #{lenet_forward.1} parent=11 // pred_region
          _
        $region20: #{lenet_forward.1} parent=11 // pred_fallthru
          _
        // Predicated region
        $region21: #{lenet_forward.1} parent=11 // pred_check
          %p356 = pneg %p115
        $region22: #{lenet_forward.1} parent=11 // pred_check_branch
          %358 = sbr.rel (%p356) target = $region24
        $region23: #{lenet_forward.1} parent=11 // pred_region
          _
        $region24: #{lenet_forward.1} parent=11 // pred_fallthru
          _
        // Predicated region
        $region25: #{lenet_forward.1} parent=11 // pred_check
          %p359 = pneg %p136
        $region26: #{lenet_forward.1} parent=11 // pred_check_branch
          %361 = sbr.rel (%p359) target = $region28
        $region27: #{lenet_forward.1} parent=11 // pred_region
          _
        $region28: #{lenet_forward.1} parent=11 // pred_fallthru
          _
        // Predicated region
        $region29: #{lenet_forward.1} parent=11 // pred_check
          %p362 = pneg %p157
        $region30: #{lenet_forward.1} parent=11 // pred_check_branch
          %364 = sbr.rel (%p362) target = $region32
        $region31: #{lenet_forward.1} parent=11 // pred_region
          _
        $region32: #{lenet_forward.1} parent=11 // pred_fallthru
          _
        // Predicated region
        $region33: #{lenet_forward.1} parent=11 // pred_check
          %p365 = pneg %p178
        $region34: #{lenet_forward.1} parent=11 // pred_check_branch
          %367 = sbr.rel (%p365) target = $region36
        $region35: #{lenet_forward.1} parent=11 // pred_region
          _
        $region36: #{lenet_forward.1} parent=11 // pred_fallthru
          _
        // Predicated region
        $region37: #{lenet_forward.1} parent=11 // pred_check
          %p368 = pneg %p199
        $region38: #{lenet_forward.1} parent=11 // pred_check_branch
          %370 = sbr.rel (%p368) target = $region40
        $region39: #{lenet_forward.1} parent=11 // pred_region
          _
        $region40: #{lenet_forward.1} parent=11 // pred_fallthru
          _
        // Predicated region
        $region41: #{lenet_forward.1} parent=11 // pred_check
          %p371 = pneg %p220
        $region42: #{lenet_forward.1} parent=11 // pred_check_branch
          %373 = sbr.rel (%p371) target = $region44
        $region43: #{lenet_forward.1} parent=11 // pred_region
          _
        $region44: #{lenet_forward.1} parent=11 // pred_fallthru
          _
        // Predicated region
        $region45: #{lenet_forward.1} parent=11 // pred_check
          %p374 = pneg %p241
        $region46: #{lenet_forward.1} parent=11 // pred_check_branch
          %376 = sbr.rel (%p374) target = $region48
        $region47: #{lenet_forward.1} parent=11 // pred_region
          _
        $region48: #{lenet_forward.1} parent=11 // pred_fallthru
          _
        // Predicated region
        $region49: #{lenet_forward.1} parent=11 // pred_check
          %p377 = pneg %p262
        $region50: #{lenet_forward.1} parent=11 // pred_check_branch
          %379 = sbr.rel (%p377) target = $region52
        $region51: #{lenet_forward.1} parent=11 // pred_region
          _
        $region52: #{lenet_forward.1} parent=11 // pred_fallthru
          _
        // Predicated region
        $region53: #{lenet_forward.1} parent=11 // pred_check
          %p380 = pneg %p283
        $region54: #{lenet_forward.1} parent=11 // pred_check_branch
          %382 = sbr.rel (%p380) target = $region56
        $region55: #{lenet_forward.1} parent=11 // pred_region
          _
        $region56: #{lenet_forward.1} parent=11 // pred_fallthru
          _
      $region12: #{lenet_forward.1} parent=5 // pred_fallthru
        _
      %p383 = scmp.lt.s32.totalorder %s26, 2
      // Predicated region
      $region57: #{lenet_forward.1} parent=5 // pred_check
        %p384 = pneg %p383
      $region58: #{lenet_forward.1} parent=5 // pred_check_branch
        %386 = sbr.rel (%p384) target = $region60
      $region59: #{lenet_forward.1} parent=5 // pred_region
        // Predicated region
        $region61: #{lenet_forward.1} parent=59 // pred_check
          %p387 = pneg %p46
        $region62: #{lenet_forward.1} parent=59 // pred_check_branch
          %389 = sbr.rel (%p387) target = $region64
        $region63: #{lenet_forward.1} parent=59 // pred_region
          %p390 = scmp.lt.s32.totalorder %s26, 1
          %s391 = scalar_select %p390, %s26, 1
          %s392 = smul.addr %s391, 12
          %s393 = smul.addr %s392, 8
          %s394 = scalar_lea.vmem %s0, %s393
        $region64: #{lenet_forward.1} parent=59 // pred_fallthru
          _
      $region60: #{lenet_forward.1} parent=5 // pred_fallthru
        _
      %p395 = scmp.le.s32.totalorder 1, %s26
      %p396 = scmp.lt.s32.totalorder %s26, 3
      %p397 = pnand %p395, %p396
      %p398 = pneg %p397
      // Predicated region
      $region65: #{lenet_forward.1} parent=5 // pred_check
        _
      $region66: #{lenet_forward.1} parent=5 // pred_check_branch
        %400 = sbr.rel (%p397) target = $region68
      $region67: #{lenet_forward.1} parent=5 // pred_region
        %s401 = ssub.s32 %s26, 1
        %p402 = scmp.lt.s32.totalorder %s31, 1
        %s403 = scalar_select %p402, %s31, 1
        %s404 = smul.addr %s403, 12
        %s405 = smul.addr %s404, 8
        %s406 = scalar_lea.vmem %s0, %s405
        %p407 = pneg %p52
        %p408 = pneg %p49
        %p409 = pneg %p73
        %p410 = pneg %p70
        %p411 = pneg %p94
        %p412 = pneg %p91
        %p413 = pneg %p115
        %p414 = pneg %p112
        %p415 = pneg %p136
        %p416 = pneg %p133
        %p417 = pneg %p157
        %p418 = pneg %p154
        %p419 = pneg %p178
        %p420 = pneg %p175
        %p421 = pneg %p199
        %p422 = pneg %p196
        %p423 = pneg %p220
        %p424 = pneg %p217
        %p425 = pneg %p241
        %p426 = pneg %p238
        %p427 = pneg %p262
        %p428 = pneg %p259
        %p429 = pneg %p283
        %p430 = pneg %p280
        %p431 = pneg %p309
        %p432 = pneg %p306
        %s433 = sand.u32 %s296, 1
        %s434 = scalar_lea.sflag [#allocation3], %s433
        %s435 = sand.u32 %s296, 1
        %s436 = scalar_lea.vmem [#allocation2], %s435
        %p437 = pneg %p335
        %p438 = pneg %p332
        %s439 = sand.u32 %s322, 1
        %s440 = scalar_lea.sflag [#allocation5], %s439
        %s441 = sand.u32 %s322, 1
        %s442 = scalar_lea.vmem [#allocation4], %s441
        %p443 = scmp.lt.s32.totalorder %s31, 1
        %s444 = scalar_select %p443, %s31, 1
        %s445 = smul.addr %s444, 12
        %s446 = smul.addr %s445, 8
        %s447 = scalar_lea.vmem %s0, %s446
        %v448 = vld [vmem:[%s447] sm:$0xff]
        %v449 = vld [vmem:[%s447 + $0x8] sm:$0xff]
        %v450 = vld [vmem:[%s447 + $0x10] sm:$0xff]
        %v451 = vld [vmem:[%s447 + $0x18] sm:$0xff]
        %v452 = vld [vmem:[%s447 + $0x20] sm:$0xff]
        %v453 = vld [vmem:[%s447 + $0x28] sm:$0xff]
        %v454 = vld [vmem:[%s447 + $0x30] sm:$0xff]
        %v455 = vld [vmem:[%s447 + $0x38] sm:$0xff]
        %v456 = vld [vmem:[%s447 + $0x40] sm:$0xff]
        %v457 = vld [vmem:[%s447 + $0x48] sm:$0xff]
        %v458 = vld [vmem:[%s447 + $0x50] sm:$0xff]
        %v459 = vld [vmem:[%s447 + $0x58] sm:$0xff]
        %v460 = vld [vmem:[%s1] sm:$0xff]
        %v461 = vld [vmem:[%s1 + $0x8] sm:$0xff]
        %v462 = vld [vmem:[%s1 + $0x10] sm:$0xff]
        %v463 = vld [vmem:[%s1 + $0x18] sm:$0xff]
        %v464 = vld [vmem:[%s1 + $0x20] sm:$0xff]
        %v465 = vld [vmem:[%s1 + $0x28] sm:$0xff]
        %v466 = vld [vmem:[%s1 + $0x30] sm:$0xff]
        %v467 = vld [vmem:[%s1 + $0x38] sm:$0xff]
        %s468 = scalar_lea.vmem %s1, 64
        %v469 = vld [vmem:[%s468] sm:$0xff]
        %v470 = vld [vmem:[%s468 + $0x8] sm:$0xff]
        %v471 = vld [vmem:[%s468 + $0x10] sm:$0xff]
        %v472 = vld [vmem:[%s468 + $0x18] sm:$0xff]
        %v473 = vld [vmem:[%s468 + $0x20] sm:$0xff]
        %v474 = vld [vmem:[%s468 + $0x28] sm:$0xff]
        %v475 = vld [vmem:[%s468 + $0x30] sm:$0xff]
        %v476 = vld [vmem:[%s468 + $0x38] sm:$0xff]
        %vm477 = vcmask 261120
        %v479 = vsel %vm477, %v452, 0
        %v482 = vsel %vm477, %v453, 0
        %v485 = vsel %vm477, %v454, 0
        %v488 = vsel %vm477, %v455, 0
        %490 = vmatprep.subr.mxu0 %v470
        %491 = vmatpush1.msra.mxu0 %v469
        %492 = vmatprep.subr.mxu0 %v472
        %493 = vmatpush1.msra.mxu0 %v471
        %494 = vmatprep.subr.mxu0 %v474
        %495 = vmatpush1.msra.mxu0 %v473
        %496 = vmatprep.subr.mxu0 %v476
        %497 = vmatpush1.msra.mxu0 %v475
        %498 = vmatprep.subr.mxu0 0.0
        %499 = vmatpush1.msra.mxu0 0.0
        %500 = vmatprep.subr.mxu0 0.0
        %501 = vmatpush1.msra.mxu0 0.0
        %502 = vmatprep.subr.mxu0 0.0
        %503 = vmatpush1.msra.mxu0 0.0
        %504 = vmatprep.subr.mxu0 0.0
        %505 = vmatpush1.msra.mxu0 0.0
        %506 = vmatprep.subr.mxu0 0.0
        %507 = vmatpush1.msra.mxu0 0.0
        %508 = vmatprep.subr.mxu0 0.0
        %509 = vmatpush1.msra.mxu0 0.0
        %510 = vmatprep.subr.mxu0 0.0
        %511 = vmatpush1.msra.mxu0 0.0
        %512 = vmatprep.subr.mxu0 0.0
        %513 = vmatpush1.msra.mxu0 0.0
        %514 = vmatprep.subr.mxu0 0.0
        %515 = vmatpush1.msra.mxu0 0.0
        %516 = vmatprep.subr.mxu0 0.0
        %517 = vmatpush1.msra.mxu0 0.0
        %518 = vmatprep.subr.mxu0 0.0
        %519 = vmatpush1.msra.mxu0 0.0
        %520 = vmatprep.subr.mxu0 0.0
        %521 = vmatpush1.msra.mxu0 0.0
        %522 = vmatprep.subr.mxu0 0.0
        %523 = vmatpush1.msra.mxu0 0.0
        %524 = vmatprep.subr.mxu0 0.0
        %525 = vmatpush1.msra.mxu0 0.0
        %526 = vmatprep.subr.mxu0 0.0
        %527 = vmatpush1.msra.mxu0 0.0
        %528 = vmatprep.subr.mxu0 0.0
        %529 = vmatpush1.msra.mxu0 0.0
        %530 = vmatprep.subr.mxu0 0.0
        %531 = vmatpush1.msra.mxu0 0.0
        %532 = vmatprep.subr.mxu0 0.0
        %533 = vmatpush1.msra.mxu0 0.0
        %534 = vmatprep.subr.mxu0 0.0
        %535 = vmatpush1.msra.mxu0 0.0
        %536 = vmatprep.subr.mxu0 0.0
        %537 = vmatpush1.msra.mxu0 0.0
        %538 = vmatprep.subr.mxu0 0.0
        %539 = vmatpush1.msra.mxu0 0.0
        %540 = vmatprep.subr.mxu0 0.0
        %541 = vmatpush1.msra.mxu0 0.0
        %542 = vmatprep.subr.mxu0 0.0
        %543 = vmatpush1.msra.mxu0 0.0
        %544 = vmatprep.subr.mxu0 0.0
        %545 = vmatpush1.msra.mxu0 0.0
        %546 = vmatprep.subr.mxu0 0.0
        %547 = vmatpush1.msra.mxu0 0.0
        %548 = vmatprep.subr.mxu0 0.0
        %549 = vmatpush1.msra.mxu0 0.0
        %550 = vmatprep.subr.mxu0 0.0
        %551 = vmatpush1.msra.mxu0 0.0
        %552 = vmatprep.subr.mxu0 0.0
        %553 = vmatpush1.msra.mxu0 0.0
        %554 = vmatprep.mubr.f32.mxu0 0.0
        %555 = vmatmul.mubr.f32.gmra.mrb[0].mxu0 %v479
        %v556 = vpop.f32.mrb[0].mxu0
        %v557 = vadd.f32 0.0, %v556
        %v558 = vpop.f32.mrb[0].mxu0
        %v559 = vadd.f32 0.0, %v558
        %560 = vmatprep.mubr.f32.mxu0 0.0
        %561 = vmatmul.mubr.f32.gmra.mrb[0].mxu0 %v482
        %v562 = vpop.f32.mrb[0].mxu0
        %v563 = vadd.f32 0.0, %v562
        %v564 = vpop.f32.mrb[0].mxu0
        %v565 = vadd.f32 0.0, %v564
        %566 = vmatprep.mubr.f32.mxu0 0.0
        %567 = vmatmul.mubr.f32.gmra.mrb[0].mxu0 %v485
        %v568 = vpop.f32.mrb[0].mxu0
        %v569 = vadd.f32 0.0, %v568
        %v570 = vpop.f32.mrb[0].mxu0
        %v571 = vadd.f32 0.0, %v570
        %572 = vmatprep.mubr.f32.mxu0 0.0
        %573 = vmatmul.mubr.f32.gmra.mrb[0].mxu0 %v488
        %v574 = vpop.f32.mrb[0].mxu0
        %v575 = vadd.f32 0.0, %v574
        %v576 = vpop.f32.mrb[0].mxu0
        %v577 = vadd.f32 0.0, %v576
        %578 = vdwg.mxu0
        %v580 = vsel %vm477, %v448, 0
        %v583 = vsel %vm477, %v449, 0
        %v586 = vsel %vm477, %v450, 0
        %v589 = vsel %vm477, %v451, 0
        %591 = vmatprep.subr.mxu0 %v461
        %592 = vmatpush1.msra.mxu0 %v460
        %593 = vmatprep.subr.mxu0 %v463
        %594 = vmatpush1.msra.mxu0 %v462
        %595 = vmatprep.subr.mxu0 %v465
        %596 = vmatpush1.msra.mxu0 %v464
        %597 = vmatprep.subr.mxu0 %v467
        %598 = vmatpush1.msra.mxu0 %v466
        %599 = vmatprep.subr.mxu0 0.0
        %600 = vmatpush1.msra.mxu0 0.0
        %601 = vmatprep.subr.mxu0 0.0
        %602 = vmatpush1.msra.mxu0 0.0
        %603 = vmatprep.subr.mxu0 0.0
        %604 = vmatpush1.msra.mxu0 0.0
        %605 = vmatprep.subr.mxu0 0.0
        %606 = vmatpush1.msra.mxu0 0.0
        %607 = vmatprep.subr.mxu0 0.0
        %608 = vmatpush1.msra.mxu0 0.0
        %609 = vmatprep.subr.mxu0 0.0
        %610 = vmatpush1.msra.mxu0 0.0
        %611 = vmatprep.subr.mxu0 0.0
        %612 = vmatpush1.msra.mxu0 0.0
        %613 = vmatprep.subr.mxu0 0.0
        %614 = vmatpush1.msra.mxu0 0.0
        %615 = vmatprep.subr.mxu0 0.0
        %616 = vmatpush1.msra.mxu0 0.0
        %617 = vmatprep.subr.mxu0 0.0
        %618 = vmatpush1.msra.mxu0 0.0
        %619 = vmatprep.subr.mxu0 0.0
        %620 = vmatpush1.msra.mxu0 0.0
        %621 = vmatprep.subr.mxu0 0.0
        %622 = vmatpush1.msra.mxu0 0.0
        %623 = vmatprep.subr.mxu0 0.0
        %624 = vmatpush1.msra.mxu0 0.0
        %625 = vmatprep.subr.mxu0 0.0
        %626 = vmatpush1.msra.mxu0 0.0
        %627 = vmatprep.subr.mxu0 0.0
        %628 = vmatpush1.msra.mxu0 0.0
        %629 = vmatprep.subr.mxu0 0.0
        %630 = vmatpush1.msra.mxu0 0.0
        %631 = vmatprep.subr.mxu0 0.0
        %632 = vmatpush1.msra.mxu0 0.0
        %633 = vmatprep.subr.mxu0 0.0
        %634 = vmatpush1.msra.mxu0 0.0
        %635 = vmatprep.subr.mxu0 0.0
        %636 = vmatpush1.msra.mxu0 0.0
        %637 = vmatprep.subr.mxu0 0.0
        %638 = vmatpush1.msra.mxu0 0.0
        %639 = vmatprep.subr.mxu0 0.0
        %640 = vmatpush1.msra.mxu0 0.0
        %641 = vmatprep.subr.mxu0 0.0
        %642 = vmatpush1.msra.mxu0 0.0
        %643 = vmatprep.subr.mxu0 0.0
        %644 = vmatpush1.msra.mxu0 0.0
        %645 = vmatprep.subr.mxu0 0.0
        %646 = vmatpush1.msra.mxu0 0.0
        %647 = vmatprep.subr.mxu0 0.0
        %648 = vmatpush1.msra.mxu0 0.0
        %649 = vmatprep.subr.mxu0 0.0
        %650 = vmatpush1.msra.mxu0 0.0
        %651 = vmatprep.subr.mxu0 0.0
        %652 = vmatpush1.msra.mxu0 0.0
        %653 = vmatprep.subr.mxu0 0.0
        %654 = vmatpush1.msra.mxu0 0.0
        %655 = vmatprep.mubr.f32.mxu0 0.0
        %656 = vmatmul.mubr.f32.gmra.mrb[0].mxu0 %v580
        %v657 = vpop.f32.mrb[0].mxu0
        %v658 = vadd.f32 %v557, %v657
        %v659 = vpop.f32.mrb[0].mxu0
        %v660 = vadd.f32 %v559, %v659
        %661 = vmatprep.mubr.f32.mxu0 0.0
        %662 = vmatmul.mubr.f32.gmra.mrb[0].mxu0 %v583
        %v663 = vpop.f32.mrb[0].mxu0
        %v664 = vadd.f32 %v563, %v663
        %v665 = vpop.f32.mrb[0].mxu0
        %v666 = vadd.f32 %v565, %v665
        %667 = vmatprep.mubr.f32.mxu0 0.0
        %668 = vmatmul.mubr.f32.gmra.mrb[0].mxu0 %v586
        %v669 = vpop.f32.mrb[0].mxu0
        %v670 = vadd.f32 %v569, %v669
        %v671 = vpop.f32.mrb[0].mxu0
        %v672 = vadd.f32 %v571, %v671
        %673 = vmatprep.mubr.f32.mxu0 0.0
        %674 = vmatmul.mubr.f32.gmra.mrb[0].mxu0 %v589
        %v675 = vpop.f32.mrb[0].mxu0
        %v676 = vadd.f32 %v575, %v675
        %v677 = vpop.f32.mrb[0].mxu0
        %v678 = vadd.f32 %v577, %v677
        %679 = vdwg.mxu0
        %s680 = scalar_lea.vmem %s1, 128
        %v681 = vld [vmem:[%s680] sm:$0xff]
        %v682 = vld [vmem:[%s680 + $0x8] sm:$0xff]
        %v683 = vld [vmem:[%s680 + $0x10] sm:$0xff]
        %v684 = vld [vmem:[%s680 + $0x18] sm:$0xff]
        %v685 = vld [vmem:[%s680 + $0x20] sm:$0xff]
        %v686 = vld [vmem:[%s680 + $0x28] sm:$0xff]
        %v687 = vld [vmem:[%s680 + $0x30] sm:$0xff]
        %v688 = vld [vmem:[%s680 + $0x38] sm:$0xff]
        %v690 = vsel %vm477, %v456, 0
        %v693 = vsel %vm477, %v457, 0
        %v696 = vsel %vm477, %v458, 0
        %v699 = vsel %vm477, %v459, 0
        %701 = vmatprep.subr.mxu0 %v682
        %702 = vmatpush1.msra.mxu0 %v681
        %703 = vmatprep.subr.mxu0 %v684
        %704 = vmatpush1.msra.mxu0 %v683
        %705 = vmatprep.subr.mxu0 %v686
        %706 = vmatpush1.msra.mxu0 %v685
        %707 = vmatprep.subr.mxu0 %v688
        %708 = vmatpush1.msra.mxu0 %v687
        %709 = vmatprep.subr.mxu0 0.0
        %710 = vmatpush1.msra.mxu0 0.0
        %711 = vmatprep.subr.mxu0 0.0
        %712 = vmatpush1.msra.mxu0 0.0
        %713 = vmatprep.subr.mxu0 0.0
        %714 = vmatpush1.msra.mxu0 0.0
        %715 = vmatprep.subr.mxu0 0.0
        %716 = vmatpush1.msra.mxu0 0.0
        %717 = vmatprep.subr.mxu0 0.0
        %718 = vmatpush1.msra.mxu0 0.0
        %719 = vmatprep.subr.mxu0 0.0
        %720 = vmatpush1.msra.mxu0 0.0
        %721 = vmatprep.subr.mxu0 0.0
        %722 = vmatpush1.msra.mxu0 0.0
        %723 = vmatprep.subr.mxu0 0.0
        %724 = vmatpush1.msra.mxu0 0.0
        %725 = vmatprep.subr.mxu0 0.0
        %726 = vmatpush1.msra.mxu0 0.0
        %727 = vmatprep.subr.mxu0 0.0
        %728 = vmatpush1.msra.mxu0 0.0
        %729 = vmatprep.subr.mxu0 0.0
        %730 = vmatpush1.msra.mxu0 0.0
        %731 = vmatprep.subr.mxu0 0.0
        %732 = vmatpush1.msra.mxu0 0.0
        %733 = vmatprep.subr.mxu0 0.0
        %734 = vmatpush1.msra.mxu0 0.0
        %735 = vmatprep.subr.mxu0 0.0
        %736 = vmatpush1.msra.mxu0 0.0
        %737 = vmatprep.subr.mxu0 0.0
        %738 = vmatpush1.msra.mxu0 0.0
        %739 = vmatprep.subr.mxu0 0.0
        %740 = vmatpush1.msra.mxu0 0.0
        %741 = vmatprep.subr.mxu0 0.0
        %742 = vmatpush1.msra.mxu0 0.0
        %743 = vmatprep.subr.mxu0 0.0
        %744 = vmatpush1.msra.mxu0 0.0
        %745 = vmatprep.subr.mxu0 0.0
        %746 = vmatpush1.msra.mxu0 0.0
        %747 = vmatprep.subr.mxu0 0.0
        %748 = vmatpush1.msra.mxu0 0.0
        %749 = vmatprep.subr.mxu0 0.0
        %750 = vmatpush1.msra.mxu0 0.0
        %751 = vmatprep.subr.mxu0 0.0
        %752 = vmatpush1.msra.mxu0 0.0
        %753 = vmatprep.subr.mxu0 0.0
        %754 = vmatpush1.msra.mxu0 0.0
        %755 = vmatprep.subr.mxu0 0.0
        %756 = vmatpush1.msra.mxu0 0.0
        %757 = vmatprep.subr.mxu0 0.0
        %758 = vmatpush1.msra.mxu0 0.0
        %759 = vmatprep.subr.mxu0 0.0
        %760 = vmatpush1.msra.mxu0 0.0
        %761 = vmatprep.subr.mxu0 0.0
        %762 = vmatpush1.msra.mxu0 0.0
        %763 = vmatprep.subr.mxu0 0.0
        %764 = vmatpush1.msra.mxu0 0.0
        %765 = vmatprep.mubr.f32.mxu0 0.0
        %766 = vmatmul.mubr.f32.gmra.mrb[0].mxu0 %v690
        %v767 = vpop.f32.mrb[0].mxu0
        %v768 = vadd.f32 0.0, %v767
        %v769 = vpop.f32.mrb[0].mxu0
        %v770 = vadd.f32 0.0, %v769
        %771 = vmatprep.mubr.f32.mxu0 0.0
        %772 = vmatmul.mubr.f32.gmra.mrb[0].mxu0 %v693
        %v773 = vpop.f32.mrb[0].mxu0
        %v774 = vadd.f32 0.0, %v773
        %v775 = vpop.f32.mrb[0].mxu0
        %v776 = vadd.f32 0.0, %v775
        %777 = vmatprep.mubr.f32.mxu0 0.0
        %778 = vmatmul.mubr.f32.gmra.mrb[0].mxu0 %v696
        %v779 = vpop.f32.mrb[0].mxu0
        %v780 = vadd.f32 0.0, %v779
        %v781 = vpop.f32.mrb[0].mxu0
        %v782 = vadd.f32 0.0, %v781
        %783 = vmatprep.mubr.f32.mxu0 0.0
        %784 = vmatmul.mubr.f32.gmra.mrb[0].mxu0 %v699
        %v785 = vpop.f32.mrb[0].mxu0
        %v786 = vadd.f32 0.0, %v785
        %v787 = vpop.f32.mrb[0].mxu0
        %v788 = vadd.f32 0.0, %v787
        %789 = vdwg.mxu0
        %v790 = vadd.f32 %v658, %v768
        %v791 = vadd.f32 %v660, %v770
        %v792 = vadd.f32 %v664, %v774
        %v793 = vadd.f32 %v666, %v776
        %v794 = vadd.f32 %v670, %v780
        %v795 = vadd.f32 %v672, %v782
        %v796 = vadd.f32 %v676, %v786
        %v797 = vadd.f32 %v678, %v788
        %s798 = scalar_lea.vmem %s1, 192
        %v799 = vld [vmem:[%s798] sm:$0xff]
        %v800 = vld [vmem:[%s798 + $0x8] sm:$0xff]
        %v801 = vld [vmem:[%s798 + $0x10] sm:$0xff]
        %v802 = vld [vmem:[%s798 + $0x18] sm:$0xff]
        %v803 = vld [vmem:[%s798 + $0x20] sm:$0xff]
        %v804 = vld [vmem:[%s798 + $0x28] sm:$0xff]
        %v805 = vld [vmem:[%s798 + $0x30] sm:$0xff]
        %v806 = vld [vmem:[%s798 + $0x38] sm:$0xff]
        %vm807 = vcmask 1046528
        %v808 = vrot.slane %v448, 1
        %v809 = vrot.slane %v449, 1
        %v810 = vsel %vm807, %v808, %v809
        %v811 = vrot.slane %v450, 1
        %v812 = vsel %vm807, %v809, %v811
        %v813 = vrot.slane %v451, 1
        %v814 = vsel %vm807, %v811, %v813
        %v815 = vsel %vm477, %v810, 0
        %v817 = vsel %vm477, %v812, 0
        %v819 = vsel %vm477, %v814, 0
        %v821 = vsel %vm477, %v813, 0
        %823 = vmatprep.subr.mxu0 %v800
        %824 = vmatpush1.msra.mxu0 %v799
        %825 = vmatprep.subr.mxu0 %v802
        %826 = vmatpush1.msra.mxu0 %v801
        %827 = vmatprep.subr.mxu0 %v804
        %828 = vmatpush1.msra.mxu0 %v803
        %829 = vmatprep.subr.mxu0 %v806
        %830 = vmatpush1.msra.mxu0 %v805
        %831 = vmatprep.subr.mxu0 0.0
        %832 = vmatpush1.msra.mxu0 0.0
        %833 = vmatprep.subr.mxu0 0.0
        %834 = vmatpush1.msra.mxu0 0.0
        %835 = vmatprep.subr.mxu0 0.0
        %836 = vmatpush1.msra.mxu0 0.0
        %837 = vmatprep.subr.mxu0 0.0
        %838 = vmatpush1.msra.mxu0 0.0
        %839 = vmatprep.subr.mxu0 0.0
        %840 = vmatpush1.msra.mxu0 0.0
        %841 = vmatprep.subr.mxu0 0.0
        %842 = vmatpush1.msra.mxu0 0.0
        %843 = vmatprep.subr.mxu0 0.0
        %844 = vmatpush1.msra.mxu0 0.0
        %845 = vmatprep.subr.mxu0 0.0
        %846 = vmatpush1.msra.mxu0 0.0
        %847 = vmatprep.subr.mxu0 0.0
        %848 = vmatpush1.msra.mxu0 0.0
        %849 = vmatprep.subr.mxu0 0.0
        %850 = vmatpush1.msra.mxu0 0.0
        %851 = vmatprep.subr.mxu0 0.0
        %852 = vmatpush1.msra.mxu0 0.0
        %853 = vmatprep.subr.mxu0 0.0
        %854 = vmatpush1.msra.mxu0 0.0
        %855 = vmatprep.subr.mxu0 0.0
        %856 = vmatpush1.msra.mxu0 0.0
        %857 = vmatprep.subr.mxu0 0.0
        %858 = vmatpush1.msra.mxu0 0.0
        %859 = vmatprep.subr.mxu0 0.0
        %860 = vmatpush1.msra.mxu0 0.0
        %861 = vmatprep.subr.mxu0 0.0
        %862 = vmatpush1.msra.mxu0 0.0
        %863 = vmatprep.subr.mxu0 0.0
        %864 = vmatpush1.msra.mxu0 0.0
        %865 = vmatprep.subr.mxu0 0.0
        %866 = vmatpush1.msra.mxu0 0.0
        %867 = vmatprep.subr.mxu0 0.0
        %868 = vmatpush1.msra.mxu0 0.0
        %869 = vmatprep.subr.mxu0 0.0
        %870 = vmatpush1.msra.mxu0 0.0
        %871 = vmatprep.subr.mxu0 0.0
        %872 = vmatpush1.msra.mxu0 0.0
        %873 = vmatprep.subr.mxu0 0.0
        %874 = vmatpush1.msra.mxu0 0.0
        %875 = vmatprep.subr.mxu0 0.0
        %876 = vmatpush1.msra.mxu0 0.0
        %877 = vmatprep.subr.mxu0 0.0
        %878 = vmatpush1.msra.mxu0 0.0
        %879 = vmatprep.subr.mxu0 0.0
        %880 = vmatpush1.msra.mxu0 0.0
        %881 = vmatprep.subr.mxu0 0.0
        %882 = vmatpush1.msra.mxu0 0.0
        %883 = vmatprep.subr.mxu0 0.0
        %884 = vmatpush1.msra.mxu0 0.0
        %885 = vmatprep.subr.mxu0 0.0
        %886 = vmatpush1.msra.mxu0 0.0
        %887 = vmatprep.mubr.f32.mxu0 0.0
        %888 = vmatmul.mubr.f32.gmra.mrb[0].mxu0 %v815
        %v889 = vpop.f32.mrb[0].mxu0
        %v890 = vadd.f32 0.0, %v889
        %v891 = vpop.f32.mrb[0].mxu0
        %v892 = vadd.f32 0.0, %v891
        %893 = vmatprep.mubr.f32.mxu0 0.0
        %894 = vmatmul.mubr.f32.gmra.mrb[0].mxu0 %v817
        %v895 = vpop.f32.mrb[0].mxu0
        %v896 = vadd.f32 0.0, %v895
        %v897 = vpop.f32.mrb[0].mxu0
        %v898 = vadd.f32 0.0, %v897
        %899 = vmatprep.mubr.f32.mxu0 0.0
        %900 = vmatmul.mubr.f32.gmra.mrb[0].mxu0 %v819
        %v901 = vpop.f32.mrb[0].mxu0
        %v902 = vadd.f32 0.0, %v901
        %v903 = vpop.f32.mrb[0].mxu0
        %v904 = vadd.f32 0.0, %v903
        %905 = vmatprep.mubr.f32.mxu0 0.0
        %906 = vmatmul.mubr.f32.gmra.mrb[0].mxu0 %v821
        %v907 = vpop.f32.mrb[0].mxu0
        %v908 = vadd.f32 0.0, %v907
        %v909 = vpop.f32.mrb[0].mxu0
        %v910 = vadd.f32 0.0, %v909
        %911 = vdwg.mxu0
        %v912 = vadd.f32 %v790, %v890
        %v913 = vadd.f32 %v791, %v892
        %v914 = vadd.f32 %v792, %v896
        %v915 = vadd.f32 %v793, %v898
        %v916 = vadd.f32 %v794, %v902
        %v917 = vadd.f32 %v795, %v904
        %v918 = vadd.f32 %v796, %v908
        %v919 = vadd.f32 %v797, %v910
        %s920 = scalar_lea.vmem %s1, 256
        %v921 = vld [vmem:[%s920] sm:$0xff]
        %v922 = vld [vmem:[%s920 + $0x8] sm:$0xff]
        %v923 = vld [vmem:[%s920 + $0x10] sm:$0xff]
        %v924 = vld [vmem:[%s920 + $0x18] sm:$0xff]
        %v925 = vld [vmem:[%s920 + $0x20] sm:$0xff]
        %v926 = vld [vmem:[%s920 + $0x28] sm:$0xff]
        %v927 = vld [vmem:[%s920 + $0x30] sm:$0xff]
        %v928 = vld [vmem:[%s920 + $0x38] sm:$0xff]
        %v929 = vrot.slane %v452, 1
        %v930 = vrot.slane %v453, 1
        %v931 = vsel %vm807, %v929, %v930
        %v932 = vrot.slane %v454, 1
        %v933 = vsel %vm807, %v930, %v932
        %v934 = vrot.slane %v455, 1
        %v935 = vsel %vm807, %v932, %v934
        %v936 = vsel %vm477, %v931, 0
        %v938 = vsel %vm477, %v933, 0
        %v940 = vsel %vm477, %v935, 0
        %v942 = vsel %vm477, %v934, 0
        %944 = vmatprep.subr.mxu0 %v922
        %945 = vmatpush1.msra.mxu0 %v921
        %946 = vmatprep.subr.mxu0 %v924
        %947 = vmatpush1.msra.mxu0 %v923
        %948 = vmatprep.subr.mxu0 %v926
        %949 = vmatpush1.msra.mxu0 %v925
        %950 = vmatprep.subr.mxu0 %v928
        %951 = vmatpush1.msra.mxu0 %v927
        %952 = vmatprep.subr.mxu0 0.0
        %953 = vmatpush1.msra.mxu0 0.0
        %954 = vmatprep.subr.mxu0 0.0
        %955 = vmatpush1.msra.mxu0 0.0
        %956 = vmatprep.subr.mxu0 0.0
        %957 = vmatpush1.msra.mxu0 0.0
        %958 = vmatprep.subr.mxu0 0.0
        %959 = vmatpush1.msra.mxu0 0.0
        %960 = vmatprep.subr.mxu0 0.0
        %961 = vmatpush1.msra.mxu0 0.0
        %962 = vmatprep.subr.mxu0 0.0
        %963 = vmatpush1.msra.mxu0 0.0
        %964 = vmatprep.subr.mxu0 0.0
        %965 = vmatpush1.msra.mxu0 0.0
        %966 = vmatprep.subr.mxu0 0.0
        %967 = vmatpush1.msra.mxu0 0.0
        %968 = vmatprep.subr.mxu0 0.0
        %969 = vmatpush1.msra.mxu0 0.0
        %970 = vmatprep.subr.mxu0 0.0
        %971 = vmatpush1.msra.mxu0 0.0
        %972 = vmatprep.subr.mxu0 0.0
        %973 = vmatpush1.msra.mxu0 0.0
        %974 = vmatprep.subr.mxu0 0.0
        %975 = vmatpush1.msra.mxu0 0.0
        %976 = vmatprep.subr.mxu0 0.0
        %977 = vmatpush1.msra.mxu0 0.0
        %978 = vmatprep.subr.mxu0 0.0
        %979 = vmatpush1.msra.mxu0 0.0
        %980 = vmatprep.subr.mxu0 0.0
        %981 = vmatpush1.msra.mxu0 0.0
        %982 = vmatprep.subr.mxu0 0.0
        %983 = vmatpush1.msra.mxu0 0.0
        %984 = vmatprep.subr.mxu0 0.0
        %985 = vmatpush1.msra.mxu0 0.0
        %986 = vmatprep.subr.mxu0 0.0
        %987 = vmatpush1.msra.mxu0 0.0
        %988 = vmatprep.subr.mxu0 0.0
        %989 = vmatpush1.msra.mxu0 0.0
        %990 = vmatprep.subr.mxu0 0.0
        %991 = vmatpush1.msra.mxu0 0.0
        %992 = vmatprep.subr.mxu0 0.0
        %993 = vmatpush1.msra.mxu0 0.0
        %994 = vmatprep.subr.mxu0 0.0
        %995 = vmatpush1.msra.mxu0 0.0
        %996 = vmatprep.subr.mxu0 0.0
        %997 = vmatpush1.msra.mxu0 0.0
        %998 = vmatprep.subr.mxu0 0.0
        %999 = vmatpush1.msra.mxu0 0.0
        %1000 = vmatprep.subr.mxu0 0.0
        %1001 = vmatpush1.msra.mxu0 0.0
        %1002 = vmatprep.subr.mxu0 0.0
        %1003 = vmatpush1.msra.mxu0 0.0
        %1004 = vmatprep.subr.mxu0 0.0
        %1005 = vmatpush1.msra.mxu0 0.0
        %1006 = vmatprep.subr.mxu0 0.0
        %1007 = vmatpush1.msra.mxu0 0.0
        %1008 = vmatprep.mubr.f32.mxu0 0.0
        %1009 = vmatmul.mubr.f32.gmra.mrb[0].mxu0 %v936
        %v1010 = vpop.f32.mrb[0].mxu0
        %v1011 = vadd.f32 0.0, %v1010
        %v1012 = vpop.f32.mrb[0].mxu0
        %v1013 = vadd.f32 0.0, %v1012
        %1014 = vmatprep.mubr.f32.mxu0 0.0
        %1015 = vmatmul.mubr.f32.gmra.mrb[0].mxu0 %v938
        %v1016 = vpop.f32.mrb[0].mxu0
        %v1017 = vadd.f32 0.0, %v1016
        %v1018 = vpop.f32.mrb[0].mxu0
        %v1019 = vadd.f32 0.0, %v1018
        %1020 = vmatprep.mubr.f32.mxu0 0.0
        %1021 = vmatmul.mubr.f32.gmra.mrb[0].mxu0 %v940
        %v1022 = vpop.f32.mrb[0].mxu0
        %v1023 = vadd.f32 0.0, %v1022
        %v1024 = vpop.f32.mrb[0].mxu0
        %v1025 = vadd.f32 0.0, %v1024
        %1026 = vmatprep.mubr.f32.mxu0 0.0
        %1027 = vmatmul.mubr.f32.gmra.mrb[0].mxu0 %v942
        %v1028 = vpop.f32.mrb[0].mxu0
        %v1029 = vadd.f32 0.0, %v1028
        %v1030 = vpop.f32.mrb[0].mxu0
        %v1031 = vadd.f32 0.0, %v1030
        %1032 = vdwg.mxu0
        %v1033 = vadd.f32 %v912, %v1011
        %v1034 = vadd.f32 %v913, %v1013
        %v1035 = vadd.f32 %v914, %v1017
        %v1036 = vadd.f32 %v915, %v1019
        %v1037 = vadd.f32 %v916, %v1023
        %v1038 = vadd.f32 %v917, %v1025
        %v1039 = vadd.f32 %v918, %v1029
        %v1040 = vadd.f32 %v919, %v1031
        %s1041 = scalar_lea.vmem %s1, 320
        %v1042 = vld [vmem:[%s1041] sm:$0xff]
        %v1043 = vld [vmem:[%s1041 + $0x8] sm:$0xff]
        %v1044 = vld [vmem:[%s1041 + $0x10] sm:$0xff]
        %v1045 = vld [vmem:[%s1041 + $0x18] sm:$0xff]
        %v1046 = vld [vmem:[%s1041 + $0x20] sm:$0xff]
        %v1047 = vld [vmem:[%s1041 + $0x28] sm:$0xff]
        %v1048 = vld [vmem:[%s1041 + $0x30] sm:$0xff]
        %v1049 = vld [vmem:[%s1041 + $0x38] sm:$0xff]
        %v1050 = vrot.slane %v456, 1
        %v1051 = vrot.slane %v457, 1
        %v1052 = vsel %vm807, %v1050, %v1051
        %v1053 = vrot.slane %v458, 1
        %v1054 = vsel %vm807, %v1051, %v1053
        %v1055 = vrot.slane %v459, 1
        %v1056 = vsel %vm807, %v1053, %v1055
        %v1057 = vsel %vm477, %v1052, 0
        %v1059 = vsel %vm477, %v1054, 0
        %v1061 = vsel %vm477, %v1056, 0
        %v1063 = vsel %vm477, %v1055, 0
        %1065 = vmatprep.subr.mxu0 %v1043
        %1066 = vmatpush1.msra.mxu0 %v1042
        %1067 = vmatprep.subr.mxu0 %v1045
        %1068 = vmatpush1.msra.mxu0 %v1044
        %1069 = vmatprep.subr.mxu0 %v1047
        %1070 = vmatpush1.msra.mxu0 %v1046
        %1071 = vmatprep.subr.mxu0 %v1049
        %1072 = vmatpush1.msra.mxu0 %v1048
        %1073 = vmatprep.subr.mxu0 0.0
        %1074 = vmatpush1.msra.mxu0 0.0
        %1075 = vmatprep.subr.mxu0 0.0
        %1076 = vmatpush1.msra.mxu0 0.0
        %1077 = vmatprep.subr.mxu0 0.0
        %1078 = vmatpush1.msra.mxu0 0.0
        %1079 = vmatprep.subr.mxu0 0.0
        %1080 = vmatpush1.msra.mxu0 0.0
        %1081 = vmatprep.subr.mxu0 0.0
        %1082 = vmatpush1.msra.mxu0 0.0
        %1083 = vmatprep.subr.mxu0 0.0
        %1084 = vmatpush1.msra.mxu0 0.0
        %1085 = vmatprep.subr.mxu0 0.0
        %1086 = vmatpush1.msra.mxu0 0.0
        %1087 = vmatprep.subr.mxu0 0.0
        %1088 = vmatpush1.msra.mxu0 0.0
        %1089 = vmatprep.subr.mxu0 0.0
        %1090 = vmatpush1.msra.mxu0 0.0
        %1091 = vmatprep.subr.mxu0 0.0
        %1092 = vmatpush1.msra.mxu0 0.0
        %1093 = vmatprep.subr.mxu0 0.0
        %1094 = vmatpush1.msra.mxu0 0.0
        %1095 = vmatprep.subr.mxu0 0.0
        %1096 = vmatpush1.msra.mxu0 0.0
        %1097 = vmatprep.subr.mxu0 0.0
        %1098 = vmatpush1.msra.mxu0 0.0
        %1099 = vmatprep.subr.mxu0 0.0
        %1100 = vmatpush1.msra.mxu0 0.0
        %1101 = vmatprep.subr.mxu0 0.0
        %1102 = vmatpush1.msra.mxu0 0.0
        %1103 = vmatprep.subr.mxu0 0.0
        %1104 = vmatpush1.msra.mxu0 0.0
        %1105 = vmatprep.subr.mxu0 0.0
        %1106 = vmatpush1.msra.mxu0 0.0
        %1107 = vmatprep.subr.mxu0 0.0
        %1108 = vmatpush1.msra.mxu0 0.0
        %1109 = vmatprep.subr.mxu0 0.0
        %1110 = vmatpush1.msra.mxu0 0.0
        %1111 = vmatprep.subr.mxu0 0.0
        %1112 = vmatpush1.msra.mxu0 0.0
        %1113 = vmatprep.subr.mxu0 0.0
        %1114 = vmatpush1.msra.mxu0 0.0
        %1115 = vmatprep.subr.mxu0 0.0
        %1116 = vmatpush1.msra.mxu0 0.0
        %1117 = vmatprep.subr.mxu0 0.0
        %1118 = vmatpush1.msra.mxu0 0.0
        %1119 = vmatprep.subr.mxu0 0.0
        %1120 = vmatpush1.msra.mxu0 0.0
        %1121 = vmatprep.subr.mxu0 0.0
        %1122 = vmatpush1.msra.mxu0 0.0
        %1123 = vmatprep.subr.mxu0 0.0
        %1124 = vmatpush1.msra.mxu0 0.0
        %1125 = vmatprep.subr.mxu0 0.0
        %1126 = vmatpush1.msra.mxu0 0.0
        %1127 = vmatprep.subr.mxu0 0.0
        %1128 = vmatpush1.msra.mxu0 0.0
        %1129 = vmatprep.mubr.f32.mxu0 0.0
        %1130 = vmatmul.mubr.f32.gmra.mrb[0].mxu0 %v1057
        %v1131 = vpop.f32.mrb[0].mxu0
        %v1132 = vadd.f32 0.0, %v1131
        %v1133 = vpop.f32.mrb[0].mxu0
        %v1134 = vadd.f32 0.0, %v1133
        %1135 = vmatprep.mubr.f32.mxu0 0.0
        %1136 = vmatmul.mubr.f32.gmra.mrb[0].mxu0 %v1059
        %v1137 = vpop.f32.mrb[0].mxu0
        %v1138 = vadd.f32 0.0, %v1137
        %v1139 = vpop.f32.mrb[0].mxu0
        %v1140 = vadd.f32 0.0, %v1139
        %1141 = vmatprep.mubr.f32.mxu0 0.0
        %1142 = vmatmul.mubr.f32.gmra.mrb[0].mxu0 %v1061
        %v1143 = vpop.f32.mrb[0].mxu0
        %v1144 = vadd.f32 0.0, %v1143
        %v1145 = vpop.f32.mrb[0].mxu0
        %v1146 = vadd.f32 0.0, %v1145
        %1147 = vmatprep.mubr.f32.mxu0 0.0
        %1148 = vmatmul.mubr.f32.gmra.mrb[0].mxu0 %v1063
        %v1149 = vpop.f32.mrb[0].mxu0
        %v1150 = vadd.f32 0.0, %v1149
        %v1151 = vpop.f32.mrb[0].mxu0
        %v1152 = vadd.f32 0.0, %v1151
        %1153 = vdwg.mxu0
        %v1154 = vadd.f32 %v1033, %v1132
        %v1155 = vadd.f32 %v1034, %v1134
        %v1156 = vadd.f32 %v1035, %v1138
        %v1157 = vadd.f32 %v1036, %v1140
        %v1158 = vadd.f32 %v1037, %v1144
        %v1159 = vadd.f32 %v1038, %v1146
        %v1160 = vadd.f32 %v1039, %v1150
        %v1161 = vadd.f32 %v1040, %v1152
        %s1162 = scalar_lea.vmem %s1, 384
        %v1163 = vld [vmem:[%s1162] sm:$0xff]
        %v1164 = vld [vmem:[%s1162 + $0x8] sm:$0xff]
        %v1165 = vld [vmem:[%s1162 + $0x10] sm:$0xff]
        %v1166 = vld [vmem:[%s1162 + $0x18] sm:$0xff]
        %v1167 = vld [vmem:[%s1162 + $0x20] sm:$0xff]
        %v1168 = vld [vmem:[%s1162 + $0x28] sm:$0xff]
        %v1169 = vld [vmem:[%s1162 + $0x30] sm:$0xff]
        %v1170 = vld [vmem:[%s1162 + $0x38] sm:$0xff]
        %vm1171 = vcmask 1045504
        %v1172 = vrot.slane %v448, 2
        %v1173 = vrot.slane %v449, 2
        %v1174 = vsel %vm1171, %v1172, %v1173
        %v1175 = vrot.slane %v450, 2
        %v1176 = vsel %vm1171, %v1173, %v1175
        %v1177 = vrot.slane %v451, 2
        %v1178 = vsel %vm1171, %v1175, %v1177
        %v1179 = vsel %vm477, %v1174, 0
        %v1181 = vsel %vm477, %v1176, 0
        %v1183 = vsel %vm477, %v1178, 0
        %v1185 = vsel %vm477, %v1177, 0
        %1187 = vmatprep.subr.mxu0 %v1164
        %1188 = vmatpush1.msra.mxu0 %v1163
        %1189 = vmatprep.subr.mxu0 %v1166
        %1190 = vmatpush1.msra.mxu0 %v1165
        %1191 = vmatprep.subr.mxu0 %v1168
        %1192 = vmatpush1.msra.mxu0 %v1167
        %1193 = vmatprep.subr.mxu0 %v1170
        %1194 = vmatpush1.msra.mxu0 %v1169
        %1195 = vmatprep.subr.mxu0 0.0
        %1196 = vmatpush1.msra.mxu0 0.0
        %1197 = vmatprep.subr.mxu0 0.0
        %1198 = vmatpush1.msra.mxu0 0.0
        %1199 = vmatprep.subr.mxu0 0.0
        %1200 = vmatpush1.msra.mxu0 0.0
        %1201 = vmatprep.subr.mxu0 0.0
        %1202 = vmatpush1.msra.mxu0 0.0
        %1203 = vmatprep.subr.mxu0 0.0
        %1204 = vmatpush1.msra.mxu0 0.0
        %1205 = vmatprep.subr.mxu0 0.0
        %1206 = vmatpush1.msra.mxu0 0.0
        %1207 = vmatprep.subr.mxu0 0.0
        %1208 = vmatpush1.msra.mxu0 0.0
        %1209 = vmatprep.subr.mxu0 0.0
        %1210 = vmatpush1.msra.mxu0 0.0
        %1211 = vmatprep.subr.mxu0 0.0
        %1212 = vmatpush1.msra.mxu0 0.0
        %1213 = vmatprep.subr.mxu0 0.0
        %1214 = vmatpush1.msra.mxu0 0.0
        %1215 = vmatprep.subr.mxu0 0.0
        %1216 = vmatpush1.msra.mxu0 0.0
        %1217 = vmatprep.subr.mxu0 0.0
        %1218 = vmatpush1.msra.mxu0 0.0
        %1219 = vmatprep.subr.mxu0 0.0
        %1220 = vmatpush1.msra.mxu0 0.0
        %1221 = vmatprep.subr.mxu0 0.0
        %1222 = vmatpush1.msra.mxu0 0.0
        %1223 = vmatprep.subr.mxu0 0.0
        %1224 = vmatpush1.msra.mxu0 0.0
        %1225 = vmatprep.subr.mxu0 0.0
        %1226 = vmatpush1.msra.mxu0 0.0
        %1227 = vmatprep.subr.mxu0 0.0
        %1228 = vmatpush1.msra.mxu0 0.0
        %1229 = vmatprep.subr.mxu0 0.0
        %1230 = vmatpush1.msra.mxu0 0.0
        %1231 = vmatprep.subr.mxu0 0.0
        %1232 = vmatpush1.msra.mxu0 0.0
        %1233 = vmatprep.subr.mxu0 0.0
        %1234 = vmatpush1.msra.mxu0 0.0
        %1235 = vmatprep.subr.mxu0 0.0
        %1236 = vmatpush1.msra.mxu0 0.0
        %1237 = vmatprep.subr.mxu0 0.0
        %1238 = vmatpush1.msra.mxu0 0.0
        %1239 = vmatprep.subr.mxu0 0.0
        %1240 = vmatpush1.msra.mxu0 0.0
        %1241 = vmatprep.subr.mxu0 0.0
        %1242 = vmatpush1.msra.mxu0 0.0
        %1243 = vmatprep.subr.mxu0 0.0
        %1244 = vmatpush1.msra.mxu0 0.0
        %1245 = vmatprep.subr.mxu0 0.0
        %1246 = vmatpush1.msra.mxu0 0.0
        %1247 = vmatprep.subr.mxu0 0.0
        %1248 = vmatpush1.msra.mxu0 0.0
        %1249 = vmatprep.subr.mxu0 0.0
        %1250 = vmatpush1.msra.mxu0 0.0
        %1251 = vmatprep.mubr.f32.mxu0 0.0
        %1252 = vmatmul.mubr.f32.gmra.mrb[0].mxu0 %v1179
        %v1253 = vpop.f32.mrb[0].mxu0
        %v1254 = vadd.f32 0.0, %v1253
        %v1255 = vpop.f32.mrb[0].mxu0
        %v1256 = vadd.f32 0.0, %v1255
        %1257 = vmatprep.mubr.f32.mxu0 0.0
        %1258 = vmatmul.mubr.f32.gmra.mrb[0].mxu0 %v1181
        %v1259 = vpop.f32.mrb[0].mxu0
        %v1260 = vadd.f32 0.0, %v1259
        %v1261 = vpop.f32.mrb[0].mxu0
        %v1262 = vadd.f32 0.0, %v1261
        %1263 = vmatprep.mubr.f32.mxu0 0.0
        %1264 = vmatmul.mubr.f32.gmra.mrb[0].mxu0 %v1183
        %v1265 = vpop.f32.mrb[0].mxu0
        %v1266 = vadd.f32 0.0, %v1265
        %v1267 = vpop.f32.mrb[0].mxu0
        %v1268 = vadd.f32 0.0, %v1267
        %1269 = vmatprep.mubr.f32.mxu0 0.0
        %1270 = vmatmul.mubr.f32.gmra.mrb[0].mxu0 %v1185
        %v1271 = vpop.f32.mrb[0].mxu0
        %v1272 = vadd.f32 0.0, %v1271
        %v1273 = vpop.f32.mrb[0].mxu0
        %v1274 = vadd.f32 0.0, %v1273
        %1275 = vdwg.mxu0
        %v1276 = vadd.f32 %v1154, %v1254
        %v1277 = vadd.f32 %v1155, %v1256
        %v1278 = vadd.f32 %v1156, %v1260
        %v1279 = vadd.f32 %v1157, %v1262
        %v1280 = vadd.f32 %v1158, %v1266
        %v1281 = vadd.f32 %v1159, %v1268
        %v1282 = vadd.f32 %v1160, %v1272
        %v1283 = vadd.f32 %v1161, %v1274
        %s1284 = scalar_lea.vmem %s1, 448
        %v1285 = vld [vmem:[%s1284] sm:$0xff]
        %v1286 = vld [vmem:[%s1284 + $0x8] sm:$0xff]
        %v1287 = vld [vmem:[%s1284 + $0x10] sm:$0xff]
        %v1288 = vld [vmem:[%s1284 + $0x18] sm:$0xff]
        %v1289 = vld [vmem:[%s1284 + $0x20] sm:$0xff]
        %v1290 = vld [vmem:[%s1284 + $0x28] sm:$0xff]
        %v1291 = vld [vmem:[%s1284 + $0x30] sm:$0xff]
        %v1292 = vld [vmem:[%s1284 + $0x38] sm:$0xff]
        %v1293 = vrot.slane %v452, 2
        %v1294 = vrot.slane %v453, 2
        %v1295 = vsel %vm1171, %v1293, %v1294
        %v1296 = vrot.slane %v454, 2
        %v1297 = vsel %vm1171, %v1294, %v1296
        %v1298 = vrot.slane %v455, 2
        %v1299 = vsel %vm1171, %v1296, %v1298
        %v1300 = vsel %vm477, %v1295, 0
        %v1302 = vsel %vm477, %v1297, 0
        %v1304 = vsel %vm477, %v1299, 0
        %v1306 = vsel %vm477, %v1298, 0
        %1308 = vmatprep.subr.mxu0 %v1286
        %1309 = vmatpush1.msra.mxu0 %v1285
        %1310 = vmatprep.subr.mxu0 %v1288
        %1311 = vmatpush1.msra.mxu0 %v1287
        %1312 = vmatprep.subr.mxu0 %v1290
        %1313 = vmatpush1.msra.mxu0 %v1289
        %1314 = vmatprep.subr.mxu0 %v1292
        %1315 = vmatpush1.msra.mxu0 %v1291
        %1316 = vmatprep.subr.mxu0 0.0
        %1317 = vmatpush1.msra.mxu0 0.0
        %1318 = vmatprep.subr.mxu0 0.0
        %1319 = vmatpush1.msra.mxu0 0.0
        %1320 = vmatprep.subr.mxu0 0.0
        %1321 = vmatpush1.msra.mxu0 0.0
        %1322 = vmatprep.subr.mxu0 0.0
        %1323 = vmatpush1.msra.mxu0 0.0
        %1324 = vmatprep.subr.mxu0 0.0
        %1325 = vmatpush1.msra.mxu0 0.0
        %1326 = vmatprep.subr.mxu0 0.0
        %1327 = vmatpush1.msra.mxu0 0.0
        %1328 = vmatprep.subr.mxu0 0.0
        %1329 = vmatpush1.msra.mxu0 0.0
        %1330 = vmatprep.subr.mxu0 0.0
        %1331 = vmatpush1.msra.mxu0 0.0
        %1332 = vmatprep.subr.mxu0 0.0
        %1333 = vmatpush1.msra.mxu0 0.0
        %1334 = vmatprep.subr.mxu0 0.0
        %1335 = vmatpush1.msra.mxu0 0.0
        %1336 = vmatprep.subr.mxu0 0.0
        %1337 = vmatpush1.msra.mxu0 0.0
        %1338 = vmatprep.subr.mxu0 0.0
        %1339 = vmatpush1.msra.mxu0 0.0
        %1340 = vmatprep.subr.mxu0 0.0
        %1341 = vmatpush1.msra.mxu0 0.0
        %1342 = vmatprep.subr.mxu0 0.0
        %1343 = vmatpush1.msra.mxu0 0.0
        %1344 = vmatprep.subr.mxu0 0.0
        %1345 = vmatpush1.msra.mxu0 0.0
        %1346 = vmatprep.subr.mxu0 0.0
        %1347 = vmatpush1.msra.mxu0 0.0
        %1348 = vmatprep.subr.mxu0 0.0
        %1349 = vmatpush1.msra.mxu0 0.0
        %1350 = vmatprep.subr.mxu0 0.0
        %1351 = vmatpush1.msra.mxu0 0.0
        %1352 = vmatprep.subr.mxu0 0.0
        %1353 = vmatpush1.msra.mxu0 0.0
        %1354 = vmatprep.subr.mxu0 0.0
        %1355 = vmatpush1.msra.mxu0 0.0
        %1356 = vmatprep.subr.mxu0 0.0
        %1357 = vmatpush1.msra.mxu0 0.0
        %1358 = vmatprep.subr.mxu0 0.0
        %1359 = vmatpush1.msra.mxu0 0.0
        %1360 = vmatprep.subr.mxu0 0.0
        %1361 = vmatpush1.msra.mxu0 0.0
        %1362 = vmatprep.subr.mxu0 0.0
        %1363 = vmatpush1.msra.mxu0 0.0
        %1364 = vmatprep.subr.mxu0 0.0
        %1365 = vmatpush1.msra.mxu0 0.0
        %1366 = vmatprep.subr.mxu0 0.0
        %1367 = vmatpush1.msra.mxu0 0.0
        %1368 = vmatprep.subr.mxu0 0.0
        %1369 = vmatpush1.msra.mxu0 0.0
        %1370 = vmatprep.subr.mxu0 0.0
        %1371 = vmatpush1.msra.mxu0 0.0
        %1372 = vmatprep.mubr.f32.mxu0 0.0
        %1373 = vmatmul.mubr.f32.gmra.mrb[0].mxu0 %v1300
        %v1374 = vpop.f32.mrb[0].mxu0
        %v1375 = vadd.f32 0.0, %v1374
        %v1376 = vpop.f32.mrb[0].mxu0
        %v1377 = vadd.f32 0.0, %v1376
        %1378 = vmatprep.mubr.f32.mxu0 0.0
        %1379 = vmatmul.mubr.f32.gmra.mrb[0].mxu0 %v1302
        %v1380 = vpop.f32.mrb[0].mxu0
        %v1381 = vadd.f32 0.0, %v1380
        %v1382 = vpop.f32.mrb[0].mxu0
        %v1383 = vadd.f32 0.0, %v1382
        %1384 = vmatprep.mubr.f32.mxu0 0.0
        %1385 = vmatmul.mubr.f32.gmra.mrb[0].mxu0 %v1304
        %v1386 = vpop.f32.mrb[0].mxu0
        %v1387 = vadd.f32 0.0, %v1386
        %v1388 = vpop.f32.mrb[0].mxu0
        %v1389 = vadd.f32 0.0, %v1388
        %1390 = vmatprep.mubr.f32.mxu0 0.0
        %1391 = vmatmul.mubr.f32.gmra.mrb[0].mxu0 %v1306
        %v1392 = vpop.f32.mrb[0].mxu0
        %v1393 = vadd.f32 0.0, %v1392
        %v1394 = vpop.f32.mrb[0].mxu0
        %v1395 = vadd.f32 0.0, %v1394
        %1396 = vdwg.mxu0
        %v1397 = vadd.f32 %v1276, %v1375
        %v1398 = vadd.f32 %v1277, %v1377
        %v1399 = vadd.f32 %v1278, %v1381
        %v1400 = vadd.f32 %v1279, %v1383
        %v1401 = vadd.f32 %v1280, %v1387
        %v1402 = vadd.f32 %v1281, %v1389
        %v1403 = vadd.f32 %v1282, %v1393
        %v1404 = vadd.f32 %v1283, %v1395
        %s1405 = scalar_lea.vmem %s1, 512
        %v1406 = vld [vmem:[%s1405] sm:$0xff]
        %v1407 = vld [vmem:[%s1405 + $0x8] sm:$0xff]
        %v1408 = vld [vmem:[%s1405 + $0x10] sm:$0xff]
        %v1409 = vld [vmem:[%s1405 + $0x18] sm:$0xff]
        %v1410 = vld [vmem:[%s1405 + $0x20] sm:$0xff]
        %v1411 = vld [vmem:[%s1405 + $0x28] sm:$0xff]
        %v1412 = vld [vmem:[%s1405 + $0x30] sm:$0xff]
        %v1413 = vld [vmem:[%s1405 + $0x38] sm:$0xff]
        %v1414 = vrot.slane %v456, 2
        %v1415 = vrot.slane %v457, 2
        %v1416 = vsel %vm1171, %v1414, %v1415
        %v1417 = vrot.slane %v458, 2
        %v1418 = vsel %vm1171, %v1415, %v1417
        %v1419 = vrot.slane %v459, 2
        %v1420 = vsel %vm1171, %v1417, %v1419
        %v1421 = vsel %vm477, %v1416, 0
        %v1423 = vsel %vm477, %v1418, 0
        %v1425 = vsel %vm477, %v1420, 0
        %v1427 = vsel %vm477, %v1419, 0
        %1429 = vmatprep.subr.mxu0 %v1407
        %1430 = vmatpush1.msra.mxu0 %v1406
        %1431 = vmatprep.subr.mxu0 %v1409
        %1432 = vmatpush1.msra.mxu0 %v1408
        %1433 = vmatprep.subr.mxu0 %v1411
        %1434 = vmatpush1.msra.mxu0 %v1410
        %1435 = vmatprep.subr.mxu0 %v1413
        %1436 = vmatpush1.msra.mxu0 %v1412
        %1437 = vmatprep.subr.mxu0 0.0
        %1438 = vmatpush1.msra.mxu0 0.0
        %1439 = vmatprep.subr.mxu0 0.0
        %1440 = vmatpush1.msra.mxu0 0.0
        %1441 = vmatprep.subr.mxu0 0.0
        %1442 = vmatpush1.msra.mxu0 0.0
        %1443 = vmatprep.subr.mxu0 0.0
        %1444 = vmatpush1.msra.mxu0 0.0
        %1445 = vmatprep.subr.mxu0 0.0
        %1446 = vmatpush1.msra.mxu0 0.0
        %1447 = vmatprep.subr.mxu0 0.0
        %1448 = vmatpush1.msra.mxu0 0.0
        %1449 = vmatprep.subr.mxu0 0.0
        %1450 = vmatpush1.msra.mxu0 0.0
        %1451 = vmatprep.subr.mxu0 0.0
        %1452 = vmatpush1.msra.mxu0 0.0
        %1453 = vmatprep.subr.mxu0 0.0
        %1454 = vmatpush1.msra.mxu0 0.0
        %1455 = vmatprep.subr.mxu0 0.0
        %1456 = vmatpush1.msra.mxu0 0.0
        %1457 = vmatprep.subr.mxu0 0.0
        %1458 = vmatpush1.msra.mxu0 0.0
        %1459 = vmatprep.subr.mxu0 0.0
        %1460 = vmatpush1.msra.mxu0 0.0
        %1461 = vmatprep.subr.mxu0 0.0
        %1462 = vmatpush1.msra.mxu0 0.0
        %1463 = vmatprep.subr.mxu0 0.0
        %1464 = vmatpush1.msra.mxu0 0.0
        %1465 = vmatprep.subr.mxu0 0.0
        %1466 = vmatpush1.msra.mxu0 0.0
        %1467 = vmatprep.subr.mxu0 0.0
        %1468 = vmatpush1.msra.mxu0 0.0
        %1469 = vmatprep.subr.mxu0 0.0
        %1470 = vmatpush1.msra.mxu0 0.0
        %1471 = vmatprep.subr.mxu0 0.0
        %1472 = vmatpush1.msra.mxu0 0.0
        %1473 = vmatprep.subr.mxu0 0.0
        %1474 = vmatpush1.msra.mxu0 0.0
        %1475 = vmatprep.subr.mxu0 0.0
        %1476 = vmatpush1.msra.mxu0 0.0
        %1477 = vmatprep.subr.mxu0 0.0
        %1478 = vmatpush1.msra.mxu0 0.0
        %1479 = vmatprep.subr.mxu0 0.0
        %1480 = vmatpush1.msra.mxu0 0.0
        %1481 = vmatprep.subr.mxu0 0.0
        %1482 = vmatpush1.msra.mxu0 0.0
        %1483 = vmatprep.subr.mxu0 0.0
        %1484 = vmatpush1.msra.mxu0 0.0
        %1485 = vmatprep.subr.mxu0 0.0
        %1486 = vmatpush1.msra.mxu0 0.0
        %1487 = vmatprep.subr.mxu0 0.0
        %1488 = vmatpush1.msra.mxu0 0.0
        %1489 = vmatprep.subr.mxu0 0.0
        %1490 = vmatpush1.msra.mxu0 0.0
        %1491 = vmatprep.subr.mxu0 0.0
        %1492 = vmatpush1.msra.mxu0 0.0
        %1493 = vmatprep.mubr.f32.mxu0 0.0
        %1494 = vmatmul.mubr.f32.gmra.mrb[0].mxu0 %v1421
        %v1495 = vpop.f32.mrb[0].mxu0
        %v1496 = vadd.f32 0.0, %v1495
        %v1497 = vpop.f32.mrb[0].mxu0
        %v1498 = vadd.f32 0.0, %v1497
        %1499 = vmatprep.mubr.f32.mxu0 0.0
        %1500 = vmatmul.mubr.f32.gmra.mrb[0].mxu0 %v1423
        %v1501 = vpop.f32.mrb[0].mxu0
        %v1502 = vadd.f32 0.0, %v1501
        %v1503 = vpop.f32.mrb[0].mxu0
        %v1504 = vadd.f32 0.0, %v1503
        %1505 = vmatprep.mubr.f32.mxu0 0.0
        %1506 = vmatmul.mubr.f32.gmra.mrb[0].mxu0 %v1425
        %v1507 = vpop.f32.mrb[0].mxu0
        %v1508 = vadd.f32 0.0, %v1507
        %v1509 = vpop.f32.mrb[0].mxu0
        %v1510 = vadd.f32 0.0, %v1509
        %1511 = vmatprep.mubr.f32.mxu0 0.0
        %1512 = vmatmul.mubr.f32.gmra.mrb[0].mxu0 %v1427
        %v1513 = vpop.f32.mrb[0].mxu0
        %v1514 = vadd.f32 0.0, %v1513
        %v1515 = vpop.f32.mrb[0].mxu0
        %v1516 = vadd.f32 0.0, %v1515
        %1517 = vdwg.mxu0
        %v1518 = vadd.f32 %v1397, %v1496
        %v1519 = vadd.f32 %v1398, %v1498
        %v1520 = vadd.f32 %v1399, %v1502
        %v1521 = vadd.f32 %v1400, %v1504
        %v1522 = vadd.f32 %v1401, %v1508
        %v1523 = vadd.f32 %v1402, %v1510
        %v1524 = vadd.f32 %v1403, %v1514
        %v1525 = vadd.f32 %v1404, %v1516
        %s1526 = scalar_lea.vmem %s1, 576
        %v1527 = vld [vmem:[%s1526] sm:$0xff]
        %v1528 = vld [vmem:[%s1526 + $0x8] sm:$0xff]
        %v1529 = vld [vmem:[%s1526 + $0x10] sm:$0xff]
        %v1530 = vld [vmem:[%s1526 + $0x18] sm:$0xff]
        %v1531 = vld [vmem:[%s1526 + $0x20] sm:$0xff]
        %v1532 = vld [vmem:[%s1526 + $0x28] sm:$0xff]
        %v1533 = vld [vmem:[%s1526 + $0x30] sm:$0xff]
        %v1534 = vld [vmem:[%s1526 + $0x38] sm:$0xff]
        %vm1535 = vcmask 1044480
        %v1536 = vrot.slane %v448, 3
        %v1537 = vrot.slane %v449, 3
        %v1538 = vsel %vm1535, %v1536, %v1537
        %v1539 = vrot.slane %v450, 3
        %v1540 = vsel %vm1535, %v1537, %v1539
        %v1541 = vrot.slane %v451, 3
        %v1542 = vsel %vm1535, %v1539, %v1541
        %v1543 = vsel %vm477, %v1538, 0
        %v1545 = vsel %vm477, %v1540, 0
        %v1547 = vsel %vm477, %v1542, 0
        %v1549 = vsel %vm477, %v1541, 0
        %1551 = vmatprep.subr.mxu0 %v1528
        %1552 = vmatpush1.msra.mxu0 %v1527
        %1553 = vmatprep.subr.mxu0 %v1530
        %1554 = vmatpush1.msra.mxu0 %v1529
        %1555 = vmatprep.subr.mxu0 %v1532
        %1556 = vmatpush1.msra.mxu0 %v1531
        %1557 = vmatprep.subr.mxu0 %v1534
        %1558 = vmatpush1.msra.mxu0 %v1533
        %1559 = vmatprep.subr.mxu0 0.0
        %1560 = vmatpush1.msra.mxu0 0.0
        %1561 = vmatprep.subr.mxu0 0.0
        %1562 = vmatpush1.msra.mxu0 0.0
        %1563 = vmatprep.subr.mxu0 0.0
        %1564 = vmatpush1.msra.mxu0 0.0
        %1565 = vmatprep.subr.mxu0 0.0
        %1566 = vmatpush1.msra.mxu0 0.0
        %1567 = vmatprep.subr.mxu0 0.0
        %1568 = vmatpush1.msra.mxu0 0.0
        %1569 = vmatprep.subr.mxu0 0.0
        %1570 = vmatpush1.msra.mxu0 0.0
        %1571 = vmatprep.subr.mxu0 0.0
        %1572 = vmatpush1.msra.mxu0 0.0
        %1573 = vmatprep.subr.mxu0 0.0
        %1574 = vmatpush1.msra.mxu0 0.0
        %1575 = vmatprep.subr.mxu0 0.0
        %1576 = vmatpush1.msra.mxu0 0.0
        %1577 = vmatprep.subr.mxu0 0.0
        %1578 = vmatpush1.msra.mxu0 0.0
        %1579 = vmatprep.subr.mxu0 0.0
        %1580 = vmatpush1.msra.mxu0 0.0
        %1581 = vmatprep.subr.mxu0 0.0
        %1582 = vmatpush1.msra.mxu0 0.0
        %1583 = vmatprep.subr.mxu0 0.0
        %1584 = vmatpush1.msra.mxu0 0.0
        %1585 = vmatprep.subr.mxu0 0.0
        %1586 = vmatpush1.msra.mxu0 0.0
        %1587 = vmatprep.subr.mxu0 0.0
        %1588 = vmatpush1.msra.mxu0 0.0
        %1589 = vmatprep.subr.mxu0 0.0
        %1590 = vmatpush1.msra.mxu0 0.0
        %1591 = vmatprep.subr.mxu0 0.0
        %1592 = vmatpush1.msra.mxu0 0.0
        %1593 = vmatprep.subr.mxu0 0.0
        %1594 = vmatpush1.msra.mxu0 0.0
        %1595 = vmatprep.subr.mxu0 0.0
        %1596 = vmatpush1.msra.mxu0 0.0
        %1597 = vmatprep.subr.mxu0 0.0
        %1598 = vmatpush1.msra.mxu0 0.0
        %1599 = vmatprep.subr.mxu0 0.0
        %1600 = vmatpush1.msra.mxu0 0.0
        %1601 = vmatprep.subr.mxu0 0.0
        %1602 = vmatpush1.msra.mxu0 0.0
        %1603 = vmatprep.subr.mxu0 0.0
        %1604 = vmatpush1.msra.mxu0 0.0
        %1605 = vmatprep.subr.mxu0 0.0
        %1606 = vmatpush1.msra.mxu0 0.0
        %1607 = vmatprep.subr.mxu0 0.0
        %1608 = vmatpush1.msra.mxu0 0.0
        %1609 = vmatprep.subr.mxu0 0.0
        %1610 = vmatpush1.msra.mxu0 0.0
        %1611 = vmatprep.subr.mxu0 0.0
        %1612 = vmatpush1.msra.mxu0 0.0
        %1613 = vmatprep.subr.mxu0 0.0
        %1614 = vmatpush1.msra.mxu0 0.0
        %1615 = vmatprep.mubr.f32.mxu0 0.0
        %1616 = vmatmul.mubr.f32.gmra.mrb[0].mxu0 %v1543
        %v1617 = vpop.f32.mrb[0].mxu0
        %v1618 = vadd.f32 0.0, %v1617
        %v1619 = vpop.f32.mrb[0].mxu0
        %v1620 = vadd.f32 0.0, %v1619
        %1621 = vmatprep.mubr.f32.mxu0 0.0
        %1622 = vmatmul.mubr.f32.gmra.mrb[0].mxu0 %v1545
        %v1623 = vpop.f32.mrb[0].mxu0
        %v1624 = vadd.f32 0.0, %v1623
        %v1625 = vpop.f32.mrb[0].mxu0
        %v1626 = vadd.f32 0.0, %v1625
        %1627 = vmatprep.mubr.f32.mxu0 0.0
        %1628 = vmatmul.mubr.f32.gmra.mrb[0].mxu0 %v1547
        %v1629 = vpop.f32.mrb[0].mxu0
        %v1630 = vadd.f32 0.0, %v1629
        %v1631 = vpop.f32.mrb[0].mxu0
        %v1632 = vadd.f32 0.0, %v1631
        %1633 = vmatprep.mubr.f32.mxu0 0.0
        %1634 = vmatmul.mubr.f32.gmra.mrb[0].mxu0 %v1549
        %v1635 = vpop.f32.mrb[0].mxu0
        %v1636 = vadd.f32 0.0, %v1635
        %v1637 = vpop.f32.mrb[0].mxu0
        %v1638 = vadd.f32 0.0, %v1637
        %1639 = vdwg.mxu0
        %v1640 = vadd.f32 %v1518, %v1618
        %v1641 = vadd.f32 %v1519, %v1620
        %v1642 = vadd.f32 %v1520, %v1624
        %v1643 = vadd.f32 %v1521, %v1626
        %v1644 = vadd.f32 %v1522, %v1630
        %v1645 = vadd.f32 %v1523, %v1632
        %v1646 = vadd.f32 %v1524, %v1636
        %v1647 = vadd.f32 %v1525, %v1638
        %s1648 = scalar_lea.vmem %s1, 640
        %v1649 = vld [vmem:[%s1648] sm:$0xff]
        %v1650 = vld [vmem:[%s1648 + $0x8] sm:$0xff]
        %v1651 = vld [vmem:[%s1648 + $0x10] sm:$0xff]
        %v1652 = vld [vmem:[%s1648 + $0x18] sm:$0xff]
        %v1653 = vld [vmem:[%s1648 + $0x20] sm:$0xff]
        %v1654 = vld [vmem:[%s1648 + $0x28] sm:$0xff]
        %v1655 = vld [vmem:[%s1648 + $0x30] sm:$0xff]
        %v1656 = vld [vmem:[%s1648 + $0x38] sm:$0xff]
        %v1657 = vrot.slane %v452, 3
        %v1658 = vrot.slane %v453, 3
        %v1659 = vsel %vm1535, %v1657, %v1658
        %v1660 = vrot.slane %v454, 3
        %v1661 = vsel %vm1535, %v1658, %v1660
        %v1662 = vrot.slane %v455, 3
        %v1663 = vsel %vm1535, %v1660, %v1662
        %v1664 = vsel %vm477, %v1659, 0
        %v1666 = vsel %vm477, %v1661, 0
        %v1668 = vsel %vm477, %v1663, 0
        %v1670 = vsel %vm477, %v1662, 0
        %1672 = vmatprep.subr.mxu0 %v1650
        %1673 = vmatpush1.msra.mxu0 %v1649
        %1674 = vmatprep.subr.mxu0 %v1652
        %1675 = vmatpush1.msra.mxu0 %v1651
        %1676 = vmatprep.subr.mxu0 %v1654
        %1677 = vmatpush1.msra.mxu0 %v1653
        %1678 = vmatprep.subr.mxu0 %v1656
        %1679 = vmatpush1.msra.mxu0 %v1655
        %1680 = vmatprep.subr.mxu0 0.0
        %1681 = vmatpush1.msra.mxu0 0.0
        %1682 = vmatprep.subr.mxu0 0.0
        %1683 = vmatpush1.msra.mxu0 0.0
        %1684 = vmatprep.subr.mxu0 0.0
        %1685 = vmatpush1.msra.mxu0 0.0
        %1686 = vmatprep.subr.mxu0 0.0
        %1687 = vmatpush1.msra.mxu0 0.0
        %1688 = vmatprep.subr.mxu0 0.0
        %1689 = vmatpush1.msra.mxu0 0.0
        %1690 = vmatprep.subr.mxu0 0.0
        %1691 = vmatpush1.msra.mxu0 0.0
        %1692 = vmatprep.subr.mxu0 0.0
        %1693 = vmatpush1.msra.mxu0 0.0
        %1694 = vmatprep.subr.mxu0 0.0
        %1695 = vmatpush1.msra.mxu0 0.0
        %1696 = vmatprep.subr.mxu0 0.0
        %1697 = vmatpush1.msra.mxu0 0.0
        %1698 = vmatprep.subr.mxu0 0.0
        %1699 = vmatpush1.msra.mxu0 0.0
        %1700 = vmatprep.subr.mxu0 0.0
        %1701 = vmatpush1.msra.mxu0 0.0
        %1702 = vmatprep.subr.mxu0 0.0
        %1703 = vmatpush1.msra.mxu0 0.0
        %1704 = vmatprep.subr.mxu0 0.0
        %1705 = vmatpush1.msra.mxu0 0.0
        %1706 = vmatprep.subr.mxu0 0.0
        %1707 = vmatpush1.msra.mxu0 0.0
        %1708 = vmatprep.subr.mxu0 0.0
        %1709 = vmatpush1.msra.mxu0 0.0
        %1710 = vmatprep.subr.mxu0 0.0
        %1711 = vmatpush1.msra.mxu0 0.0
        %1712 = vmatprep.subr.mxu0 0.0
        %1713 = vmatpush1.msra.mxu0 0.0
        %1714 = vmatprep.subr.mxu0 0.0
        %1715 = vmatpush1.msra.mxu0 0.0
        %1716 = vmatprep.subr.mxu0 0.0
        %1717 = vmatpush1.msra.mxu0 0.0
        %1718 = vmatprep.subr.mxu0 0.0
        %1719 = vmatpush1.msra.mxu0 0.0
        %1720 = vmatprep.subr.mxu0 0.0
        %1721 = vmatpush1.msra.mxu0 0.0
        %1722 = vmatprep.subr.mxu0 0.0
        %1723 = vmatpush1.msra.mxu0 0.0
        %1724 = vmatprep.subr.mxu0 0.0
        %1725 = vmatpush1.msra.mxu0 0.0
        %1726 = vmatprep.subr.mxu0 0.0
        %1727 = vmatpush1.msra.mxu0 0.0
        %1728 = vmatprep.subr.mxu0 0.0
        %1729 = vmatpush1.msra.mxu0 0.0
        %1730 = vmatprep.subr.mxu0 0.0
        %1731 = vmatpush1.msra.mxu0 0.0
        %1732 = vmatprep.subr.mxu0 0.0
        %1733 = vmatpush1.msra.mxu0 0.0
        %1734 = vmatprep.subr.mxu0 0.0
        %1735 = vmatpush1.msra.mxu0 0.0
        %1736 = vmatprep.mubr.f32.mxu0 0.0
        %1737 = vmatmul.mubr.f32.gmra.mrb[0].mxu0 %v1664
        %v1738 = vpop.f32.mrb[0].mxu0
        %v1739 = vadd.f32 0.0, %v1738
        %v1740 = vpop.f32.mrb[0].mxu0
        %v1741 = vadd.f32 0.0, %v1740
        %1742 = vmatprep.mubr.f32.mxu0 0.0
        %1743 = vmatmul.mubr.f32.gmra.mrb[0].mxu0 %v1666
        %v1744 = vpop.f32.mrb[0].mxu0
        %v1745 = vadd.f32 0.0, %v1744
        %v1746 = vpop.f32.mrb[0].mxu0
        %v1747 = vadd.f32 0.0, %v1746
        %1748 = vmatprep.mubr.f32.mxu0 0.0
        %1749 = vmatmul.mubr.f32.gmra.mrb[0].mxu0 %v1668
        %v1750 = vpop.f32.mrb[0].mxu0
        %v1751 = vadd.f32 0.0, %v1750
        %v1752 = vpop.f32.mrb[0].mxu0
        %v1753 = vadd.f32 0.0, %v1752
        %1754 = vmatprep.mubr.f32.mxu0 0.0
        %1755 = vmatmul.mubr.f32.gmra.mrb[0].mxu0 %v1670
        %v1756 = vpop.f32.mrb[0].mxu0
        %v1757 = vadd.f32 0.0, %v1756
        %v1758 = vpop.f32.mrb[0].mxu0
        %v1759 = vadd.f32 0.0, %v1758
        %1760 = vdwg.mxu0
        %v1761 = vadd.f32 %v1640, %v1739
        %v1762 = vadd.f32 %v1641, %v1741
        %v1763 = vadd.f32 %v1642, %v1745
        %v1764 = vadd.f32 %v1643, %v1747
        %v1765 = vadd.f32 %v1644, %v1751
        %v1766 = vadd.f32 %v1645, %v1753
        %v1767 = vadd.f32 %v1646, %v1757
        %v1768 = vadd.f32 %v1647, %v1759
        %s1769 = scalar_lea.vmem %s1, 704
        %v1770 = vld [vmem:[%s1769] sm:$0xff]
        %v1771 = vld [vmem:[%s1769 + $0x8] sm:$0xff]
        %v1772 = vld [vmem:[%s1769 + $0x10] sm:$0xff]
        %v1773 = vld [vmem:[%s1769 + $0x18] sm:$0xff]
        %v1774 = vld [vmem:[%s1769 + $0x20] sm:$0xff]
        %v1775 = vld [vmem:[%s1769 + $0x28] sm:$0xff]
        %v1776 = vld [vmem:[%s1769 + $0x30] sm:$0xff]
        %v1777 = vld [vmem:[%s1769 + $0x38] sm:$0xff]
        %v1778 = vrot.slane %v456, 3
        %v1779 = vrot.slane %v457, 3
        %v1780 = vsel %vm1535, %v1778, %v1779
        %v1781 = vrot.slane %v458, 3
        %v1782 = vsel %vm1535, %v1779, %v1781
        %v1783 = vrot.slane %v459, 3
        %v1784 = vsel %vm1535, %v1781, %v1783
        %v1785 = vsel %vm477, %v1780, 0
        %v1787 = vsel %vm477, %v1782, 0
        %v1789 = vsel %vm477, %v1784, 0
        %v1791 = vsel %vm477, %v1783, 0
        %1793 = vmatprep.subr.mxu0 %v1771
        %1794 = vmatpush1.msra.mxu0 %v1770
        %1795 = vmatprep.subr.mxu0 %v1773
        %1796 = vmatpush1.msra.mxu0 %v1772
        %1797 = vmatprep.subr.mxu0 %v1775
        %1798 = vmatpush1.msra.mxu0 %v1774
        %1799 = vmatprep.subr.mxu0 %v1777
        %1800 = vmatpush1.msra.mxu0 %v1776
        %1801 = vmatprep.subr.mxu0 0.0
        %1802 = vmatpush1.msra.mxu0 0.0
        %1803 = vmatprep.subr.mxu0 0.0
        %1804 = vmatpush1.msra.mxu0 0.0
        %1805 = vmatprep.subr.mxu0 0.0
        %1806 = vmatpush1.msra.mxu0 0.0
        %1807 = vmatprep.subr.mxu0 0.0
        %1808 = vmatpush1.msra.mxu0 0.0
        %1809 = vmatprep.subr.mxu0 0.0
        %1810 = vmatpush1.msra.mxu0 0.0
        %1811 = vmatprep.subr.mxu0 0.0
        %1812 = vmatpush1.msra.mxu0 0.0
        %1813 = vmatprep.subr.mxu0 0.0
        %1814 = vmatpush1.msra.mxu0 0.0
        %1815 = vmatprep.subr.mxu0 0.0
        %1816 = vmatpush1.msra.mxu0 0.0
        %1817 = vmatprep.subr.mxu0 0.0
        %1818 = vmatpush1.msra.mxu0 0.0
        %1819 = vmatprep.subr.mxu0 0.0
        %1820 = vmatpush1.msra.mxu0 0.0
        %1821 = vmatprep.subr.mxu0 0.0
        %1822 = vmatpush1.msra.mxu0 0.0
        %1823 = vmatprep.subr.mxu0 0.0
        %1824 = vmatpush1.msra.mxu0 0.0
        %1825 = vmatprep.subr.mxu0 0.0
        %1826 = vmatpush1.msra.mxu0 0.0
        %1827 = vmatprep.subr.mxu0 0.0
        %1828 = vmatpush1.msra.mxu0 0.0
        %1829 = vmatprep.subr.mxu0 0.0
        %1830 = vmatpush1.msra.mxu0 0.0
        %1831 = vmatprep.subr.mxu0 0.0
        %1832 = vmatpush1.msra.mxu0 0.0
        %1833 = vmatprep.subr.mxu0 0.0
        %1834 = vmatpush1.msra.mxu0 0.0
        %1835 = vmatprep.subr.mxu0 0.0
        %1836 = vmatpush1.msra.mxu0 0.0
        %1837 = vmatprep.subr.mxu0 0.0
        %1838 = vmatpush1.msra.mxu0 0.0
        %1839 = vmatprep.subr.mxu0 0.0
        %1840 = vmatpush1.msra.mxu0 0.0
        %1841 = vmatprep.subr.mxu0 0.0
        %1842 = vmatpush1.msra.mxu0 0.0
        %1843 = vmatprep.subr.mxu0 0.0
        %1844 = vmatpush1.msra.mxu0 0.0
        %1845 = vmatprep.subr.mxu0 0.0
        %1846 = vmatpush1.msra.mxu0 0.0
        %1847 = vmatprep.subr.mxu0 0.0
        %1848 = vmatpush1.msra.mxu0 0.0
        %1849 = vmatprep.subr.mxu0 0.0
        %1850 = vmatpush1.msra.mxu0 0.0
        %1851 = vmatprep.subr.mxu0 0.0
        %1852 = vmatpush1.msra.mxu0 0.0
        %1853 = vmatprep.subr.mxu0 0.0
        %1854 = vmatpush1.msra.mxu0 0.0
        %1855 = vmatprep.subr.mxu0 0.0
        %1856 = vmatpush1.msra.mxu0 0.0
        %1857 = vmatprep.mubr.f32.mxu0 0.0
        %1858 = vmatmul.mubr.f32.gmra.mrb[0].mxu0 %v1785
        %v1859 = vpop.f32.mrb[0].mxu0
        %v1860 = vadd.f32 0.0, %v1859
        %v1861 = vpop.f32.mrb[0].mxu0
        %v1862 = vadd.f32 0.0, %v1861
        %1863 = vmatprep.mubr.f32.mxu0 0.0
        %1864 = vmatmul.mubr.f32.gmra.mrb[0].mxu0 %v1787
        %v1865 = vpop.f32.mrb[0].mxu0
        %v1866 = vadd.f32 0.0, %v1865
        %v1867 = vpop.f32.mrb[0].mxu0
        %v1868 = vadd.f32 0.0, %v1867
        %1869 = vmatprep.mubr.f32.mxu0 0.0
        %1870 = vmatmul.mubr.f32.gmra.mrb[0].mxu0 %v1789
        %v1871 = vpop.f32.mrb[0].mxu0
        %v1872 = vadd.f32 0.0, %v1871
        %v1873 = vpop.f32.mrb[0].mxu0
        %v1874 = vadd.f32 0.0, %v1873
        %1875 = vmatprep.mubr.f32.mxu0 0.0
        %1876 = vmatmul.mubr.f32.gmra.mrb[0].mxu0 %v1791
        %v1877 = vpop.f32.mrb[0].mxu0
        %v1878 = vadd.f32 0.0, %v1877
        %v1879 = vpop.f32.mrb[0].mxu0
        %v1880 = vadd.f32 0.0, %v1879
        %1881 = vdwg.mxu0
        %v1882 = vadd.f32 %v1761, %v1860
        %v1883 = vadd.f32 %v1762, %v1862
        %v1884 = vadd.f32 %v1763, %v1866
        %v1885 = vadd.f32 %v1764, %v1868
        %v1886 = vadd.f32 %v1765, %v1872
        %v1887 = vadd.f32 %v1766, %v1874
        %v1888 = vadd.f32 %v1767, %v1878
        %v1889 = vadd.f32 %v1768, %v1880
        %s1890 = scalar_lea.vmem %s1, 768
        %v1891 = vld [vmem:[%s1890] sm:$0xff]
        %v1892 = vld [vmem:[%s1890 + $0x8] sm:$0xff]
        %v1893 = vld [vmem:[%s1890 + $0x10] sm:$0xff]
        %v1894 = vld [vmem:[%s1890 + $0x18] sm:$0xff]
        %v1895 = vld [vmem:[%s1890 + $0x20] sm:$0xff]
        %v1896 = vld [vmem:[%s1890 + $0x28] sm:$0xff]
        %v1897 = vld [vmem:[%s1890 + $0x30] sm:$0xff]
        %v1898 = vld [vmem:[%s1890 + $0x38] sm:$0xff]
        %vm1899 = vcmask 1043456
        %v1900 = vrot.slane %v448, 4
        %v1901 = vrot.slane %v449, 4
        %v1902 = vsel %vm1899, %v1900, %v1901
        %v1903 = vrot.slane %v450, 4
        %v1904 = vsel %vm1899, %v1901, %v1903
        %v1905 = vrot.slane %v451, 4
        %v1906 = vsel %vm1899, %v1903, %v1905
        %v1907 = vsel %vm477, %v1902, 0
        %v1909 = vsel %vm477, %v1904, 0
        %v1911 = vsel %vm477, %v1906, 0
        %v1913 = vsel %vm477, %v1905, 0
        %1915 = vmatprep.subr.mxu0 %v1892
        %1916 = vmatpush1.msra.mxu0 %v1891
        %1917 = vmatprep.subr.mxu0 %v1894
        %1918 = vmatpush1.msra.mxu0 %v1893
        %1919 = vmatprep.subr.mxu0 %v1896
        %1920 = vmatpush1.msra.mxu0 %v1895
        %1921 = vmatprep.subr.mxu0 %v1898
        %1922 = vmatpush1.msra.mxu0 %v1897
        %1923 = vmatprep.subr.mxu0 0.0
        %1924 = vmatpush1.msra.mxu0 0.0
        %1925 = vmatprep.subr.mxu0 0.0
        %1926 = vmatpush1.msra.mxu0 0.0
        %1927 = vmatprep.subr.mxu0 0.0
        %1928 = vmatpush1.msra.mxu0 0.0
        %1929 = vmatprep.subr.mxu0 0.0
        %1930 = vmatpush1.msra.mxu0 0.0
        %1931 = vmatprep.subr.mxu0 0.0
        %1932 = vmatpush1.msra.mxu0 0.0
        %1933 = vmatprep.subr.mxu0 0.0
        %1934 = vmatpush1.msra.mxu0 0.0
        %1935 = vmatprep.subr.mxu0 0.0
        %1936 = vmatpush1.msra.mxu0 0.0
        %1937 = vmatprep.subr.mxu0 0.0
        %1938 = vmatpush1.msra.mxu0 0.0
        %1939 = vmatprep.subr.mxu0 0.0
        %1940 = vmatpush1.msra.mxu0 0.0
        %1941 = vmatprep.subr.mxu0 0.0
        %1942 = vmatpush1.msra.mxu0 0.0
        %1943 = vmatprep.subr.mxu0 0.0
        %1944 = vmatpush1.msra.mxu0 0.0
        %1945 = vmatprep.subr.mxu0 0.0
        %1946 = vmatpush1.msra.mxu0 0.0
        %1947 = vmatprep.subr.mxu0 0.0
        %1948 = vmatpush1.msra.mxu0 0.0
        %1949 = vmatprep.subr.mxu0 0.0
        %1950 = vmatpush1.msra.mxu0 0.0
        %1951 = vmatprep.subr.mxu0 0.0
        %1952 = vmatpush1.msra.mxu0 0.0
        %1953 = vmatprep.subr.mxu0 0.0
        %1954 = vmatpush1.msra.mxu0 0.0
        %1955 = vmatprep.subr.mxu0 0.0
        %1956 = vmatpush1.msra.mxu0 0.0
        %1957 = vmatprep.subr.mxu0 0.0
        %1958 = vmatpush1.msra.mxu0 0.0
        %1959 = vmatprep.subr.mxu0 0.0
        %1960 = vmatpush1.msra.mxu0 0.0
        %1961 = vmatprep.subr.mxu0 0.0
        %1962 = vmatpush1.msra.mxu0 0.0
        %1963 = vmatprep.subr.mxu0 0.0
        %1964 = vmatpush1.msra.mxu0 0.0
        %1965 = vmatprep.subr.mxu0 0.0
        %1966 = vmatpush1.msra.mxu0 0.0
        %1967 = vmatprep.subr.mxu0 0.0
        %1968 = vmatpush1.msra.mxu0 0.0
        %1969 = vmatprep.subr.mxu0 0.0
        %1970 = vmatpush1.msra.mxu0 0.0
        %1971 = vmatprep.subr.mxu0 0.0
        %1972 = vmatpush1.msra.mxu0 0.0
        %1973 = vmatprep.subr.mxu0 0.0
        %1974 = vmatpush1.msra.mxu0 0.0
        %1975 = vmatprep.subr.mxu0 0.0
        %1976 = vmatpush1.msra.mxu0 0.0
        %1977 = vmatprep.subr.mxu0 0.0
        %1978 = vmatpush1.msra.mxu0 0.0
        %1979 = vmatprep.mubr.f32.mxu0 0.0
        %1980 = vmatmul.mubr.f32.gmra.mrb[0].mxu0 %v1907
        %v1981 = vpop.f32.mrb[0].mxu0
        %v1982 = vadd.f32 0.0, %v1981
        %v1983 = vpop.f32.mrb[0].mxu0
        %v1984 = vadd.f32 0.0, %v1983
        %1985 = vmatprep.mubr.f32.mxu0 0.0
        %1986 = vmatmul.mubr.f32.gmra.mrb[0].mxu0 %v1909
        %v1987 = vpop.f32.mrb[0].mxu0
        %v1988 = vadd.f32 0.0, %v1987
        %v1989 = vpop.f32.mrb[0].mxu0
        %v1990 = vadd.f32 0.0, %v1989
        %1991 = vmatprep.mubr.f32.mxu0 0.0
        %1992 = vmatmul.mubr.f32.gmra.mrb[0].mxu0 %v1911
        %v1993 = vpop.f32.mrb[0].mxu0
        %v1994 = vadd.f32 0.0, %v1993
        %v1995 = vpop.f32.mrb[0].mxu0
        %v1996 = vadd.f32 0.0, %v1995
        %1997 = vmatprep.mubr.f32.mxu0 0.0
        %1998 = vmatmul.mubr.f32.gmra.mrb[0].mxu0 %v1913
        %v1999 = vpop.f32.mrb[0].mxu0
        %v2000 = vadd.f32 0.0, %v1999
        %v2001 = vpop.f32.mrb[0].mxu0
        %v2002 = vadd.f32 0.0, %v2001
        %2003 = vdwg.mxu0
        %v2004 = vadd.f32 %v1882, %v1982
        %v2005 = vadd.f32 %v1883, %v1984
        %v2006 = vadd.f32 %v1884, %v1988
        %v2007 = vadd.f32 %v1885, %v1990
        %v2008 = vadd.f32 %v1886, %v1994
        %v2009 = vadd.f32 %v1887, %v1996
        %v2010 = vadd.f32 %v1888, %v2000
        %v2011 = vadd.f32 %v1889, %v2002
        %s2012 = scalar_lea.vmem %s1, 832
        %v2013 = vld [vmem:[%s2012] sm:$0xff]
        %v2014 = vld [vmem:[%s2012 + $0x8] sm:$0xff]
        %v2015 = vld [vmem:[%s2012 + $0x10] sm:$0xff]
        %v2016 = vld [vmem:[%s2012 + $0x18] sm:$0xff]
        %v2017 = vld [vmem:[%s2012 + $0x20] sm:$0xff]
        %v2018 = vld [vmem:[%s2012 + $0x28] sm:$0xff]
        %v2019 = vld [vmem:[%s2012 + $0x30] sm:$0xff]
        %v2020 = vld [vmem:[%s2012 + $0x38] sm:$0xff]
        %v2021 = vrot.slane %v452, 4
        %v2022 = vrot.slane %v453, 4
        %v2023 = vsel %vm1899, %v2021, %v2022
        %v2024 = vrot.slane %v454, 4
        %v2025 = vsel %vm1899, %v2022, %v2024
        %v2026 = vrot.slane %v455, 4
        %v2027 = vsel %vm1899, %v2024, %v2026
        %v2028 = vsel %vm477, %v2023, 0
        %v2030 = vsel %vm477, %v2025, 0
        %v2032 = vsel %vm477, %v2027, 0
        %v2034 = vsel %vm477, %v2026, 0
        %2036 = vmatprep.subr.mxu0 %v2014
        %2037 = vmatpush1.msra.mxu0 %v2013
        %2038 = vmatprep.subr.mxu0 %v2016
        %2039 = vmatpush1.msra.mxu0 %v2015
        %2040 = vmatprep.subr.mxu0 %v2018
        %2041 = vmatpush1.msra.mxu0 %v2017
        %2042 = vmatprep.subr.mxu0 %v2020
        %2043 = vmatpush1.msra.mxu0 %v2019
        %2044 = vmatprep.subr.mxu0 0.0
        %2045 = vmatpush1.msra.mxu0 0.0
        %2046 = vmatprep.subr.mxu0 0.0
        %2047 = vmatpush1.msra.mxu0 0.0
        %2048 = vmatprep.subr.mxu0 0.0
        %2049 = vmatpush1.msra.mxu0 0.0
        %2050 = vmatprep.subr.mxu0 0.0
        %2051 = vmatpush1.msra.mxu0 0.0
        %2052 = vmatprep.subr.mxu0 0.0
        %2053 = vmatpush1.msra.mxu0 0.0
        %2054 = vmatprep.subr.mxu0 0.0
        %2055 = vmatpush1.msra.mxu0 0.0
        %2056 = vmatprep.subr.mxu0 0.0
        %2057 = vmatpush1.msra.mxu0 0.0
        %2058 = vmatprep.subr.mxu0 0.0
        %2059 = vmatpush1.msra.mxu0 0.0
        %2060 = vmatprep.subr.mxu0 0.0
        %2061 = vmatpush1.msra.mxu0 0.0
        %2062 = vmatprep.subr.mxu0 0.0
        %2063 = vmatpush1.msra.mxu0 0.0
        %2064 = vmatprep.subr.mxu0 0.0
        %2065 = vmatpush1.msra.mxu0 0.0
        %2066 = vmatprep.subr.mxu0 0.0
        %2067 = vmatpush1.msra.mxu0 0.0
        %2068 = vmatprep.subr.mxu0 0.0
        %2069 = vmatpush1.msra.mxu0 0.0
        %2070 = vmatprep.subr.mxu0 0.0
        %2071 = vmatpush1.msra.mxu0 0.0
        %2072 = vmatprep.subr.mxu0 0.0
        %2073 = vmatpush1.msra.mxu0 0.0
        %2074 = vmatprep.subr.mxu0 0.0
        %2075 = vmatpush1.msra.mxu0 0.0
        %2076 = vmatprep.subr.mxu0 0.0
        %2077 = vmatpush1.msra.mxu0 0.0
        %2078 = vmatprep.subr.mxu0 0.0
        %2079 = vmatpush1.msra.mxu0 0.0
        %2080 = vmatprep.subr.mxu0 0.0
        %2081 = vmatpush1.msra.mxu0 0.0
        %2082 = vmatprep.subr.mxu0 0.0
        %2083 = vmatpush1.msra.mxu0 0.0
        %2084 = vmatprep.subr.mxu0 0.0
        %2085 = vmatpush1.msra.mxu0 0.0
        %2086 = vmatprep.subr.mxu0 0.0
        %2087 = vmatpush1.msra.mxu0 0.0
        %2088 = vmatprep.subr.mxu0 0.0
        %2089 = vmatpush1.msra.mxu0 0.0
        %2090 = vmatprep.subr.mxu0 0.0
        %2091 = vmatpush1.msra.mxu0 0.0
        %2092 = vmatprep.subr.mxu0 0.0
        %2093 = vmatpush1.msra.mxu0 0.0
        %2094 = vmatprep.subr.mxu0 0.0
        %2095 = vmatpush1.msra.mxu0 0.0
        %2096 = vmatprep.subr.mxu0 0.0
        %2097 = vmatpush1.msra.mxu0 0.0
        %2098 = vmatprep.subr.mxu0 0.0
        %2099 = vmatpush1.msra.mxu0 0.0
        %2100 = vmatprep.mubr.f32.mxu0 0.0
        %2101 = vmatmul.mubr.f32.gmra.mrb[0].mxu0 %v2028
        %v2102 = vpop.f32.mrb[0].mxu0
        %v2103 = vadd.f32 0.0, %v2102
        %v2104 = vpop.f32.mrb[0].mxu0
        %v2105 = vadd.f32 0.0, %v2104
        %2106 = vmatprep.mubr.f32.mxu0 0.0
        %2107 = vmatmul.mubr.f32.gmra.mrb[0].mxu0 %v2030
        %v2108 = vpop.f32.mrb[0].mxu0
        %v2109 = vadd.f32 0.0, %v2108
        %v2110 = vpop.f32.mrb[0].mxu0
        %v2111 = vadd.f32 0.0, %v2110
        %2112 = vmatprep.mubr.f32.mxu0 0.0
        %2113 = vmatmul.mubr.f32.gmra.mrb[0].mxu0 %v2032
        %v2114 = vpop.f32.mrb[0].mxu0
        %v2115 = vadd.f32 0.0, %v2114
        %v2116 = vpop.f32.mrb[0].mxu0
        %v2117 = vadd.f32 0.0, %v2116
        %2118 = vmatprep.mubr.f32.mxu0 0.0
        %2119 = vmatmul.mubr.f32.gmra.mrb[0].mxu0 %v2034
        %v2120 = vpop.f32.mrb[0].mxu0
        %v2121 = vadd.f32 0.0, %v2120
        %v2122 = vpop.f32.mrb[0].mxu0
        %v2123 = vadd.f32 0.0, %v2122
        %2124 = vdwg.mxu0
        %v2125 = vadd.f32 %v2004, %v2103
        %v2126 = vadd.f32 %v2005, %v2105
        %v2127 = vadd.f32 %v2006, %v2109
        %v2128 = vadd.f32 %v2007, %v2111
        %v2129 = vadd.f32 %v2008, %v2115
        %v2130 = vadd.f32 %v2009, %v2117
        %v2131 = vadd.f32 %v2010, %v2121
        %v2132 = vadd.f32 %v2011, %v2123
        %s2133 = scalar_lea.vmem %s1, 896
        %v2134 = vld [vmem:[%s2133] sm:$0xff]
        %v2135 = vld [vmem:[%s2133 + $0x8] sm:$0xff]
        %v2136 = vld [vmem:[%s2133 + $0x10] sm:$0xff]
        %v2137 = vld [vmem:[%s2133 + $0x18] sm:$0xff]
        %v2138 = vld [vmem:[%s2133 + $0x20] sm:$0xff]
        %v2139 = vld [vmem:[%s2133 + $0x28] sm:$0xff]
        %v2140 = vld [vmem:[%s2133 + $0x30] sm:$0xff]
        %v2141 = vld [vmem:[%s2133 + $0x38] sm:$0xff]
        %v2142 = vrot.slane %v456, 4
        %v2143 = vrot.slane %v457, 4
        %v2144 = vsel %vm1899, %v2142, %v2143
        %v2145 = vrot.slane %v458, 4
        %v2146 = vsel %vm1899, %v2143, %v2145
        %v2147 = vrot.slane %v459, 4
        %v2148 = vsel %vm1899, %v2145, %v2147
        %v2149 = vsel %vm477, %v2144, 0
        %v2151 = vsel %vm477, %v2146, 0
        %v2153 = vsel %vm477, %v2148, 0
        %v2155 = vsel %vm477, %v2147, 0
        %2157 = vmatprep.subr.mxu0 %v2135
        %2158 = vmatpush1.msra.mxu0 %v2134
        %2159 = vmatprep.subr.mxu0 %v2137
        %2160 = vmatpush1.msra.mxu0 %v2136
        %2161 = vmatprep.subr.mxu0 %v2139
        %2162 = vmatpush1.msra.mxu0 %v2138
        %2163 = vmatprep.subr.mxu0 %v2141
        %2164 = vmatpush1.msra.mxu0 %v2140
        %2165 = vmatprep.subr.mxu0 0.0
        %2166 = vmatpush1.msra.mxu0 0.0
        %2167 = vmatprep.subr.mxu0 0.0
        %2168 = vmatpush1.msra.mxu0 0.0
        %2169 = vmatprep.subr.mxu0 0.0
        %2170 = vmatpush1.msra.mxu0 0.0
        %2171 = vmatprep.subr.mxu0 0.0
        %2172 = vmatpush1.msra.mxu0 0.0
        %2173 = vmatprep.subr.mxu0 0.0
        %2174 = vmatpush1.msra.mxu0 0.0
        %2175 = vmatprep.subr.mxu0 0.0
        %2176 = vmatpush1.msra.mxu0 0.0
        %2177 = vmatprep.subr.mxu0 0.0
        %2178 = vmatpush1.msra.mxu0 0.0
        %2179 = vmatprep.subr.mxu0 0.0
        %2180 = vmatpush1.msra.mxu0 0.0
        %2181 = vmatprep.subr.mxu0 0.0
        %2182 = vmatpush1.msra.mxu0 0.0
        %2183 = vmatprep.subr.mxu0 0.0
        %2184 = vmatpush1.msra.mxu0 0.0
        %2185 = vmatprep.subr.mxu0 0.0
        %2186 = vmatpush1.msra.mxu0 0.0
        %2187 = vmatprep.subr.mxu0 0.0
        %2188 = vmatpush1.msra.mxu0 0.0
        %2189 = vmatprep.subr.mxu0 0.0
        %2190 = vmatpush1.msra.mxu0 0.0
        %2191 = vmatprep.subr.mxu0 0.0
        %2192 = vmatpush1.msra.mxu0 0.0
        %2193 = vmatprep.subr.mxu0 0.0
        %2194 = vmatpush1.msra.mxu0 0.0
        %2195 = vmatprep.subr.mxu0 0.0
        %2196 = vmatpush1.msra.mxu0 0.0
        %2197 = vmatprep.subr.mxu0 0.0
        %2198 = vmatpush1.msra.mxu0 0.0
        %2199 = vmatprep.subr.mxu0 0.0
        %2200 = vmatpush1.msra.mxu0 0.0
        %2201 = vmatprep.subr.mxu0 0.0
        %2202 = vmatpush1.msra.mxu0 0.0
        %2203 = vmatprep.subr.mxu0 0.0
        %2204 = vmatpush1.msra.mxu0 0.0
        %2205 = vmatprep.subr.mxu0 0.0
        %2206 = vmatpush1.msra.mxu0 0.0
        %2207 = vmatprep.subr.mxu0 0.0
        %2208 = vmatpush1.msra.mxu0 0.0
        %2209 = vmatprep.subr.mxu0 0.0
        %2210 = vmatpush1.msra.mxu0 0.0
        %2211 = vmatprep.subr.mxu0 0.0
        %2212 = vmatpush1.msra.mxu0 0.0
        %2213 = vmatprep.subr.mxu0 0.0
        %2214 = vmatpush1.msra.mxu0 0.0
        %2215 = vmatprep.subr.mxu0 0.0
        %2216 = vmatpush1.msra.mxu0 0.0
        %2217 = vmatprep.subr.mxu0 0.0
        %2218 = vmatpush1.msra.mxu0 0.0
        %2219 = vmatprep.subr.mxu0 0.0
        %2220 = vmatpush1.msra.mxu0 0.0
        %2221 = vmatprep.mubr.f32.mxu0 0.0
        %2222 = vmatmul.mubr.f32.gmra.mrb[0].mxu0 %v2149
        %v2223 = vpop.f32.mrb[0].mxu0
        %v2224 = vadd.f32 0.0, %v2223
        %v2225 = vpop.f32.mrb[0].mxu0
        %v2226 = vadd.f32 0.0, %v2225
        %2227 = vmatprep.mubr.f32.mxu0 0.0
        %2228 = vmatmul.mubr.f32.gmra.mrb[0].mxu0 %v2151
        %v2229 = vpop.f32.mrb[0].mxu0
        %v2230 = vadd.f32 0.0, %v2229
        %v2231 = vpop.f32.mrb[0].mxu0
        %v2232 = vadd.f32 0.0, %v2231
        %2233 = vmatprep.mubr.f32.mxu0 0.0
        %2234 = vmatmul.mubr.f32.gmra.mrb[0].mxu0 %v2153
        %v2235 = vpop.f32.mrb[0].mxu0
        %v2236 = vadd.f32 0.0, %v2235
        %v2237 = vpop.f32.mrb[0].mxu0
        %v2238 = vadd.f32 0.0, %v2237
        %2239 = vmatprep.mubr.f32.mxu0 0.0
        %2240 = vmatmul.mubr.f32.gmra.mrb[0].mxu0 %v2155
        %v2241 = vpop.f32.mrb[0].mxu0
        %v2242 = vadd.f32 0.0, %v2241
        %v2243 = vpop.f32.mrb[0].mxu0
        %v2244 = vadd.f32 0.0, %v2243
        %2245 = vdwg.mxu0
        %v2246 = vadd.f32 %v2125, %v2224
        %v2247 = vadd.f32 %v2126, %v2226
        %v2248 = vadd.f32 %v2127, %v2230
        %v2249 = vadd.f32 %v2128, %v2232
        %v2250 = vadd.f32 %v2129, %v2236
        %v2251 = vadd.f32 %v2130, %v2238
        %v2252 = vadd.f32 %v2131, %v2242
        %v2253 = vadd.f32 %v2132, %v2244
        %v2254 = vld [vmem:[%s2] sm:$0x3]
        %v2256 = vlaneseq
        %v2257 = vshrl.u32 %v2256, 7
        %v2258 = vsub.s32 0, %v2257
        %v2259 = vrot.slane %v2254, %v2258
        %v2260 = vlaneseq
        %v2261 = vshrl.u32 %v2260, 7
        %v2262 = vsub.s32 1, %v2261
        %v2263 = vrot.slane %v2254, %v2262
        %v2266 = vadd.f32 %v2246, %v2259
        %v2267 = vadd.f32 %v2247, %v2263
        %v2268 = vadd.f32 %v2248, %v2259
        %v2269 = vadd.f32 %v2249, %v2263
        %v2270 = vadd.f32 %v2250, %v2259
        %v2271 = vadd.f32 %v2251, %v2263
        %v2272 = vadd.f32 %v2252, %v2259
        %v2273 = vadd.f32 %v2253, %v2263
        %v2274 = vmax.f32 %v2266, 0.0
        %v2275 = vmax.f32 %v2267, 0.0
        %v2276 = vmax.f32 %v2268, 0.0
        %v2277 = vmax.f32 %v2269, 0.0
        %v2278 = vmax.f32 %v2270, 0.0
        %v2279 = vmax.f32 %v2271, 0.0
        %v2280 = vmax.f32 %v2272, 0.0
        %v2281 = vmax.f32 %v2273, 0.0
        %2290 = vrot.lane.b32.xlu0 %v2274, 127
        %v2291 = vpop.permute.xlu0 %2290
        %2292 = vrot.lane.b32.xlu0 %v2275, 127
        %v2293 = vpop.permute.xlu0 %2292
        %2294 = vrot.lane.b32.xlu0 %v2276, 127
        %v2295 = vpop.permute.xlu0 %2294
        %2296 = vrot.lane.b32.xlu0 %v2277, 127
        %v2297 = vpop.permute.xlu0 %2296
        %2298 = vrot.lane.b32.xlu0 %v2278, 127
        %v2299 = vpop.permute.xlu0 %2298
        %2300 = vrot.lane.b32.xlu0 %v2279, 127
        %v2301 = vpop.permute.xlu0 %2300
        %2302 = vrot.lane.b32.xlu0 %v2280, 127
        %v2303 = vpop.permute.xlu0 %2302
        %2304 = vrot.lane.b32.xlu0 %v2281, 127
        %v2305 = vpop.permute.xlu0 %2304
        %vm2306 = vcmask 1039360
        %v2307 = vsel %vm2306, %v2291, %v2293
        %v2308 = vsel %vm2306, %v2295, %v2297
        %v2309 = vsel %vm2306, %v2299, %v2301
        %v2310 = vsel %vm2306, %v2303, %v2305
        %v2319 = vmax.f32 %v2274, %v2307
        %v2320 = vmax.f32 %v2275, %v2293
        %v2321 = vmax.f32 %v2276, %v2308
        %v2322 = vmax.f32 %v2277, %v2297
        %v2323 = vmax.f32 %v2278, %v2309
        %v2324 = vmax.f32 %v2279, %v2301
        %v2325 = vmax.f32 %v2280, %v2310
        %v2326 = vmax.f32 %v2281, %v2305
        %v2335 = vrot.slane %v2319, 1
        %v2336 = vrot.slane %v2321, 1
        %v2337 = vsel %vm807, %v2335, %v2336
        %v2338 = vrot.slane %v2320, 1
        %v2339 = vrot.slane %v2322, 1
        %v2340 = vsel %vm807, %v2338, %v2339
        %v2341 = vrot.slane %v2323, 1
        %v2342 = vsel %vm807, %v2336, %v2341
        %v2343 = vrot.slane %v2324, 1
        %v2344 = vsel %vm807, %v2339, %v2343
        %v2345 = vrot.slane %v2325, 1
        %v2346 = vsel %vm807, %v2341, %v2345
        %v2347 = vrot.slane %v2326, 1
        %v2348 = vsel %vm807, %v2343, %v2347
        %v2357 = vmax.f32 %v2319, %v2337
        %v2358 = vmax.f32 %v2320, %v2340
        %v2359 = vmax.f32 %v2321, %v2342
        %v2360 = vmax.f32 %v2322, %v2344
        %v2361 = vmax.f32 %v2323, %v2346
        %v2362 = vmax.f32 %v2324, %v2348
        %v2363 = vmax.f32 %v2325, %v2345
        %v2364 = vmax.f32 %v2326, %v2347
        %v2365 = vld [vmem:[%s3] sm:$0xff]
        %v2366 = vld [vmem:[%s3 + $0x8] sm:$0x3f]
        %vm2367 = vcmask 220160
        %v2369 = vsel %vm2367, %v2365, 0
        %v2372 = vsel %vm2367, %v2366, 0
        %vm2374 = vcmask 1042432
        %v2376 = vsel %vm2374, %v2363, 0
        %v2379 = vsel %vm2374, %v2364, 0
        %2381 = vmatprep.subr.mxu0 %v2358
        %2382 = vmatpush1.msra.mxu0 %v2357
        %2383 = vmatprep.subr.mxu0 %v2360
        %2384 = vmatpush1.msra.mxu0 %v2359
        %2385 = vmatprep.subr.mxu0 %v2362
        %2386 = vmatpush1.msra.mxu0 %v2361
        %2387 = vmatprep.subr.mxu0 %v2379
        %2388 = vmatpush1.msra.mxu0 %v2376
        %2389 = vmatprep.subr.mxu0 0.0
        %2390 = vmatpush1.msra.mxu0 0.0
        %2391 = vmatprep.subr.mxu0 0.0
        %2392 = vmatpush1.msra.mxu0 0.0
        %2393 = vmatprep.subr.mxu0 0.0
        %2394 = vmatpush1.msra.mxu0 0.0
        %2395 = vmatprep.subr.mxu0 0.0
        %2396 = vmatpush1.msra.mxu0 0.0
        %2397 = vmatprep.subr.mxu0 0.0
        %2398 = vmatpush1.msra.mxu0 0.0
        %2399 = vmatprep.subr.mxu0 0.0
        %2400 = vmatpush1.msra.mxu0 0.0
        %2401 = vmatprep.subr.mxu0 0.0
        %2402 = vmatpush1.msra.mxu0 0.0
        %2403 = vmatprep.subr.mxu0 0.0
        %2404 = vmatpush1.msra.mxu0 0.0
        %2405 = vmatprep.subr.mxu0 0.0
        %2406 = vmatpush1.msra.mxu0 0.0
        %2407 = vmatprep.subr.mxu0 0.0
        %2408 = vmatpush1.msra.mxu0 0.0
        %2409 = vmatprep.subr.mxu0 0.0
        %2410 = vmatpush1.msra.mxu0 0.0
        %2411 = vmatprep.subr.mxu0 0.0
        %2412 = vmatpush1.msra.mxu0 0.0
        %2413 = vmatprep.subr.mxu0 0.0
        %2414 = vmatpush1.msra.mxu0 0.0
        %2415 = vmatprep.subr.mxu0 0.0
        %2416 = vmatpush1.msra.mxu0 0.0
        %2417 = vmatprep.subr.mxu0 0.0
        %2418 = vmatpush1.msra.mxu0 0.0
        %2419 = vmatprep.subr.mxu0 0.0
        %2420 = vmatpush1.msra.mxu0 0.0
        %2421 = vmatprep.subr.mxu0 0.0
        %2422 = vmatpush1.msra.mxu0 0.0
        %2423 = vmatprep.subr.mxu0 0.0
        %2424 = vmatpush1.msra.mxu0 0.0
        %2425 = vmatprep.subr.mxu0 0.0
        %2426 = vmatpush1.msra.mxu0 0.0
        %2427 = vmatprep.subr.mxu0 0.0
        %2428 = vmatpush1.msra.mxu0 0.0
        %2429 = vmatprep.subr.mxu0 0.0
        %2430 = vmatpush1.msra.mxu0 0.0
        %2431 = vmatprep.subr.mxu0 0.0
        %2432 = vmatpush1.msra.mxu0 0.0
        %2433 = vmatprep.subr.mxu0 0.0
        %2434 = vmatpush1.msra.mxu0 0.0
        %2435 = vmatprep.subr.mxu0 0.0
        %2436 = vmatpush1.msra.mxu0 0.0
        %2437 = vmatprep.subr.mxu0 0.0
        %2438 = vmatpush1.msra.mxu0 0.0
        %2439 = vmatprep.subr.mxu0 0.0
        %2440 = vmatpush1.msra.mxu0 0.0
        %2441 = vmatprep.subr.mxu0 0.0
        %2442 = vmatpush1.msra.mxu0 0.0
        %2443 = vmatprep.subr.mxu0 0.0
        %2444 = vmatpush1.msra.mxu0 0.0
        %2445 = vmatprep.mubr.f32.mxu0 0.0
        %2446 = vmatmul.mubr.f32.gmra.mrb[0].mxu0 %v2369
        %v2447 = vpop.f32.mrb[0].mxu0
        %v2448 = vadd.f32 0.0, %v2447
        %v2449 = vpop.f32.mrb[0].mxu0
        %v2450 = vadd.f32 0.0, %v2449
        %2451 = vmatprep.mubr.f32.mxu0 0.0
        %2452 = vmatmul.mubr.f32.gmra.mrb[0].mxu0 %v2372
        %v2453 = vpop.f32.mrb[0].mxu0
        %v2454 = vadd.f32 0.0, %v2453
        %v2455 = vpop.f32.mrb[0].mxu0
        %v2456 = vadd.f32 0.0, %v2455
        %2457 = vdwg.mxu0
        %v2458 = vld [vmem:[%s4] sm:$0xff]
        %v2459 = vld [vmem:[%s4 + $0x8] sm:$0xff]
        %v2460 = vld [vmem:[%s4 + $0x10] sm:$0xff]
        %v2461 = vld [vmem:[%s4 + $0x18] sm:$0xff]
        %v2462 = vld [vmem:[%s4 + $0x20] sm:$0xff]
        %v2463 = vld [vmem:[%s4 + $0x28] sm:$0xff]
        %v2464 = vld [vmem:[%s4 + $0x30] sm:$0xff]
        %v2465 = vld [vmem:[%s4 + $0x38] sm:$0xff]
        %v2466 = vld [vmem:[%s4 + $0x40] sm:$0xff]
        %v2467 = vld [vmem:[%s4 + $0x48] sm:$0xff]
        %v2468 = vld [vmem:[%s4 + $0x50] sm:$0xff]
        %v2469 = vld [vmem:[%s4 + $0x58] sm:$0xff]
        %v2470 = vld [vmem:[%s4 + $0x60] sm:$0xff]
        %v2471 = vld [vmem:[%s4 + $0x68] sm:$0xff]
        %v2472 = vld [vmem:[%s4 + $0x70] sm:$0xff]
        %v2473 = vld [vmem:[%s4 + $0x78] sm:$0xff]
        %v2474 = vld [vmem:[%s4 + $0x80] sm:$0xff]
        %v2475 = vld [vmem:[%s4 + $0x88] sm:$0xff]
        %v2476 = vld [vmem:[%s4 + $0x90] sm:$0xff]
        %v2477 = vld [vmem:[%s4 + $0x98] sm:$0xff]
        %v2478 = vld [vmem:[%s4 + $0xa0] sm:$0xff]
        %v2479 = vld [vmem:[%s4 + $0xa8] sm:$0xff]
        %v2480 = vld [vmem:[%s4 + $0xb0] sm:$0xff]
        %v2481 = vld [vmem:[%s4 + $0xb8] sm:$0xff]
        %v2482 = vld [vmem:[%s4 + $0xc0] sm:$0xff]
        %v2483 = vld [vmem:[%s4 + $0xc8] sm:$0xff]
        %v2484 = vld [vmem:[%s4 + $0xd0] sm:$0xff]
        %v2485 = vld [vmem:[%s4 + $0xd8] sm:$0xff]
        %v2486 = vld [vmem:[%s4 + $0xe0] sm:$0xff]
        %v2487 = vld [vmem:[%s4 + $0xe8] sm:$0xff]
        %v2488 = vld [vmem:[%s4 + $0xf0] sm:$0xff]
        %v2489 = vld [vmem:[%s4 + $0xf8] sm:$0xff]
        %v2490 = vld [vmem:[%s4 + $0x100] sm:$0xff]
        %v2491 = vld [vmem:[%s4 + $0x108] sm:$0xff]
        %v2492 = vld [vmem:[%s4 + $0x110] sm:$0xff]
        %v2493 = vld [vmem:[%s4 + $0x118] sm:$0xff]
        %v2494 = vld [vmem:[%s4 + $0x120] sm:$0xff]
        %v2495 = vld [vmem:[%s4 + $0x128] sm:$0xff]
        %v2496 = vld [vmem:[%s4 + $0x130] sm:$0xff]
        %v2497 = vld [vmem:[%s4 + $0x138] sm:$0xff]
        %v2498 = vld [vmem:[%s4 + $0x140] sm:$0x7f]
        %v2499 = vld [vmem:[%s4 + $0x148] sm:$0x7f]
        %s2500 = scalar_lea.vmem %s4, 336
        %v2501 = vld [vmem:[%s2500] sm:$0xff]
        %v2502 = vld [vmem:[%s2500 + $0x8] sm:$0xff]
        %v2503 = vld [vmem:[%s2500 + $0x10] sm:$0xff]
        %v2504 = vld [vmem:[%s2500 + $0x18] sm:$0xff]
        %v2505 = vld [vmem:[%s2500 + $0x20] sm:$0xff]
        %v2506 = vld [vmem:[%s2500 + $0x28] sm:$0xff]
        %v2507 = vld [vmem:[%s2500 + $0x30] sm:$0xff]
        %v2508 = vld [vmem:[%s2500 + $0x38] sm:$0xff]
        %v2509 = vld [vmem:[%s2500 + $0x40] sm:$0xff]
        %v2510 = vld [vmem:[%s2500 + $0x48] sm:$0xff]
        %v2511 = vld [vmem:[%s2500 + $0x50] sm:$0xff]
        %v2512 = vld [vmem:[%s2500 + $0x58] sm:$0xff]
        %v2513 = vld [vmem:[%s2500 + $0x60] sm:$0xff]
        %v2514 = vld [vmem:[%s2500 + $0x68] sm:$0xff]
        %v2515 = vld [vmem:[%s2500 + $0x70] sm:$0xff]
        %v2516 = vld [vmem:[%s2500 + $0x78] sm:$0xff]
        %v2517 = vld [vmem:[%s2500 + $0x80] sm:$0xff]
        %v2518 = vld [vmem:[%s2500 + $0x88] sm:$0xff]
        %v2519 = vld [vmem:[%s2500 + $0x90] sm:$0xff]
        %v2520 = vld [vmem:[%s2500 + $0x98] sm:$0xff]
        %v2521 = vld [vmem:[%s2500 + $0xa0] sm:$0xff]
        %v2522 = vld [vmem:[%s2500 + $0xa8] sm:$0xff]
        %v2523 = vld [vmem:[%s2500 + $0xb0] sm:$0xff]
        %v2524 = vld [vmem:[%s2500 + $0xb8] sm:$0xff]
        %v2525 = vld [vmem:[%s2500 + $0xc0] sm:$0xff]
        %v2526 = vld [vmem:[%s2500 + $0xc8] sm:$0xff]
        %v2527 = vld [vmem:[%s2500 + $0xd0] sm:$0xff]
        %v2528 = vld [vmem:[%s2500 + $0xd8] sm:$0xff]
        %v2529 = vld [vmem:[%s2500 + $0xe0] sm:$0xff]
        %v2530 = vld [vmem:[%s2500 + $0xe8] sm:$0xff]
        %v2531 = vld [vmem:[%s2500 + $0xf0] sm:$0xff]
        %v2532 = vld [vmem:[%s2500 + $0xf8] sm:$0xff]
        %v2533 = vld [vmem:[%s2500 + $0x100] sm:$0xff]
        %v2534 = vld [vmem:[%s2500 + $0x108] sm:$0xff]
        %v2535 = vld [vmem:[%s2500 + $0x110] sm:$0xff]
        %v2536 = vld [vmem:[%s2500 + $0x118] sm:$0xff]
        %v2537 = vld [vmem:[%s2500 + $0x120] sm:$0xff]
        %v2538 = vld [vmem:[%s2500 + $0x128] sm:$0xff]
        %v2539 = vld [vmem:[%s2500 + $0x130] sm:$0xff]
        %v2540 = vld [vmem:[%s2500 + $0x138] sm:$0xff]
        %v2541 = vld [vmem:[%s2500 + $0x140] sm:$0x7f]
        %v2542 = vld [vmem:[%s2500 + $0x148] sm:$0x7f]
        %v2547 = vrot.slane %v2448, 1
        %v2548 = vrot.slane %v2454, 1
        %v2549 = vsel %vm807, %v2547, %v2548
        %v2550 = vrot.slane %v2450, 1
        %v2551 = vrot.slane %v2456, 1
        %v2552 = vsel %vm807, %v2550, %v2551
        %vm2555 = vcmask 318464
        %v2556 = vsel %vm2555, %v2552, 0
        %v2558 = vsel %vm2555, %v2551, 0
        %v2561 = vsel %vm807, %v2541, 0
        %v2564 = vsel %vm807, %v2542, 0
        %2566 = vmatprep.subr.mxu0 %v2502
        %2567 = vmatpush1.msra.mxu0 %v2501
        %2568 = vmatprep.subr.mxu0 %v2504
        %2569 = vmatpush1.msra.mxu0 %v2503
        %2570 = vmatprep.subr.mxu0 %v2506
        %2571 = vmatpush1.msra.mxu0 %v2505
        %2572 = vmatprep.subr.mxu0 %v2508
        %2573 = vmatpush1.msra.mxu0 %v2507
        %2574 = vmatprep.subr.mxu0 %v2510
        %2575 = vmatpush1.msra.mxu0 %v2509
        %2576 = vmatprep.subr.mxu0 %v2512
        %2577 = vmatpush1.msra.mxu0 %v2511
        %2578 = vmatprep.subr.mxu0 %v2514
        %2579 = vmatpush1.msra.mxu0 %v2513
        %2580 = vmatprep.subr.mxu0 %v2516
        %2581 = vmatpush1.msra.mxu0 %v2515
        %2582 = vmatprep.subr.mxu0 %v2518
        %2583 = vmatpush1.msra.mxu0 %v2517
        %2584 = vmatprep.subr.mxu0 %v2520
        %2585 = vmatpush1.msra.mxu0 %v2519
        %2586 = vmatprep.subr.mxu0 %v2522
        %2587 = vmatpush1.msra.mxu0 %v2521
        %2588 = vmatprep.subr.mxu0 %v2524
        %2589 = vmatpush1.msra.mxu0 %v2523
        %2590 = vmatprep.subr.mxu0 %v2526
        %2591 = vmatpush1.msra.mxu0 %v2525
        %2592 = vmatprep.subr.mxu0 %v2528
        %2593 = vmatpush1.msra.mxu0 %v2527
        %2594 = vmatprep.subr.mxu0 %v2530
        %2595 = vmatpush1.msra.mxu0 %v2529
        %2596 = vmatprep.subr.mxu0 %v2532
        %2597 = vmatpush1.msra.mxu0 %v2531
        %2598 = vmatprep.subr.mxu0 %v2534
        %2599 = vmatpush1.msra.mxu0 %v2533
        %2600 = vmatprep.subr.mxu0 %v2536
        %2601 = vmatpush1.msra.mxu0 %v2535
        %2602 = vmatprep.subr.mxu0 %v2538
        %2603 = vmatpush1.msra.mxu0 %v2537
        %2604 = vmatprep.subr.mxu0 %v2540
        %2605 = vmatpush1.msra.mxu0 %v2539
        %2606 = vmatprep.subr.mxu0 %v2564
        %2607 = vmatpush1.msra.mxu0 %v2561
        %2608 = vmatprep.subr.mxu0 0.0
        %2609 = vmatpush1.msra.mxu0 0.0
        %2610 = vmatprep.subr.mxu0 0.0
        %2611 = vmatpush1.msra.mxu0 0.0
        %2612 = vmatprep.subr.mxu0 0.0
        %2613 = vmatpush1.msra.mxu0 0.0
        %2614 = vmatprep.subr.mxu0 0.0
        %2615 = vmatpush1.msra.mxu0 0.0
        %2616 = vmatprep.subr.mxu0 0.0
        %2617 = vmatpush1.msra.mxu0 0.0
        %2618 = vmatprep.subr.mxu0 0.0
        %2619 = vmatpush1.msra.mxu0 0.0
        %2620 = vmatprep.subr.mxu0 0.0
        %2621 = vmatpush1.msra.mxu0 0.0
        %2622 = vmatprep.subr.mxu0 0.0
        %2623 = vmatpush1.msra.mxu0 0.0
        %2624 = vmatprep.subr.mxu0 0.0
        %2625 = vmatpush1.msra.mxu0 0.0
        %2626 = vmatprep.subr.mxu0 0.0
        %2627 = vmatpush1.msra.mxu0 0.0
        %2628 = vmatprep.subr.mxu0 0.0
        %2629 = vmatpush1.msra.mxu0 0.0
        %2630 = vmatprep.mubr.f32.mxu0 %v2556
        %2631 = vmatmul.mubr.f32.gmra.mrb[0].mxu0 %v2549
        %v2632 = vpop.f32.mrb[0].mxu0
        %v2633 = vadd.f32 0.0, %v2632
        %v2634 = vpop.f32.mrb[0].mxu0
        %v2635 = vadd.f32 0.0, %v2634
        %2636 = vmatprep.mubr.f32.mxu0 %v2558
        %2637 = vmatmul.mubr.f32.gmra.mrb[0].mxu0 %v2548
        %v2638 = vpop.f32.mrb[0].mxu0
        %v2639 = vadd.f32 0.0, %v2638
        %v2640 = vpop.f32.mrb[0].mxu0
        %v2641 = vadd.f32 0.0, %v2640
        %2642 = vdwg.mxu0
        %v2643 = vsel %vm2555, %v2450, 0
        %v2645 = vsel %vm2555, %v2456, 0
        %v2648 = vsel %vm807, %v2498, 0
        %v2651 = vsel %vm807, %v2499, 0
        %2653 = vmatprep.subr.mxu0 %v2459
        %2654 = vmatpush1.msra.mxu0 %v2458
        %2655 = vmatprep.subr.mxu0 %v2461
        %2656 = vmatpush1.msra.mxu0 %v2460
        %2657 = vmatprep.subr.mxu0 %v2463
        %2658 = vmatpush1.msra.mxu0 %v2462
        %2659 = vmatprep.subr.mxu0 %v2465
        %2660 = vmatpush1.msra.mxu0 %v2464
        %2661 = vmatprep.subr.mxu0 %v2467
        %2662 = vmatpush1.msra.mxu0 %v2466
        %2663 = vmatprep.subr.mxu0 %v2469
        %2664 = vmatpush1.msra.mxu0 %v2468
        %2665 = vmatprep.subr.mxu0 %v2471
        %2666 = vmatpush1.msra.mxu0 %v2470
        %2667 = vmatprep.subr.mxu0 %v2473
        %2668 = vmatpush1.msra.mxu0 %v2472
        %2669 = vmatprep.subr.mxu0 %v2475
        %2670 = vmatpush1.msra.mxu0 %v2474
        %2671 = vmatprep.subr.mxu0 %v2477
        %2672 = vmatpush1.msra.mxu0 %v2476
        %2673 = vmatprep.subr.mxu0 %v2479
        %2674 = vmatpush1.msra.mxu0 %v2478
        %2675 = vmatprep.subr.mxu0 %v2481
        %2676 = vmatpush1.msra.mxu0 %v2480
        %2677 = vmatprep.subr.mxu0 %v2483
        %2678 = vmatpush1.msra.mxu0 %v2482
        %2679 = vmatprep.subr.mxu0 %v2485
        %2680 = vmatpush1.msra.mxu0 %v2484
        %2681 = vmatprep.subr.mxu0 %v2487
        %2682 = vmatpush1.msra.mxu0 %v2486
        %2683 = vmatprep.subr.mxu0 %v2489
        %2684 = vmatpush1.msra.mxu0 %v2488
        %2685 = vmatprep.subr.mxu0 %v2491
        %2686 = vmatpush1.msra.mxu0 %v2490
        %2687 = vmatprep.subr.mxu0 %v2493
        %2688 = vmatpush1.msra.mxu0 %v2492
        %2689 = vmatprep.subr.mxu0 %v2495
        %2690 = vmatpush1.msra.mxu0 %v2494
        %2691 = vmatprep.subr.mxu0 %v2497
        %2692 = vmatpush1.msra.mxu0 %v2496
        %2693 = vmatprep.subr.mxu0 %v2651
        %2694 = vmatpush1.msra.mxu0 %v2648
        %2695 = vmatprep.subr.mxu0 0.0
        %2696 = vmatpush1.msra.mxu0 0.0
        %2697 = vmatprep.subr.mxu0 0.0
        %2698 = vmatpush1.msra.mxu0 0.0
        %2699 = vmatprep.subr.mxu0 0.0
        %2700 = vmatpush1.msra.mxu0 0.0
        %2701 = vmatprep.subr.mxu0 0.0
        %2702 = vmatpush1.msra.mxu0 0.0
        %2703 = vmatprep.subr.mxu0 0.0
        %2704 = vmatpush1.msra.mxu0 0.0
        %2705 = vmatprep.subr.mxu0 0.0
        %2706 = vmatpush1.msra.mxu0 0.0
        %2707 = vmatprep.subr.mxu0 0.0
        %2708 = vmatpush1.msra.mxu0 0.0
        %2709 = vmatprep.subr.mxu0 0.0
        %2710 = vmatpush1.msra.mxu0 0.0
        %2711 = vmatprep.subr.mxu0 0.0
        %2712 = vmatpush1.msra.mxu0 0.0
        %2713 = vmatprep.subr.mxu0 0.0
        %2714 = vmatpush1.msra.mxu0 0.0
        %2715 = vmatprep.subr.mxu0 0.0
        %2716 = vmatpush1.msra.mxu0 0.0
        %2717 = vmatprep.mubr.f32.mxu0 %v2643
        %2718 = vmatmul.mubr.f32.gmra.mrb[0].mxu0 %v2448
        %v2719 = vpop.f32.mrb[0].mxu0
        %v2720 = vadd.f32 %v2633, %v2719
        %v2721 = vpop.f32.mrb[0].mxu0
        %v2722 = vadd.f32 %v2635, %v2721
        %2723 = vmatprep.mubr.f32.mxu0 %v2645
        %2724 = vmatmul.mubr.f32.gmra.mrb[0].mxu0 %v2454
        %v2725 = vpop.f32.mrb[0].mxu0
        %v2726 = vadd.f32 %v2639, %v2725
        %v2727 = vpop.f32.mrb[0].mxu0
        %v2728 = vadd.f32 %v2641, %v2727
        %2729 = vdwg.mxu0
        %s2730 = scalar_lea.vmem %s4, 672
        %v2731 = vld [vmem:[%s2730] sm:$0xff]
        %v2732 = vld [vmem:[%s2730 + $0x8] sm:$0xff]
        %v2733 = vld [vmem:[%s2730 + $0x10] sm:$0xff]
        %v2734 = vld [vmem:[%s2730 + $0x18] sm:$0xff]
        %v2735 = vld [vmem:[%s2730 + $0x20] sm:$0xff]
        %v2736 = vld [vmem:[%s2730 + $0x28] sm:$0xff]
        %v2737 = vld [vmem:[%s2730 + $0x30] sm:$0xff]
        %v2738 = vld [vmem:[%s2730 + $0x38] sm:$0xff]
        %v2739 = vld [vmem:[%s2730 + $0x40] sm:$0xff]
        %v2740 = vld [vmem:[%s2730 + $0x48] sm:$0xff]
        %v2741 = vld [vmem:[%s2730 + $0x50] sm:$0xff]
        %v2742 = vld [vmem:[%s2730 + $0x58] sm:$0xff]
        %v2743 = vld [vmem:[%s2730 + $0x60] sm:$0xff]
        %v2744 = vld [vmem:[%s2730 + $0x68] sm:$0xff]
        %v2745 = vld [vmem:[%s2730 + $0x70] sm:$0xff]
        %v2746 = vld [vmem:[%s2730 + $0x78] sm:$0xff]
        %v2747 = vld [vmem:[%s2730 + $0x80] sm:$0xff]
        %v2748 = vld [vmem:[%s2730 + $0x88] sm:$0xff]
        %v2749 = vld [vmem:[%s2730 + $0x90] sm:$0xff]
        %v2750 = vld [vmem:[%s2730 + $0x98] sm:$0xff]
        %v2751 = vld [vmem:[%s2730 + $0xa0] sm:$0xff]
        %v2752 = vld [vmem:[%s2730 + $0xa8] sm:$0xff]
        %v2753 = vld [vmem:[%s2730 + $0xb0] sm:$0xff]
        %v2754 = vld [vmem:[%s2730 + $0xb8] sm:$0xff]
        %v2755 = vld [vmem:[%s2730 + $0xc0] sm:$0xff]
        %v2756 = vld [vmem:[%s2730 + $0xc8] sm:$0xff]
        %v2757 = vld [vmem:[%s2730 + $0xd0] sm:$0xff]
        %v2758 = vld [vmem:[%s2730 + $0xd8] sm:$0xff]
        %v2759 = vld [vmem:[%s2730 + $0xe0] sm:$0xff]
        %v2760 = vld [vmem:[%s2730 + $0xe8] sm:$0xff]
        %v2761 = vld [vmem:[%s2730 + $0xf0] sm:$0xff]
        %v2762 = vld [vmem:[%s2730 + $0xf8] sm:$0xff]
        %v2763 = vld [vmem:[%s2730 + $0x100] sm:$0xff]
        %v2764 = vld [vmem:[%s2730 + $0x108] sm:$0xff]
        %v2765 = vld [vmem:[%s2730 + $0x110] sm:$0xff]
        %v2766 = vld [vmem:[%s2730 + $0x118] sm:$0xff]
        %v2767 = vld [vmem:[%s2730 + $0x120] sm:$0xff]
        %v2768 = vld [vmem:[%s2730 + $0x128] sm:$0xff]
        %v2769 = vld [vmem:[%s2730 + $0x130] sm:$0xff]
        %v2770 = vld [vmem:[%s2730 + $0x138] sm:$0xff]
        %v2771 = vld [vmem:[%s2730 + $0x140] sm:$0x7f]
        %v2772 = vld [vmem:[%s2730 + $0x148] sm:$0x7f]
        %v2773 = vrot.slane %v2448, 2
        %v2774 = vrot.slane %v2454, 2
        %v2775 = vsel %vm1171, %v2773, %v2774
        %v2776 = vrot.slane %v2450, 2
        %v2777 = vrot.slane %v2456, 2
        %v2778 = vsel %vm1171, %v2776, %v2777
        %v2781 = vsel %vm2555, %v2778, 0
        %v2783 = vsel %vm2555, %v2777, 0
        %v2786 = vsel %vm807, %v2771, 0
        %v2789 = vsel %vm807, %v2772, 0
        %2791 = vmatprep.subr.mxu0 %v2732
        %2792 = vmatpush1.msra.mxu0 %v2731
        %2793 = vmatprep.subr.mxu0 %v2734
        %2794 = vmatpush1.msra.mxu0 %v2733
        %2795 = vmatprep.subr.mxu0 %v2736
        %2796 = vmatpush1.msra.mxu0 %v2735
        %2797 = vmatprep.subr.mxu0 %v2738
        %2798 = vmatpush1.msra.mxu0 %v2737
        %2799 = vmatprep.subr.mxu0 %v2740
        %2800 = vmatpush1.msra.mxu0 %v2739
        %2801 = vmatprep.subr.mxu0 %v2742
        %2802 = vmatpush1.msra.mxu0 %v2741
        %2803 = vmatprep.subr.mxu0 %v2744
        %2804 = vmatpush1.msra.mxu0 %v2743
        %2805 = vmatprep.subr.mxu0 %v2746
        %2806 = vmatpush1.msra.mxu0 %v2745
        %2807 = vmatprep.subr.mxu0 %v2748
        %2808 = vmatpush1.msra.mxu0 %v2747
        %2809 = vmatprep.subr.mxu0 %v2750
        %2810 = vmatpush1.msra.mxu0 %v2749
        %2811 = vmatprep.subr.mxu0 %v2752
        %2812 = vmatpush1.msra.mxu0 %v2751
        %2813 = vmatprep.subr.mxu0 %v2754
        %2814 = vmatpush1.msra.mxu0 %v2753
        %2815 = vmatprep.subr.mxu0 %v2756
        %2816 = vmatpush1.msra.mxu0 %v2755
        %2817 = vmatprep.subr.mxu0 %v2758
        %2818 = vmatpush1.msra.mxu0 %v2757
        %2819 = vmatprep.subr.mxu0 %v2760
        %2820 = vmatpush1.msra.mxu0 %v2759
        %2821 = vmatprep.subr.mxu0 %v2762
        %2822 = vmatpush1.msra.mxu0 %v2761
        %2823 = vmatprep.subr.mxu0 %v2764
        %2824 = vmatpush1.msra.mxu0 %v2763
        %2825 = vmatprep.subr.mxu0 %v2766
        %2826 = vmatpush1.msra.mxu0 %v2765
        %2827 = vmatprep.subr.mxu0 %v2768
        %2828 = vmatpush1.msra.mxu0 %v2767
        %2829 = vmatprep.subr.mxu0 %v2770
        %2830 = vmatpush1.msra.mxu0 %v2769
        %2831 = vmatprep.subr.mxu0 %v2789
        %2832 = vmatpush1.msra.mxu0 %v2786
        %2833 = vmatprep.subr.mxu0 0.0
        %2834 = vmatpush1.msra.mxu0 0.0
        %2835 = vmatprep.subr.mxu0 0.0
        %2836 = vmatpush1.msra.mxu0 0.0
        %2837 = vmatprep.subr.mxu0 0.0
        %2838 = vmatpush1.msra.mxu0 0.0
        %2839 = vmatprep.subr.mxu0 0.0
        %2840 = vmatpush1.msra.mxu0 0.0
        %2841 = vmatprep.subr.mxu0 0.0
        %2842 = vmatpush1.msra.mxu0 0.0
        %2843 = vmatprep.subr.mxu0 0.0
        %2844 = vmatpush1.msra.mxu0 0.0
        %2845 = vmatprep.subr.mxu0 0.0
        %2846 = vmatpush1.msra.mxu0 0.0
        %2847 = vmatprep.subr.mxu0 0.0
        %2848 = vmatpush1.msra.mxu0 0.0
        %2849 = vmatprep.subr.mxu0 0.0
        %2850 = vmatpush1.msra.mxu0 0.0
        %2851 = vmatprep.subr.mxu0 0.0
        %2852 = vmatpush1.msra.mxu0 0.0
        %2853 = vmatprep.subr.mxu0 0.0
        %2854 = vmatpush1.msra.mxu0 0.0
        %2855 = vmatprep.mubr.f32.mxu0 %v2781
        %2856 = vmatmul.mubr.f32.gmra.mrb[0].mxu0 %v2775
        %v2857 = vpop.f32.mrb[0].mxu0
        %v2858 = vadd.f32 0.0, %v2857
        %v2859 = vpop.f32.mrb[0].mxu0
        %v2860 = vadd.f32 0.0, %v2859
        %2861 = vmatprep.mubr.f32.mxu0 %v2783
        %2862 = vmatmul.mubr.f32.gmra.mrb[0].mxu0 %v2774
        %v2863 = vpop.f32.mrb[0].mxu0
        %v2864 = vadd.f32 0.0, %v2863
        %v2865 = vpop.f32.mrb[0].mxu0
        %v2866 = vadd.f32 0.0, %v2865
        %2867 = vdwg.mxu0
        %v2868 = vadd.f32 %v2720, %v2858
        %v2869 = vadd.f32 %v2722, %v2860
        %v2870 = vadd.f32 %v2726, %v2864
        %v2871 = vadd.f32 %v2728, %v2866
        %s2872 = scalar_lea.vmem %s4, 1008
        %v2873 = vld [vmem:[%s2872] sm:$0xff]
        %v2874 = vld [vmem:[%s2872 + $0x8] sm:$0xff]
        %v2875 = vld [vmem:[%s2872 + $0x10] sm:$0xff]
        %v2876 = vld [vmem:[%s2872 + $0x18] sm:$0xff]
        %v2877 = vld [vmem:[%s2872 + $0x20] sm:$0xff]
        %v2878 = vld [vmem:[%s2872 + $0x28] sm:$0xff]
        %v2879 = vld [vmem:[%s2872 + $0x30] sm:$0xff]
        %v2880 = vld [vmem:[%s2872 + $0x38] sm:$0xff]
        %v2881 = vld [vmem:[%s2872 + $0x40] sm:$0xff]
        %v2882 = vld [vmem:[%s2872 + $0x48] sm:$0xff]
        %v2883 = vld [vmem:[%s2872 + $0x50] sm:$0xff]
        %v2884 = vld [vmem:[%s2872 + $0x58] sm:$0xff]
        %v2885 = vld [vmem:[%s2872 + $0x60] sm:$0xff]
        %v2886 = vld [vmem:[%s2872 + $0x68] sm:$0xff]
        %v2887 = vld [vmem:[%s2872 + $0x70] sm:$0xff]
        %v2888 = vld [vmem:[%s2872 + $0x78] sm:$0xff]
        %v2889 = vld [vmem:[%s2872 + $0x80] sm:$0xff]
        %v2890 = vld [vmem:[%s2872 + $0x88] sm:$0xff]
        %v2891 = vld [vmem:[%s2872 + $0x90] sm:$0xff]
        %v2892 = vld [vmem:[%s2872 + $0x98] sm:$0xff]
        %v2893 = vld [vmem:[%s2872 + $0xa0] sm:$0xff]
        %v2894 = vld [vmem:[%s2872 + $0xa8] sm:$0xff]
        %v2895 = vld [vmem:[%s2872 + $0xb0] sm:$0xff]
        %v2896 = vld [vmem:[%s2872 + $0xb8] sm:$0xff]
        %v2897 = vld [vmem:[%s2872 + $0xc0] sm:$0xff]
        %v2898 = vld [vmem:[%s2872 + $0xc8] sm:$0xff]
        %v2899 = vld [vmem:[%s2872 + $0xd0] sm:$0xff]
        %v2900 = vld [vmem:[%s2872 + $0xd8] sm:$0xff]
        %v2901 = vld [vmem:[%s2872 + $0xe0] sm:$0xff]
        %v2902 = vld [vmem:[%s2872 + $0xe8] sm:$0xff]
        %v2903 = vld [vmem:[%s2872 + $0xf0] sm:$0xff]
        %v2904 = vld [vmem:[%s2872 + $0xf8] sm:$0xff]
        %v2905 = vld [vmem:[%s2872 + $0x100] sm:$0xff]
        %v2906 = vld [vmem:[%s2872 + $0x108] sm:$0xff]
        %v2907 = vld [vmem:[%s2872 + $0x110] sm:$0xff]
        %v2908 = vld [vmem:[%s2872 + $0x118] sm:$0xff]
        %v2909 = vld [vmem:[%s2872 + $0x120] sm:$0xff]
        %v2910 = vld [vmem:[%s2872 + $0x128] sm:$0xff]
        %v2911 = vld [vmem:[%s2872 + $0x130] sm:$0xff]
        %v2912 = vld [vmem:[%s2872 + $0x138] sm:$0xff]
        %v2913 = vld [vmem:[%s2872 + $0x140] sm:$0x7f]
        %v2914 = vld [vmem:[%s2872 + $0x148] sm:$0x7f]
        %v2915 = vrot.slane %v2448, 3
        %v2916 = vrot.slane %v2454, 3
        %v2917 = vsel %vm1535, %v2915, %v2916
        %v2918 = vrot.slane %v2450, 3
        %v2919 = vrot.slane %v2456, 3
        %v2920 = vsel %vm1535, %v2918, %v2919
        %v2923 = vsel %vm2555, %v2920, 0
        %v2925 = vsel %vm2555, %v2919, 0
        %v2928 = vsel %vm807, %v2913, 0
        %v2931 = vsel %vm807, %v2914, 0
        %2933 = vmatprep.subr.mxu0 %v2874
        %2934 = vmatpush1.msra.mxu0 %v2873
        %2935 = vmatprep.subr.mxu0 %v2876
        %2936 = vmatpush1.msra.mxu0 %v2875
        %2937 = vmatprep.subr.mxu0 %v2878
        %2938 = vmatpush1.msra.mxu0 %v2877
        %2939 = vmatprep.subr.mxu0 %v2880
        %2940 = vmatpush1.msra.mxu0 %v2879
        %2941 = vmatprep.subr.mxu0 %v2882
        %2942 = vmatpush1.msra.mxu0 %v2881
        %2943 = vmatprep.subr.mxu0 %v2884
        %2944 = vmatpush1.msra.mxu0 %v2883
        %2945 = vmatprep.subr.mxu0 %v2886
        %2946 = vmatpush1.msra.mxu0 %v2885
        %2947 = vmatprep.subr.mxu0 %v2888
        %2948 = vmatpush1.msra.mxu0 %v2887
        %2949 = vmatprep.subr.mxu0 %v2890
        %2950 = vmatpush1.msra.mxu0 %v2889
        %2951 = vmatprep.subr.mxu0 %v2892
        %2952 = vmatpush1.msra.mxu0 %v2891
        %2953 = vmatprep.subr.mxu0 %v2894
        %2954 = vmatpush1.msra.mxu0 %v2893
        %2955 = vmatprep.subr.mxu0 %v2896
        %2956 = vmatpush1.msra.mxu0 %v2895
        %2957 = vmatprep.subr.mxu0 %v2898
        %2958 = vmatpush1.msra.mxu0 %v2897
        %2959 = vmatprep.subr.mxu0 %v2900
        %2960 = vmatpush1.msra.mxu0 %v2899
        %2961 = vmatprep.subr.mxu0 %v2902
        %2962 = vmatpush1.msra.mxu0 %v2901
        %2963 = vmatprep.subr.mxu0 %v2904
        %2964 = vmatpush1.msra.mxu0 %v2903
        %2965 = vmatprep.subr.mxu0 %v2906
        %2966 = vmatpush1.msra.mxu0 %v2905
        %2967 = vmatprep.subr.mxu0 %v2908
        %2968 = vmatpush1.msra.mxu0 %v2907
        %2969 = vmatprep.subr.mxu0 %v2910
        %2970 = vmatpush1.msra.mxu0 %v2909
        %2971 = vmatprep.subr.mxu0 %v2912
        %2972 = vmatpush1.msra.mxu0 %v2911
        %2973 = vmatprep.subr.mxu0 %v2931
        %2974 = vmatpush1.msra.mxu0 %v2928
        %2975 = vmatprep.subr.mxu0 0.0
        %2976 = vmatpush1.msra.mxu0 0.0
        %2977 = vmatprep.subr.mxu0 0.0
        %2978 = vmatpush1.msra.mxu0 0.0
        %2979 = vmatprep.subr.mxu0 0.0
        %2980 = vmatpush1.msra.mxu0 0.0
        %2981 = vmatprep.subr.mxu0 0.0
        %2982 = vmatpush1.msra.mxu0 0.0
        %2983 = vmatprep.subr.mxu0 0.0
        %2984 = vmatpush1.msra.mxu0 0.0
        %2985 = vmatprep.subr.mxu0 0.0
        %2986 = vmatpush1.msra.mxu0 0.0
        %2987 = vmatprep.subr.mxu0 0.0
        %2988 = vmatpush1.msra.mxu0 0.0
        %2989 = vmatprep.subr.mxu0 0.0
        %2990 = vmatpush1.msra.mxu0 0.0
        %2991 = vmatprep.subr.mxu0 0.0
        %2992 = vmatpush1.msra.mxu0 0.0
        %2993 = vmatprep.subr.mxu0 0.0
        %2994 = vmatpush1.msra.mxu0 0.0
        %2995 = vmatprep.subr.mxu0 0.0
        %2996 = vmatpush1.msra.mxu0 0.0
        %2997 = vmatprep.mubr.f32.mxu0 %v2923
        %2998 = vmatmul.mubr.f32.gmra.mrb[0].mxu0 %v2917
        %v2999 = vpop.f32.mrb[0].mxu0
        %v3000 = vadd.f32 0.0, %v2999
        %v3001 = vpop.f32.mrb[0].mxu0
        %v3002 = vadd.f32 0.0, %v3001
        %3003 = vmatprep.mubr.f32.mxu0 %v2925
        %3004 = vmatmul.mubr.f32.gmra.mrb[0].mxu0 %v2916
        %v3005 = vpop.f32.mrb[0].mxu0
        %v3006 = vadd.f32 0.0, %v3005
        %v3007 = vpop.f32.mrb[0].mxu0
        %v3008 = vadd.f32 0.0, %v3007
        %3009 = vdwg.mxu0
        %v3010 = vadd.f32 %v2868, %v3000
        %v3011 = vadd.f32 %v2869, %v3002
        %v3012 = vadd.f32 %v2870, %v3006
        %v3013 = vadd.f32 %v2871, %v3008
        %s3014 = scalar_lea.vmem %s4, 1344
        %v3015 = vld [vmem:[%s3014] sm:$0xff]
        %v3016 = vld [vmem:[%s3014 + $0x8] sm:$0xff]
        %v3017 = vld [vmem:[%s3014 + $0x10] sm:$0xff]
        %v3018 = vld [vmem:[%s3014 + $0x18] sm:$0xff]
        %v3019 = vld [vmem:[%s3014 + $0x20] sm:$0xff]
        %v3020 = vld [vmem:[%s3014 + $0x28] sm:$0xff]
        %v3021 = vld [vmem:[%s3014 + $0x30] sm:$0xff]
        %v3022 = vld [vmem:[%s3014 + $0x38] sm:$0xff]
        %v3023 = vld [vmem:[%s3014 + $0x40] sm:$0xff]
        %v3024 = vld [vmem:[%s3014 + $0x48] sm:$0xff]
        %v3025 = vld [vmem:[%s3014 + $0x50] sm:$0xff]
        %v3026 = vld [vmem:[%s3014 + $0x58] sm:$0xff]
        %v3027 = vld [vmem:[%s3014 + $0x60] sm:$0xff]
        %v3028 = vld [vmem:[%s3014 + $0x68] sm:$0xff]
        %v3029 = vld [vmem:[%s3014 + $0x70] sm:$0xff]
        %v3030 = vld [vmem:[%s3014 + $0x78] sm:$0xff]
        %v3031 = vld [vmem:[%s3014 + $0x80] sm:$0xff]
        %v3032 = vld [vmem:[%s3014 + $0x88] sm:$0xff]
        %v3033 = vld [vmem:[%s3014 + $0x90] sm:$0xff]
        %v3034 = vld [vmem:[%s3014 + $0x98] sm:$0xff]
        %v3035 = vld [vmem:[%s3014 + $0xa0] sm:$0xff]
        %v3036 = vld [vmem:[%s3014 + $0xa8] sm:$0xff]
        %v3037 = vld [vmem:[%s3014 + $0xb0] sm:$0xff]
        %v3038 = vld [vmem:[%s3014 + $0xb8] sm:$0xff]
        %v3039 = vld [vmem:[%s3014 + $0xc0] sm:$0xff]
        %v3040 = vld [vmem:[%s3014 + $0xc8] sm:$0xff]
        %v3041 = vld [vmem:[%s3014 + $0xd0] sm:$0xff]
        %v3042 = vld [vmem:[%s3014 + $0xd8] sm:$0xff]
        %v3043 = vld [vmem:[%s3014 + $0xe0] sm:$0xff]
        %v3044 = vld [vmem:[%s3014 + $0xe8] sm:$0xff]
        %v3045 = vld [vmem:[%s3014 + $0xf0] sm:$0xff]
        %v3046 = vld [vmem:[%s3014 + $0xf8] sm:$0xff]
        %v3047 = vld [vmem:[%s3014 + $0x100] sm:$0xff]
        %v3048 = vld [vmem:[%s3014 + $0x108] sm:$0xff]
        %v3049 = vld [vmem:[%s3014 + $0x110] sm:$0xff]
        %v3050 = vld [vmem:[%s3014 + $0x118] sm:$0xff]
        %v3051 = vld [vmem:[%s3014 + $0x120] sm:$0xff]
        %v3052 = vld [vmem:[%s3014 + $0x128] sm:$0xff]
        %v3053 = vld [vmem:[%s3014 + $0x130] sm:$0xff]
        %v3054 = vld [vmem:[%s3014 + $0x138] sm:$0xff]
        %v3055 = vld [vmem:[%s3014 + $0x140] sm:$0x7f]
        %v3056 = vld [vmem:[%s3014 + $0x148] sm:$0x7f]
        %v3057 = vrot.slane %v2448, 4
        %v3058 = vrot.slane %v2454, 4
        %v3059 = vsel %vm1899, %v3057, %v3058
        %v3060 = vrot.slane %v2450, 4
        %v3061 = vrot.slane %v2456, 4
        %v3062 = vsel %vm1899, %v3060, %v3061
        %v3065 = vsel %vm2555, %v3062, 0
        %v3067 = vsel %vm2555, %v3061, 0
        %v3070 = vsel %vm807, %v3055, 0
        %v3073 = vsel %vm807, %v3056, 0
        %3075 = vmatprep.subr.mxu0 %v3016
        %3076 = vmatpush1.msra.mxu0 %v3015
        %3077 = vmatprep.subr.mxu0 %v3018
        %3078 = vmatpush1.msra.mxu0 %v3017
        %3079 = vmatprep.subr.mxu0 %v3020
        %3080 = vmatpush1.msra.mxu0 %v3019
        %3081 = vmatprep.subr.mxu0 %v3022
        %3082 = vmatpush1.msra.mxu0 %v3021
        %3083 = vmatprep.subr.mxu0 %v3024
        %3084 = vmatpush1.msra.mxu0 %v3023
        %3085 = vmatprep.subr.mxu0 %v3026
        %3086 = vmatpush1.msra.mxu0 %v3025
        %3087 = vmatprep.subr.mxu0 %v3028
        %3088 = vmatpush1.msra.mxu0 %v3027
        %3089 = vmatprep.subr.mxu0 %v3030
        %3090 = vmatpush1.msra.mxu0 %v3029
        %3091 = vmatprep.subr.mxu0 %v3032
        %3092 = vmatpush1.msra.mxu0 %v3031
        %3093 = vmatprep.subr.mxu0 %v3034
        %3094 = vmatpush1.msra.mxu0 %v3033
        %3095 = vmatprep.subr.mxu0 %v3036
        %3096 = vmatpush1.msra.mxu0 %v3035
        %3097 = vmatprep.subr.mxu0 %v3038
        %3098 = vmatpush1.msra.mxu0 %v3037
        %3099 = vmatprep.subr.mxu0 %v3040
        %3100 = vmatpush1.msra.mxu0 %v3039
        %3101 = vmatprep.subr.mxu0 %v3042
        %3102 = vmatpush1.msra.mxu0 %v3041
        %3103 = vmatprep.subr.mxu0 %v3044
        %3104 = vmatpush1.msra.mxu0 %v3043
        %3105 = vmatprep.subr.mxu0 %v3046
        %3106 = vmatpush1.msra.mxu0 %v3045
        %3107 = vmatprep.subr.mxu0 %v3048
        %3108 = vmatpush1.msra.mxu0 %v3047
        %3109 = vmatprep.subr.mxu0 %v3050
        %3110 = vmatpush1.msra.mxu0 %v3049
        %3111 = vmatprep.subr.mxu0 %v3052
        %3112 = vmatpush1.msra.mxu0 %v3051
        %3113 = vmatprep.subr.mxu0 %v3054
        %3114 = vmatpush1.msra.mxu0 %v3053
        %3115 = vmatprep.subr.mxu0 %v3073
        %3116 = vmatpush1.msra.mxu0 %v3070
        %3117 = vmatprep.subr.mxu0 0.0
        %3118 = vmatpush1.msra.mxu0 0.0
        %3119 = vmatprep.subr.mxu0 0.0
        %3120 = vmatpush1.msra.mxu0 0.0
        %3121 = vmatprep.subr.mxu0 0.0
        %3122 = vmatpush1.msra.mxu0 0.0
        %3123 = vmatprep.subr.mxu0 0.0
        %3124 = vmatpush1.msra.mxu0 0.0
        %3125 = vmatprep.subr.mxu0 0.0
        %3126 = vmatpush1.msra.mxu0 0.0
        %3127 = vmatprep.subr.mxu0 0.0
        %3128 = vmatpush1.msra.mxu0 0.0
        %3129 = vmatprep.subr.mxu0 0.0
        %3130 = vmatpush1.msra.mxu0 0.0
        %3131 = vmatprep.subr.mxu0 0.0
        %3132 = vmatpush1.msra.mxu0 0.0
        %3133 = vmatprep.subr.mxu0 0.0
        %3134 = vmatpush1.msra.mxu0 0.0
        %3135 = vmatprep.subr.mxu0 0.0
        %3136 = vmatpush1.msra.mxu0 0.0
        %3137 = vmatprep.subr.mxu0 0.0
        %3138 = vmatpush1.msra.mxu0 0.0
        %3139 = vmatprep.mubr.f32.mxu0 %v3065
        %3140 = vmatmul.mubr.f32.gmra.mrb[0].mxu0 %v3059
        %v3141 = vpop.f32.mrb[0].mxu0
        %v3142 = vadd.f32 0.0, %v3141
        %v3143 = vpop.f32.mrb[0].mxu0
        %v3144 = vadd.f32 0.0, %v3143
        %3145 = vmatprep.mubr.f32.mxu0 %v3067
        %3146 = vmatmul.mubr.f32.gmra.mrb[0].mxu0 %v3058
        %v3147 = vpop.f32.mrb[0].mxu0
        %v3148 = vadd.f32 0.0, %v3147
        %v3149 = vpop.f32.mrb[0].mxu0
        %v3150 = vadd.f32 0.0, %v3149
        %3151 = vdwg.mxu0
        %v3152 = vadd.f32 %v3010, %v3142
        %v3153 = vadd.f32 %v3011, %v3144
        %v3154 = vadd.f32 %v3012, %v3148
        %v3155 = vadd.f32 %v3013, %v3150
        %v3156 = vld [vmem:[%s5] sm:$0x3]
        %v3158 = vlaneseq
        %v3159 = vshrl.u32 %v3158, 7
        %v3160 = vsub.s32 0, %v3159
        %v3161 = vrot.slane %v3156, %v3160
        %v3162 = vlaneseq
        %v3163 = vshrl.u32 %v3162, 7
        %v3164 = vsub.s32 1, %v3163
        %v3165 = vrot.slane %v3156, %v3164
        %v3168 = vadd.f32 %v3152, %v3161
        %v3169 = vadd.f32 %v3153, %v3165
        %v3170 = vadd.f32 %v3154, %v3161
        %v3171 = vadd.f32 %v3155, %v3165
        %v3172 = vmax.f32 %v3168, 0.0
        %v3173 = vmax.f32 %v3169, 0.0
        %v3174 = vmax.f32 %v3170, 0.0
        %v3175 = vmax.f32 %v3171, 0.0
        %3180 = vrot.lane.b32.xlu0 %v3172, 127
        %v3181 = vpop.permute.xlu0 %3180
        %3182 = vrot.lane.b32.xlu0 %v3173, 127
        %v3183 = vpop.permute.xlu0 %3182
        %3184 = vrot.lane.b32.xlu0 %v3174, 127
        %v3185 = vpop.permute.xlu0 %3184
        %3186 = vrot.lane.b32.xlu0 %v3175, 127
        %v3187 = vpop.permute.xlu0 %3186
        %v3188 = vsel %vm2306, %v3181, %v3183
        %v3189 = vsel %vm2306, %v3185, %v3187
        %v3194 = vmax.f32 %v3172, %v3188
        %v3195 = vmax.f32 %v3173, %v3183
        %v3196 = vmax.f32 %v3174, %v3189
        %v3197 = vmax.f32 %v3175, %v3187
        %v3202 = vrot.slane %v3194, 1
        %v3203 = vrot.slane %v3196, 1
        %v3204 = vsel %vm807, %v3202, %v3203
        %v3205 = vrot.slane %v3195, 1
        %v3206 = vrot.slane %v3197, 1
        %v3207 = vsel %vm807, %v3205, %v3206
        %v3212 = vmax.f32 %v3194, %v3204
        %v3213 = vmax.f32 %v3195, %v3207
        %v3214 = vmax.f32 %v3196, %v3203
        %v3215 = vmax.f32 %v3197, %v3206
        %v3216 = vld [vmem:[%s6] sm:$0xff]
        %v3217 = vld [vmem:[%s6 + $0x8] sm:$0xff]
        %v3218 = vld [vmem:[%s6 + $0x10] sm:$0xff]
        %v3219 = vld [vmem:[%s6 + $0x18] sm:$0xff]
        %v3220 = vld [vmem:[%s6 + $0x20] sm:$0xff]
        %v3221 = vld [vmem:[%s6 + $0x28] sm:$0xff]
        %v3222 = vld [vmem:[%s6 + $0x30] sm:$0xff]
        %v3223 = vld [vmem:[%s6 + $0x38] sm:$0xff]
        %v3224 = vld [vmem:[%s6 + $0x40] sm:$0xff]
        %v3225 = vld [vmem:[%s6 + $0x48] sm:$0xff]
        %v3226 = vld [vmem:[%s6 + $0x50] sm:$0xff]
        %v3227 = vld [vmem:[%s6 + $0x58] sm:$0xff]
        %v3228 = vld [vmem:[%s6 + $0x60] sm:$0xff]
        %v3229 = vld [vmem:[%s6 + $0x68] sm:$0xff]
        %v3230 = vld [vmem:[%s6 + $0x70] sm:$0xff]
        %v3231 = vld [vmem:[%s6 + $0x78] sm:$0xff]
        %v3232 = vld [vmem:[%s6 + $0x80] sm:$0xff]
        %v3233 = vld [vmem:[%s6 + $0x88] sm:$0xff]
        %v3234 = vld [vmem:[%s6 + $0x90] sm:$0xff]
        %v3235 = vld [vmem:[%s6 + $0x98] sm:$0x7f]
        %s3236 = scalar_lea.vmem %s6, 160
        %v3237 = vld [vmem:[%s3236] sm:$0xff]
        %v3238 = vld [vmem:[%s3236 + $0x8] sm:$0xff]
        %v3239 = vld [vmem:[%s3236 + $0x10] sm:$0xff]
        %v3240 = vld [vmem:[%s3236 + $0x18] sm:$0xff]
        %v3241 = vld [vmem:[%s3236 + $0x20] sm:$0xff]
        %v3242 = vld [vmem:[%s3236 + $0x28] sm:$0xff]
        %v3243 = vld [vmem:[%s3236 + $0x30] sm:$0xff]
        %v3244 = vld [vmem:[%s3236 + $0x38] sm:$0xff]
        %v3245 = vld [vmem:[%s3236 + $0x40] sm:$0xff]
        %v3246 = vld [vmem:[%s3236 + $0x48] sm:$0xff]
        %v3247 = vld [vmem:[%s3236 + $0x50] sm:$0xff]
        %v3248 = vld [vmem:[%s3236 + $0x58] sm:$0xff]
        %v3249 = vld [vmem:[%s3236 + $0x60] sm:$0xff]
        %v3250 = vld [vmem:[%s3236 + $0x68] sm:$0xff]
        %v3251 = vld [vmem:[%s3236 + $0x70] sm:$0xff]
        %v3252 = vld [vmem:[%s3236 + $0x78] sm:$0xff]
        %v3253 = vld [vmem:[%s3236 + $0x80] sm:$0xff]
        %v3254 = vld [vmem:[%s3236 + $0x88] sm:$0xff]
        %v3255 = vld [vmem:[%s3236 + $0x90] sm:$0xff]
        %v3256 = vld [vmem:[%s3236 + $0x98] sm:$0x7f]
        %v3259 = vrot.slane %v3212, 2
        %v3260 = vrot.slane %v3213, 2
        %vm3262 = vcmask 252928
        %v3263 = vsel %vm3262, %v3260, 0
        %v3266 = vsel %vm807, %v3256, 0
        %3268 = vmatprep.subr.mxu0 0.0
        %3269 = vmatpush1.msra.mxu0 %v3237
        %3270 = vmatprep.subr.mxu0 0.0
        %3271 = vmatpush1.msra.mxu0 %v3238
        %3272 = vmatprep.subr.mxu0 0.0
        %3273 = vmatpush1.msra.mxu0 %v3239
        %3274 = vmatprep.subr.mxu0 0.0
        %3275 = vmatpush1.msra.mxu0 %v3240
        %3276 = vmatprep.subr.mxu0 0.0
        %3277 = vmatpush1.msra.mxu0 %v3241
        %3278 = vmatprep.subr.mxu0 0.0
        %3279 = vmatpush1.msra.mxu0 %v3242
        %3280 = vmatprep.subr.mxu0 0.0
        %3281 = vmatpush1.msra.mxu0 %v3243
        %3282 = vmatprep.subr.mxu0 0.0
        %3283 = vmatpush1.msra.mxu0 %v3244
        %3284 = vmatprep.subr.mxu0 0.0
        %3285 = vmatpush1.msra.mxu0 %v3245
        %3286 = vmatprep.subr.mxu0 0.0
        %3287 = vmatpush1.msra.mxu0 %v3246
        %3288 = vmatprep.subr.mxu0 0.0
        %3289 = vmatpush1.msra.mxu0 %v3247
        %3290 = vmatprep.subr.mxu0 0.0
        %3291 = vmatpush1.msra.mxu0 %v3248
        %3292 = vmatprep.subr.mxu0 0.0
        %3293 = vmatpush1.msra.mxu0 %v3249
        %3294 = vmatprep.subr.mxu0 0.0
        %3295 = vmatpush1.msra.mxu0 %v3250
        %3296 = vmatprep.subr.mxu0 0.0
        %3297 = vmatpush1.msra.mxu0 %v3251
        %3298 = vmatprep.subr.mxu0 0.0
        %3299 = vmatpush1.msra.mxu0 %v3252
        %3300 = vmatprep.subr.mxu0 0.0
        %3301 = vmatpush1.msra.mxu0 %v3253
        %3302 = vmatprep.subr.mxu0 0.0
        %3303 = vmatpush1.msra.mxu0 %v3254
        %3304 = vmatprep.subr.mxu0 0.0
        %3305 = vmatpush1.msra.mxu0 %v3255
        %3306 = vmatprep.subr.mxu0 0.0
        %3307 = vmatpush1.msra.mxu0 %v3266
        %3308 = vmatprep.subr.mxu0 0.0
        %3309 = vmatpush1.msra.mxu0 0.0
        %3310 = vmatprep.subr.mxu0 0.0
        %3311 = vmatpush1.msra.mxu0 0.0
        %3312 = vmatprep.subr.mxu0 0.0
        %3313 = vmatpush1.msra.mxu0 0.0
        %3314 = vmatprep.subr.mxu0 0.0
        %3315 = vmatpush1.msra.mxu0 0.0
        %3316 = vmatprep.subr.mxu0 0.0
        %3317 = vmatpush1.msra.mxu0 0.0
        %3318 = vmatprep.subr.mxu0 0.0
        %3319 = vmatpush1.msra.mxu0 0.0
        %3320 = vmatprep.subr.mxu0 0.0
        %3321 = vmatpush1.msra.mxu0 0.0
        %3322 = vmatprep.subr.mxu0 0.0
        %3323 = vmatpush1.msra.mxu0 0.0
        %3324 = vmatprep.subr.mxu0 0.0
        %3325 = vmatpush1.msra.mxu0 0.0
        %3326 = vmatprep.subr.mxu0 0.0
        %3327 = vmatpush1.msra.mxu0 0.0
        %3328 = vmatprep.subr.mxu0 0.0
        %3329 = vmatpush1.msra.mxu0 0.0
        %3330 = vmatprep.subr.mxu0 0.0
        %3331 = vmatpush1.msra.mxu0 0.0
        %3332 = vmatprep.mubr.f32.mxu0 %v3263
        %3333 = vmatmul.mubr.f32.gmra.mrb[0].mxu0 %v3259
        %v3334 = vpop.f32.mrb[0].mxu0
        %v3335 = vadd.f32 0.0, %v3334
        %v3336 = vpop.f32.mrb[0].mxu0
        %3337 = vdwg.mxu0
        %v3338 = vsel %vm3262, %v3213, 0
        %v3341 = vsel %vm807, %v3235, 0
        %3343 = vmatprep.subr.mxu0 0.0
        %3344 = vmatpush1.msra.mxu0 %v3216
        %3345 = vmatprep.subr.mxu0 0.0
        %3346 = vmatpush1.msra.mxu0 %v3217
        %3347 = vmatprep.subr.mxu0 0.0
        %3348 = vmatpush1.msra.mxu0 %v3218
        %3349 = vmatprep.subr.mxu0 0.0
        %3350 = vmatpush1.msra.mxu0 %v3219
        %3351 = vmatprep.subr.mxu0 0.0
        %3352 = vmatpush1.msra.mxu0 %v3220
        %3353 = vmatprep.subr.mxu0 0.0
        %3354 = vmatpush1.msra.mxu0 %v3221
        %3355 = vmatprep.subr.mxu0 0.0
        %3356 = vmatpush1.msra.mxu0 %v3222
        %3357 = vmatprep.subr.mxu0 0.0
        %3358 = vmatpush1.msra.mxu0 %v3223
        %3359 = vmatprep.subr.mxu0 0.0
        %3360 = vmatpush1.msra.mxu0 %v3224
        %3361 = vmatprep.subr.mxu0 0.0
        %3362 = vmatpush1.msra.mxu0 %v3225
        %3363 = vmatprep.subr.mxu0 0.0
        %3364 = vmatpush1.msra.mxu0 %v3226
        %3365 = vmatprep.subr.mxu0 0.0
        %3366 = vmatpush1.msra.mxu0 %v3227
        %3367 = vmatprep.subr.mxu0 0.0
        %3368 = vmatpush1.msra.mxu0 %v3228
        %3369 = vmatprep.subr.mxu0 0.0
        %3370 = vmatpush1.msra.mxu0 %v3229
        %3371 = vmatprep.subr.mxu0 0.0
        %3372 = vmatpush1.msra.mxu0 %v3230
        %3373 = vmatprep.subr.mxu0 0.0
        %3374 = vmatpush1.msra.mxu0 %v3231
        %3375 = vmatprep.subr.mxu0 0.0
        %3376 = vmatpush1.msra.mxu0 %v3232
        %3377 = vmatprep.subr.mxu0 0.0
        %3378 = vmatpush1.msra.mxu0 %v3233
        %3379 = vmatprep.subr.mxu0 0.0
        %3380 = vmatpush1.msra.mxu0 %v3234
        %3381 = vmatprep.subr.mxu0 0.0
        %3382 = vmatpush1.msra.mxu0 %v3341
        %3383 = vmatprep.subr.mxu0 0.0
        %3384 = vmatpush1.msra.mxu0 0.0
        %3385 = vmatprep.subr.mxu0 0.0
        %3386 = vmatpush1.msra.mxu0 0.0
        %3387 = vmatprep.subr.mxu0 0.0
        %3388 = vmatpush1.msra.mxu0 0.0
        %3389 = vmatprep.subr.mxu0 0.0
        %3390 = vmatpush1.msra.mxu0 0.0
        %3391 = vmatprep.subr.mxu0 0.0
        %3392 = vmatpush1.msra.mxu0 0.0
        %3393 = vmatprep.subr.mxu0 0.0
        %3394 = vmatpush1.msra.mxu0 0.0
        %3395 = vmatprep.subr.mxu0 0.0
        %3396 = vmatpush1.msra.mxu0 0.0
        %3397 = vmatprep.subr.mxu0 0.0
        %3398 = vmatpush1.msra.mxu0 0.0
        %3399 = vmatprep.subr.mxu0 0.0
        %3400 = vmatpush1.msra.mxu0 0.0
        %3401 = vmatprep.subr.mxu0 0.0
        %3402 = vmatpush1.msra.mxu0 0.0
        %3403 = vmatprep.subr.mxu0 0.0
        %3404 = vmatpush1.msra.mxu0 0.0
        %3405 = vmatprep.subr.mxu0 0.0
        %3406 = vmatpush1.msra.mxu0 0.0
        %3407 = vmatprep.mubr.f32.mxu0 %v3338
        %3408 = vmatmul.mubr.f32.gmra.mrb[0].mxu0 %v3212
        %v3409 = vpop.f32.mrb[0].mxu0
        %v3410 = vadd.f32 %v3335, %v3409
        %v3411 = vpop.f32.mrb[0].mxu0
        %3412 = vdwg.mxu0
        %s3413 = scalar_lea.vmem %s6, 320
        %v3414 = vld [vmem:[%s3413] sm:$0xff]
        %v3415 = vld [vmem:[%s3413 + $0x8] sm:$0xff]
        %v3416 = vld [vmem:[%s3413 + $0x10] sm:$0xff]
        %v3417 = vld [vmem:[%s3413 + $0x18] sm:$0xff]
        %v3418 = vld [vmem:[%s3413 + $0x20] sm:$0xff]
        %v3419 = vld [vmem:[%s3413 + $0x28] sm:$0xff]
        %v3420 = vld [vmem:[%s3413 + $0x30] sm:$0xff]
        %v3421 = vld [vmem:[%s3413 + $0x38] sm:$0xff]
        %v3422 = vld [vmem:[%s3413 + $0x40] sm:$0xff]
        %v3423 = vld [vmem:[%s3413 + $0x48] sm:$0xff]
        %v3424 = vld [vmem:[%s3413 + $0x50] sm:$0xff]
        %v3425 = vld [vmem:[%s3413 + $0x58] sm:$0xff]
        %v3426 = vld [vmem:[%s3413 + $0x60] sm:$0xff]
        %v3427 = vld [vmem:[%s3413 + $0x68] sm:$0xff]
        %v3428 = vld [vmem:[%s3413 + $0x70] sm:$0xff]
        %v3429 = vld [vmem:[%s3413 + $0x78] sm:$0xff]
        %v3430 = vld [vmem:[%s3413 + $0x80] sm:$0xff]
        %v3431 = vld [vmem:[%s3413 + $0x88] sm:$0xff]
        %v3432 = vld [vmem:[%s3413 + $0x90] sm:$0xff]
        %v3433 = vld [vmem:[%s3413 + $0x98] sm:$0x7f]
        %v3434 = vrot.slane %v3212, 4
        %v3435 = vrot.slane %v3213, 4
        %v3437 = vsel %vm3262, %v3435, 0
        %v3440 = vsel %vm807, %v3433, 0
        %3442 = vmatprep.subr.mxu0 0.0
        %3443 = vmatpush1.msra.mxu0 %v3414
        %3444 = vmatprep.subr.mxu0 0.0
        %3445 = vmatpush1.msra.mxu0 %v3415
        %3446 = vmatprep.subr.mxu0 0.0
        %3447 = vmatpush1.msra.mxu0 %v3416
        %3448 = vmatprep.subr.mxu0 0.0
        %3449 = vmatpush1.msra.mxu0 %v3417
        %3450 = vmatprep.subr.mxu0 0.0
        %3451 = vmatpush1.msra.mxu0 %v3418
        %3452 = vmatprep.subr.mxu0 0.0
        %3453 = vmatpush1.msra.mxu0 %v3419
        %3454 = vmatprep.subr.mxu0 0.0
        %3455 = vmatpush1.msra.mxu0 %v3420
        %3456 = vmatprep.subr.mxu0 0.0
        %3457 = vmatpush1.msra.mxu0 %v3421
        %3458 = vmatprep.subr.mxu0 0.0
        %3459 = vmatpush1.msra.mxu0 %v3422
        %3460 = vmatprep.subr.mxu0 0.0
        %3461 = vmatpush1.msra.mxu0 %v3423
        %3462 = vmatprep.subr.mxu0 0.0
        %3463 = vmatpush1.msra.mxu0 %v3424
        %3464 = vmatprep.subr.mxu0 0.0
        %3465 = vmatpush1.msra.mxu0 %v3425
        %3466 = vmatprep.subr.mxu0 0.0
        %3467 = vmatpush1.msra.mxu0 %v3426
        %3468 = vmatprep.subr.mxu0 0.0
        %3469 = vmatpush1.msra.mxu0 %v3427
        %3470 = vmatprep.subr.mxu0 0.0
        %3471 = vmatpush1.msra.mxu0 %v3428
        %3472 = vmatprep.subr.mxu0 0.0
        %3473 = vmatpush1.msra.mxu0 %v3429
        %3474 = vmatprep.subr.mxu0 0.0
        %3475 = vmatpush1.msra.mxu0 %v3430
        %3476 = vmatprep.subr.mxu0 0.0
        %3477 = vmatpush1.msra.mxu0 %v3431
        %3478 = vmatprep.subr.mxu0 0.0
        %3479 = vmatpush1.msra.mxu0 %v3432
        %3480 = vmatprep.subr.mxu0 0.0
        %3481 = vmatpush1.msra.mxu0 %v3440
        %3482 = vmatprep.subr.mxu0 0.0
        %3483 = vmatpush1.msra.mxu0 0.0
        %3484 = vmatprep.subr.mxu0 0.0
        %3485 = vmatpush1.msra.mxu0 0.0
        %3486 = vmatprep.subr.mxu0 0.0
        %3487 = vmatpush1.msra.mxu0 0.0
        %3488 = vmatprep.subr.mxu0 0.0
        %3489 = vmatpush1.msra.mxu0 0.0
        %3490 = vmatprep.subr.mxu0 0.0
        %3491 = vmatpush1.msra.mxu0 0.0
        %3492 = vmatprep.subr.mxu0 0.0
        %3493 = vmatpush1.msra.mxu0 0.0
        %3494 = vmatprep.subr.mxu0 0.0
        %3495 = vmatpush1.msra.mxu0 0.0
        %3496 = vmatprep.subr.mxu0 0.0
        %3497 = vmatpush1.msra.mxu0 0.0
        %3498 = vmatprep.subr.mxu0 0.0
        %3499 = vmatpush1.msra.mxu0 0.0
        %3500 = vmatprep.subr.mxu0 0.0
        %3501 = vmatpush1.msra.mxu0 0.0
        %3502 = vmatprep.subr.mxu0 0.0
        %3503 = vmatpush1.msra.mxu0 0.0
        %3504 = vmatprep.subr.mxu0 0.0
        %3505 = vmatpush1.msra.mxu0 0.0
        %3506 = vmatprep.mubr.f32.mxu0 %v3437
        %3507 = vmatmul.mubr.f32.gmra.mrb[0].mxu0 %v3434
        %v3508 = vpop.f32.mrb[0].mxu0
        %v3509 = vadd.f32 0.0, %v3508
        %v3510 = vpop.f32.mrb[0].mxu0
        %3511 = vdwg.mxu0
        %v3512 = vadd.f32 %v3410, %v3509
        %s3513 = scalar_lea.vmem %s6, 480
        %v3514 = vld [vmem:[%s3513] sm:$0xff]
        %v3515 = vld [vmem:[%s3513 + $0x8] sm:$0xff]
        %v3516 = vld [vmem:[%s3513 + $0x10] sm:$0xff]
        %v3517 = vld [vmem:[%s3513 + $0x18] sm:$0xff]
        %v3518 = vld [vmem:[%s3513 + $0x20] sm:$0xff]
        %v3519 = vld [vmem:[%s3513 + $0x28] sm:$0xff]
        %v3520 = vld [vmem:[%s3513 + $0x30] sm:$0xff]
        %v3521 = vld [vmem:[%s3513 + $0x38] sm:$0xff]
        %v3522 = vld [vmem:[%s3513 + $0x40] sm:$0xff]
        %v3523 = vld [vmem:[%s3513 + $0x48] sm:$0xff]
        %v3524 = vld [vmem:[%s3513 + $0x50] sm:$0xff]
        %v3525 = vld [vmem:[%s3513 + $0x58] sm:$0xff]
        %v3526 = vld [vmem:[%s3513 + $0x60] sm:$0xff]
        %v3527 = vld [vmem:[%s3513 + $0x68] sm:$0xff]
        %v3528 = vld [vmem:[%s3513 + $0x70] sm:$0xff]
        %v3529 = vld [vmem:[%s3513 + $0x78] sm:$0xff]
        %v3530 = vld [vmem:[%s3513 + $0x80] sm:$0xff]
        %v3531 = vld [vmem:[%s3513 + $0x88] sm:$0xff]
        %v3532 = vld [vmem:[%s3513 + $0x90] sm:$0xff]
        %v3533 = vld [vmem:[%s3513 + $0x98] sm:$0x7f]
        %v3534 = vrot.slane %v3212, 6
        %v3535 = vrot.slane %v3213, 6
        %v3537 = vsel %vm3262, %v3535, 0
        %v3540 = vsel %vm807, %v3533, 0
        %3542 = vmatprep.subr.mxu0 0.0
        %3543 = vmatpush1.msra.mxu0 %v3514
        %3544 = vmatprep.subr.mxu0 0.0
        %3545 = vmatpush1.msra.mxu0 %v3515
        %3546 = vmatprep.subr.mxu0 0.0
        %3547 = vmatpush1.msra.mxu0 %v3516
        %3548 = vmatprep.subr.mxu0 0.0
        %3549 = vmatpush1.msra.mxu0 %v3517
        %3550 = vmatprep.subr.mxu0 0.0
        %3551 = vmatpush1.msra.mxu0 %v3518
        %3552 = vmatprep.subr.mxu0 0.0
        %3553 = vmatpush1.msra.mxu0 %v3519
        %3554 = vmatprep.subr.mxu0 0.0
        %3555 = vmatpush1.msra.mxu0 %v3520
        %3556 = vmatprep.subr.mxu0 0.0
        %3557 = vmatpush1.msra.mxu0 %v3521
        %3558 = vmatprep.subr.mxu0 0.0
        %3559 = vmatpush1.msra.mxu0 %v3522
        %3560 = vmatprep.subr.mxu0 0.0
        %3561 = vmatpush1.msra.mxu0 %v3523
        %3562 = vmatprep.subr.mxu0 0.0
        %3563 = vmatpush1.msra.mxu0 %v3524
        %3564 = vmatprep.subr.mxu0 0.0
        %3565 = vmatpush1.msra.mxu0 %v3525
        %3566 = vmatprep.subr.mxu0 0.0
        %3567 = vmatpush1.msra.mxu0 %v3526
        %3568 = vmatprep.subr.mxu0 0.0
        %3569 = vmatpush1.msra.mxu0 %v3527
        %3570 = vmatprep.subr.mxu0 0.0
        %3571 = vmatpush1.msra.mxu0 %v3528
        %3572 = vmatprep.subr.mxu0 0.0
        %3573 = vmatpush1.msra.mxu0 %v3529
        %3574 = vmatprep.subr.mxu0 0.0
        %3575 = vmatpush1.msra.mxu0 %v3530
        %3576 = vmatprep.subr.mxu0 0.0
        %3577 = vmatpush1.msra.mxu0 %v3531
        %3578 = vmatprep.subr.mxu0 0.0
        %3579 = vmatpush1.msra.mxu0 %v3532
        %3580 = vmatprep.subr.mxu0 0.0
        %3581 = vmatpush1.msra.mxu0 %v3540
        %3582 = vmatprep.subr.mxu0 0.0
        %3583 = vmatpush1.msra.mxu0 0.0
        %3584 = vmatprep.subr.mxu0 0.0
        %3585 = vmatpush1.msra.mxu0 0.0
        %3586 = vmatprep.subr.mxu0 0.0
        %3587 = vmatpush1.msra.mxu0 0.0
        %3588 = vmatprep.subr.mxu0 0.0
        %3589 = vmatpush1.msra.mxu0 0.0
        %3590 = vmatprep.subr.mxu0 0.0
        %3591 = vmatpush1.msra.mxu0 0.0
        %3592 = vmatprep.subr.mxu0 0.0
        %3593 = vmatpush1.msra.mxu0 0.0
        %3594 = vmatprep.subr.mxu0 0.0
        %3595 = vmatpush1.msra.mxu0 0.0
        %3596 = vmatprep.subr.mxu0 0.0
        %3597 = vmatpush1.msra.mxu0 0.0
        %3598 = vmatprep.subr.mxu0 0.0
        %3599 = vmatpush1.msra.mxu0 0.0
        %3600 = vmatprep.subr.mxu0 0.0
        %3601 = vmatpush1.msra.mxu0 0.0
        %3602 = vmatprep.subr.mxu0 0.0
        %3603 = vmatpush1.msra.mxu0 0.0
        %3604 = vmatprep.subr.mxu0 0.0
        %3605 = vmatpush1.msra.mxu0 0.0
        %3606 = vmatprep.mubr.f32.mxu0 %v3537
        %3607 = vmatmul.mubr.f32.gmra.mrb[0].mxu0 %v3534
        %v3608 = vpop.f32.mrb[0].mxu0
        %v3609 = vadd.f32 0.0, %v3608
        %v3610 = vpop.f32.mrb[0].mxu0
        %3611 = vdwg.mxu0
        %v3612 = vadd.f32 %v3512, %v3609
        %s3613 = scalar_lea.vmem %s6, 640
        %v3614 = vld [vmem:[%s3613] sm:$0xff]
        %v3615 = vld [vmem:[%s3613 + $0x8] sm:$0xff]
        %v3616 = vld [vmem:[%s3613 + $0x10] sm:$0xff]
        %v3617 = vld [vmem:[%s3613 + $0x18] sm:$0xff]
        %v3618 = vld [vmem:[%s3613 + $0x20] sm:$0xff]
        %v3619 = vld [vmem:[%s3613 + $0x28] sm:$0xff]
        %v3620 = vld [vmem:[%s3613 + $0x30] sm:$0xff]
        %v3621 = vld [vmem:[%s3613 + $0x38] sm:$0xff]
        %v3622 = vld [vmem:[%s3613 + $0x40] sm:$0xff]
        %v3623 = vld [vmem:[%s3613 + $0x48] sm:$0xff]
        %v3624 = vld [vmem:[%s3613 + $0x50] sm:$0xff]
        %v3625 = vld [vmem:[%s3613 + $0x58] sm:$0xff]
        %v3626 = vld [vmem:[%s3613 + $0x60] sm:$0xff]
        %v3627 = vld [vmem:[%s3613 + $0x68] sm:$0xff]
        %v3628 = vld [vmem:[%s3613 + $0x70] sm:$0xff]
        %v3629 = vld [vmem:[%s3613 + $0x78] sm:$0xff]
        %v3630 = vld [vmem:[%s3613 + $0x80] sm:$0xff]
        %v3631 = vld [vmem:[%s3613 + $0x88] sm:$0xff]
        %v3632 = vld [vmem:[%s3613 + $0x90] sm:$0xff]
        %v3633 = vld [vmem:[%s3613 + $0x98] sm:$0x7f]
        %v3635 = vsel %vm3262, %v3215, 0
        %v3638 = vsel %vm807, %v3633, 0
        %3640 = vmatprep.subr.mxu0 0.0
        %3641 = vmatpush1.msra.mxu0 %v3614
        %3642 = vmatprep.subr.mxu0 0.0
        %3643 = vmatpush1.msra.mxu0 %v3615
        %3644 = vmatprep.subr.mxu0 0.0
        %3645 = vmatpush1.msra.mxu0 %v3616
        %3646 = vmatprep.subr.mxu0 0.0
        %3647 = vmatpush1.msra.mxu0 %v3617
        %3648 = vmatprep.subr.mxu0 0.0
        %3649 = vmatpush1.msra.mxu0 %v3618
        %3650 = vmatprep.subr.mxu0 0.0
        %3651 = vmatpush1.msra.mxu0 %v3619
        %3652 = vmatprep.subr.mxu0 0.0
        %3653 = vmatpush1.msra.mxu0 %v3620
        %3654 = vmatprep.subr.mxu0 0.0
        %3655 = vmatpush1.msra.mxu0 %v3621
        %3656 = vmatprep.subr.mxu0 0.0
        %3657 = vmatpush1.msra.mxu0 %v3622
        %3658 = vmatprep.subr.mxu0 0.0
        %3659 = vmatpush1.msra.mxu0 %v3623
        %3660 = vmatprep.subr.mxu0 0.0
        %3661 = vmatpush1.msra.mxu0 %v3624
        %3662 = vmatprep.subr.mxu0 0.0
        %3663 = vmatpush1.msra.mxu0 %v3625
        %3664 = vmatprep.subr.mxu0 0.0
        %3665 = vmatpush1.msra.mxu0 %v3626
        %3666 = vmatprep.subr.mxu0 0.0
        %3667 = vmatpush1.msra.mxu0 %v3627
        %3668 = vmatprep.subr.mxu0 0.0
        %3669 = vmatpush1.msra.mxu0 %v3628
        %3670 = vmatprep.subr.mxu0 0.0
        %3671 = vmatpush1.msra.mxu0 %v3629
        %3672 = vmatprep.subr.mxu0 0.0
        %3673 = vmatpush1.msra.mxu0 %v3630
        %3674 = vmatprep.subr.mxu0 0.0
        %3675 = vmatpush1.msra.mxu0 %v3631
        %3676 = vmatprep.subr.mxu0 0.0
        %3677 = vmatpush1.msra.mxu0 %v3632
        %3678 = vmatprep.subr.mxu0 0.0
        %3679 = vmatpush1.msra.mxu0 %v3638
        %3680 = vmatprep.subr.mxu0 0.0
        %3681 = vmatpush1.msra.mxu0 0.0
        %3682 = vmatprep.subr.mxu0 0.0
        %3683 = vmatpush1.msra.mxu0 0.0
        %3684 = vmatprep.subr.mxu0 0.0
        %3685 = vmatpush1.msra.mxu0 0.0
        %3686 = vmatprep.subr.mxu0 0.0
        %3687 = vmatpush1.msra.mxu0 0.0
        %3688 = vmatprep.subr.mxu0 0.0
        %3689 = vmatpush1.msra.mxu0 0.0
        %3690 = vmatprep.subr.mxu0 0.0
        %3691 = vmatpush1.msra.mxu0 0.0
        %3692 = vmatprep.subr.mxu0 0.0
        %3693 = vmatpush1.msra.mxu0 0.0
        %3694 = vmatprep.subr.mxu0 0.0
        %3695 = vmatpush1.msra.mxu0 0.0
        %3696 = vmatprep.subr.mxu0 0.0
        %3697 = vmatpush1.msra.mxu0 0.0
        %3698 = vmatprep.subr.mxu0 0.0
        %3699 = vmatpush1.msra.mxu0 0.0
        %3700 = vmatprep.subr.mxu0 0.0
        %3701 = vmatpush1.msra.mxu0 0.0
        %3702 = vmatprep.subr.mxu0 0.0
        %3703 = vmatpush1.msra.mxu0 0.0
        %3704 = vmatprep.mubr.f32.mxu0 %v3635
        %3705 = vmatmul.mubr.f32.gmra.mrb[0].mxu0 %v3214
        %v3706 = vpop.f32.mrb[0].mxu0
        %v3707 = vadd.f32 0.0, %v3706
        %v3708 = vpop.f32.mrb[0].mxu0
        %3709 = vdwg.mxu0
        %v3710 = vadd.f32 %v3612, %v3707
        %v3711 = vld [vmem:[%s7] sm:$0x1]
        %v3712 = vadd.f32 %v3710, %v3711
        %v3713 = vmax.f32 %v3712, 0.0
        %v3714 = vld [vmem:[%s8] sm:$0xff]
        %v3715 = vld [vmem:[%s8 + $0x8] sm:$0xff]
        %v3716 = vld [vmem:[%s8 + $0x10] sm:$0xff]
        %v3717 = vld [vmem:[%s8 + $0x18] sm:$0xff]
        %v3718 = vld [vmem:[%s8 + $0x20] sm:$0xff]
        %v3719 = vld [vmem:[%s8 + $0x28] sm:$0xff]
        %v3720 = vld [vmem:[%s8 + $0x30] sm:$0xff]
        %v3721 = vld [vmem:[%s8 + $0x38] sm:$0xff]
        %v3722 = vld [vmem:[%s8 + $0x40] sm:$0xff]
        %v3723 = vld [vmem:[%s8 + $0x48] sm:$0xff]
        %v3724 = vld [vmem:[%s8 + $0x50] sm:$0xff]
        %v3725 = vld [vmem:[%s8 + $0x58] sm:$0xff]
        %v3726 = vld [vmem:[%s8 + $0x60] sm:$0xff]
        %v3727 = vld [vmem:[%s8 + $0x68] sm:$0xff]
        %v3728 = vld [vmem:[%s8 + $0x70] sm:$0xff]
        %v3729 = vld [vmem:[%s9] sm:$0x1]
        %vm3730 = vcmask 982016
        %v3732 = vsel %vm3730, %v3713, 0
        %3734 = vmatprep.subr.mxu0 0.0
        %3735 = vmatpush1.msra.mxu0 %v3714
        %3736 = vmatprep.subr.mxu0 0.0
        %3737 = vmatpush1.msra.mxu0 %v3715
        %3738 = vmatprep.subr.mxu0 0.0
        %3739 = vmatpush1.msra.mxu0 %v3716
        %3740 = vmatprep.subr.mxu0 0.0
        %3741 = vmatpush1.msra.mxu0 %v3717
        %3742 = vmatprep.subr.mxu0 0.0
        %3743 = vmatpush1.msra.mxu0 %v3718
        %3744 = vmatprep.subr.mxu0 0.0
        %3745 = vmatpush1.msra.mxu0 %v3719
        %3746 = vmatprep.subr.mxu0 0.0
        %3747 = vmatpush1.msra.mxu0 %v3720
        %3748 = vmatprep.subr.mxu0 0.0
        %3749 = vmatpush1.msra.mxu0 %v3721
        %3750 = vmatprep.subr.mxu0 0.0
        %3751 = vmatpush1.msra.mxu0 %v3722
        %3752 = vmatprep.subr.mxu0 0.0
        %3753 = vmatpush1.msra.mxu0 %v3723
        %3754 = vmatprep.subr.mxu0 0.0
        %3755 = vmatpush1.msra.mxu0 %v3724
        %3756 = vmatprep.subr.mxu0 0.0
        %3757 = vmatpush1.msra.mxu0 %v3725
        %3758 = vmatprep.subr.mxu0 0.0
        %3759 = vmatpush1.msra.mxu0 %v3726
        %3760 = vmatprep.subr.mxu0 0.0
        %3761 = vmatpush1.msra.mxu0 %v3727
        %3762 = vmatprep.subr.mxu0 0.0
        %3763 = vmatpush1.msra.mxu0 %v3728
        %3764 = vmatprep.subr.mxu0 0.0
        %3765 = vmatpush1.msra.mxu0 0.0
        %3766 = vmatprep.subr.mxu0 0.0
        %3767 = vmatpush1.msra.mxu0 0.0
        %3768 = vmatprep.subr.mxu0 0.0
        %3769 = vmatpush1.msra.mxu0 0.0
        %3770 = vmatprep.subr.mxu0 0.0
        %3771 = vmatpush1.msra.mxu0 0.0
        %3772 = vmatprep.subr.mxu0 0.0
        %3773 = vmatpush1.msra.mxu0 0.0
        %3774 = vmatprep.subr.mxu0 0.0
        %3775 = vmatpush1.msra.mxu0 0.0
        %3776 = vmatprep.subr.mxu0 0.0
        %3777 = vmatpush1.msra.mxu0 0.0
        %3778 = vmatprep.subr.mxu0 0.0
        %3779 = vmatpush1.msra.mxu0 0.0
        %3780 = vmatprep.subr.mxu0 0.0
        %3781 = vmatpush1.msra.mxu0 0.0
        %3782 = vmatprep.subr.mxu0 0.0
        %3783 = vmatpush1.msra.mxu0 0.0
        %3784 = vmatprep.subr.mxu0 0.0
        %3785 = vmatpush1.msra.mxu0 0.0
        %3786 = vmatprep.subr.mxu0 0.0
        %3787 = vmatpush1.msra.mxu0 0.0
        %3788 = vmatprep.subr.mxu0 0.0
        %3789 = vmatpush1.msra.mxu0 0.0
        %3790 = vmatprep.subr.mxu0 0.0
        %3791 = vmatpush1.msra.mxu0 0.0
        %3792 = vmatprep.subr.mxu0 0.0
        %3793 = vmatpush1.msra.mxu0 0.0
        %3794 = vmatprep.subr.mxu0 0.0
        %3795 = vmatpush1.msra.mxu0 0.0
        %3796 = vmatprep.subr.mxu0 0.0
        %3797 = vmatpush1.msra.mxu0 0.0
        %3798 = vmatprep.mubr.f32.mxu0 0.0
        %3799 = vmatmul.mubr.f32.gmra.mrb[0].mxu0 %v3732
        %v3800 = vpop.f32.mrb[0].mxu0
        %v3801 = vadd.f32 %v3729, %v3800
        %v3802 = vpop.f32.mrb[0].mxu0
        %3803 = vdwg.mxu0
        %v3804 = vmax.f32 %v3801, 0.0
        %v3805 = vld [vmem:[%s10] sm:$0xff]
        %v3806 = vld [vmem:[%s10 + $0x8] sm:$0xff]
        %v3807 = vld [vmem:[%s10 + $0x10] sm:$0xff]
        %v3808 = vld [vmem:[%s10 + $0x18] sm:$0xff]
        %v3809 = vld [vmem:[%s10 + $0x20] sm:$0xff]
        %v3810 = vld [vmem:[%s10 + $0x28] sm:$0xff]
        %v3811 = vld [vmem:[%s10 + $0x30] sm:$0xff]
        %v3812 = vld [vmem:[%s10 + $0x38] sm:$0xff]
        %v3813 = vld [vmem:[%s10 + $0x40] sm:$0xff]
        %v3814 = vld [vmem:[%s10 + $0x48] sm:$0xff]
        %v3815 = vld [vmem:[%s10 + $0x50] sm:$0xf]
        %v3816 = vld [vmem:[%s11] sm:$0x1]
        %vm3817 = vcmask 687104
        %v3819 = vsel %vm3817, %v3804, 0
        %v3822 = vsel %vm1899, %v3815, 0
        %3824 = vmatprep.subr.mxu0 0.0
        %3825 = vmatpush1.msra.mxu0 %v3805
        %3826 = vmatprep.subr.mxu0 0.0
        %3827 = vmatpush1.msra.mxu0 %v3806
        %3828 = vmatprep.subr.mxu0 0.0
        %3829 = vmatpush1.msra.mxu0 %v3807
        %3830 = vmatprep.subr.mxu0 0.0
        %3831 = vmatpush1.msra.mxu0 %v3808
        %3832 = vmatprep.subr.mxu0 0.0
        %3833 = vmatpush1.msra.mxu0 %v3809
        %3834 = vmatprep.subr.mxu0 0.0
        %3835 = vmatpush1.msra.mxu0 %v3810
        %3836 = vmatprep.subr.mxu0 0.0
        %3837 = vmatpush1.msra.mxu0 %v3811
        %3838 = vmatprep.subr.mxu0 0.0
        %3839 = vmatpush1.msra.mxu0 %v3812
        %3840 = vmatprep.subr.mxu0 0.0
        %3841 = vmatpush1.msra.mxu0 %v3813
        %3842 = vmatprep.subr.mxu0 0.0
        %3843 = vmatpush1.msra.mxu0 %v3814
        %3844 = vmatprep.subr.mxu0 0.0
        %3845 = vmatpush1.msra.mxu0 %v3822
        %3846 = vmatprep.subr.mxu0 0.0
        %3847 = vmatpush1.msra.mxu0 0.0
        %3848 = vmatprep.subr.mxu0 0.0
        %3849 = vmatpush1.msra.mxu0 0.0
        %3850 = vmatprep.subr.mxu0 0.0
        %3851 = vmatpush1.msra.mxu0 0.0
        %3852 = vmatprep.subr.mxu0 0.0
        %3853 = vmatpush1.msra.mxu0 0.0
        %3854 = vmatprep.subr.mxu0 0.0
        %3855 = vmatpush1.msra.mxu0 0.0
        %3856 = vmatprep.subr.mxu0 0.0
        %3857 = vmatpush1.msra.mxu0 0.0
        %3858 = vmatprep.subr.mxu0 0.0
        %3859 = vmatpush1.msra.mxu0 0.0
        %3860 = vmatprep.subr.mxu0 0.0
        %3861 = vmatpush1.msra.mxu0 0.0
        %3862 = vmatprep.subr.mxu0 0.0
        %3863 = vmatpush1.msra.mxu0 0.0
        %3864 = vmatprep.subr.mxu0 0.0
        %3865 = vmatpush1.msra.mxu0 0.0
        %3866 = vmatprep.subr.mxu0 0.0
        %3867 = vmatpush1.msra.mxu0 0.0
        %3868 = vmatprep.subr.mxu0 0.0
        %3869 = vmatpush1.msra.mxu0 0.0
        %3870 = vmatprep.subr.mxu0 0.0
        %3871 = vmatpush1.msra.mxu0 0.0
        %3872 = vmatprep.subr.mxu0 0.0
        %3873 = vmatpush1.msra.mxu0 0.0
        %3874 = vmatprep.subr.mxu0 0.0
        %3875 = vmatpush1.msra.mxu0 0.0
        %3876 = vmatprep.subr.mxu0 0.0
        %3877 = vmatpush1.msra.mxu0 0.0
        %3878 = vmatprep.subr.mxu0 0.0
        %3879 = vmatpush1.msra.mxu0 0.0
        %3880 = vmatprep.subr.mxu0 0.0
        %3881 = vmatpush1.msra.mxu0 0.0
        %3882 = vmatprep.subr.mxu0 0.0
        %3883 = vmatpush1.msra.mxu0 0.0
        %3884 = vmatprep.subr.mxu0 0.0
        %3885 = vmatpush1.msra.mxu0 0.0
        %3886 = vmatprep.subr.mxu0 0.0
        %3887 = vmatpush1.msra.mxu0 0.0
        %3888 = vmatprep.mubr.f32.mxu0 0.0
        %3889 = vmatmul.mubr.f32.gmra.mrb[0].mxu0 %v3819
        %v3890 = vpop.f32.mrb[0].mxu0
        %v3891 = vadd.f32 %v3816, %v3890
        %v3892 = vpop.f32.mrb[0].mxu0
        %3893 = vdwg.mxu0
        %vm3894 = vcmask 73728
        %v3895 = vsel %vm3894, %v3891, -inf
        %3896 = vmax.xlane.f32.xlu0 %v3895
        %v3897 = vpop.xlane.xlu0 %3896
        %v3898 = vsub.f32 %v3891, %v3897
        %v3899 = vmul.f32 %v3898, 1.442695
        %v3900 = vpow.pop %v3899
        %v3901 = vsel %vm3894, %v3900, 0.0
        %3902 = vadd.xlane.f32.xlu0 %v3901
        %v3903 = vpop.xlane.xlu0 %3902
        %v3904 = vlog2.pop %v3903
        %v3905 = vmul.f32 %v3904, 0.6931472
        %3906 = vst.msk [vmem:[%s436] sm:$0x1] %vm3894, %v3891
        %v3907 = vsub.f32 %v3898, %v3905
        %3908 = vst.msk [vmem:[%s442] sm:$0x1] %vm3894, %v3907
        %s3909 = sand.u32 %s296, 1
        %s3910 = scalar_lea.sflag [#allocation3], %s3909
        %s3911 = sand.u32 %s296, 1
        %s3912 = scalar_lea.vmem [#allocation2], %s3911
        %s3913 = sand.u32 %s322, 1
        %s3914 = scalar_lea.sflag [#allocation5], %s3913
        %s3915 = sand.u32 %s322, 1
        %s3916 = scalar_lea.vmem [#allocation4], %s3915
        // Predicated region
        $region69: #{lenet_forward.1} parent=67 // pred_check
          %p3917 = pneg %p306
        $region70: #{lenet_forward.1} parent=67 // pred_check_branch
          %3919 = sbr.rel (%p3917) target = $region72
        $region71: #{lenet_forward.1} parent=67 // pred_region
          %s3921 = ssub.s32 16, 16
          %3922 = vsyncadd %s3910, %s3921
          %s3923 = smul.addr %s31, 16
          %s3924 = scalar_lea.hbm %s12, %s3923
          %s3926 = sshll.u32 %s3912, 4
          %s3927 = int_to_ptr.vmem [resolvable:$true] %s3926
          %3929 = dma.vmem_to_hbm [thread:$0]  %s3927, 16, %s3924, %s3910
        $region72: #{lenet_forward.1} parent=67 // pred_fallthru
          _
        // Predicated region
        $region73: #{lenet_forward.1} parent=67 // pred_check
          %p3930 = pneg %p332
        $region74: #{lenet_forward.1} parent=67 // pred_check_branch
          %3932 = sbr.rel (%p3930) target = $region76
        $region75: #{lenet_forward.1} parent=67 // pred_region
          %s3934 = ssub.s32 16, 16
          %3935 = vsyncadd %s3914, %s3934
          %s3936 = smul.addr %s31, 16
          %s3937 = scalar_lea.hbm %s13, %s3936
          %s3939 = sshll.u32 %s3916, 4
          %s3940 = int_to_ptr.vmem [resolvable:$true] %s3939
          %3942 = dma.vmem_to_hbm [thread:$0]  %s3940, 16, %s3937, %s3914
        $region76: #{lenet_forward.1} parent=67 // pred_fallthru
          _
      $region68: #{lenet_forward.1} parent=5 // pred_fallthru
        _
      %p3943 = scmp.le.s32.totalorder 2, %s26
      // Predicated region
      $region77: #{lenet_forward.1} parent=5 // pred_check
        %p3944 = pneg %p3943
      $region78: #{lenet_forward.1} parent=5 // pred_check_branch
        %3946 = sbr.rel (%p3944) target = $region80
      $region79: #{lenet_forward.1} parent=5 // pred_region
        %s3947 = ssub.s32 %s26, 2
        // Predicated region
        $region81: #{lenet_forward.1} parent=79 // pred_check
          %p3948 = pneg %p312
        $region82: #{lenet_forward.1} parent=79 // pred_check_branch
          %3950 = sbr.rel (%p3948) target = $region84
        $region83: #{lenet_forward.1} parent=79 // pred_region
          %s3951 = sand.u32 %s297, 1
          %s3952 = scalar_lea.sflag [#allocation3], %s3951
          %s3953 = sand.u32 %s297, 1
          %s3954 = scalar_lea.vmem [#allocation2], %s3953
          %3955 = dma.done %s3952, 16
        $region84: #{lenet_forward.1} parent=79 // pred_fallthru
          _
        // Predicated region
        $region85: #{lenet_forward.1} parent=79 // pred_check
          %p3956 = pneg %p338
        $region86: #{lenet_forward.1} parent=79 // pred_check_branch
          %3958 = sbr.rel (%p3956) target = $region88
        $region87: #{lenet_forward.1} parent=79 // pred_region
          %s3959 = sand.u32 %s323, 1
          %s3960 = scalar_lea.sflag [#allocation5], %s3959
          %s3961 = sand.u32 %s323, 1
          %s3962 = scalar_lea.vmem [#allocation4], %s3961
          %3963 = dma.done %s3960, 16
        $region88: #{lenet_forward.1} parent=79 // pred_fallthru
          _
      $region80: #{lenet_forward.1} parent=5 // pred_fallthru
        _
    $region6: #{lenet_forward.1} parent=1 // loop_footer
      %s30 = sadd.s32 1, %s26
    $region7: #{lenet_forward.1} parent=1 // loop_footer_branch
      %25 = sbr.rel target = $region3
    $region8: #{lenet_forward.1} parent=1 // loop_exit
      _
    %3964 = vsyncpa [#allocation3], 1
    %s3965 = scalar_lea.sflag [#allocation3], 1
    %3966 = vsyncpa %s3965, 1
    %3967 = vsyncpa [#allocation5], 1
    %s3968 = scalar_lea.sflag [#allocation5], 1
    %3969 = vsyncpa %s3968, 1

</llo_original>
